<compile_context>
chip_gen: v6e
topology: v6e:2x2x1
jax: 0.10.0
libtpu: 0.0.40
codegen_flags: <defaults>
</compile_context>

<pallas_src>
import numpy as np
import jax
import jax.numpy as jnp
from jax import lax
from jax.experimental import pallas as pl
from jax.experimental.pallas import tpu as pltpu


# -----------------------------------------------------------------------------
# Pallas kernels
# -----------------------------------------------------------------------------
def bilstm_layer_kernel(x_f_ref, x_b_ref, lens_ref,
                        wih_f_ref, wih_b_ref, whh_f_ref, whh_b_ref,
                        b_f_ref, b_b_ref,
                        out_f_ref, out_b_ref,
                        gxf_scr, gxb_scr, hf, cf, hb, cb):
    """Fused bidirectional LSTM layer over one time-chunk.

    Activations are "chunk-flattened" time-major: shape (num_chunks, TC*Bp, E), where row
    r of a chunk is (local_time, batch) = (r // Bp, r % Bp) and Bp is 8-sublane padded.

    x_f_ref : (1, TC*Bp, E) bf16   chunk `c` of the layer input (forward walk)
    x_b_ref : (1, TC*Bp, E) bf16   chunk `NC-1-c` of the same input (backward walk)
    lens_ref: (Bp, 1) int32        valid lengths (0 for padded batch rows)
    wih_*   : (E, 4H) bf16   whh_*: (H, 4H) bf16   b_*: (1, 4H) f32  (= b_ih + b_hh)
    out_*   : (1, TC*Bp, H) bf16   per-direction outputs at final (un-reversed) positions
    gx*_scr : (TC*Bp, 4H) f32      hoisted input-projection gates for the chunk
    hf/cf/hb/cb : (Bp, H) f32      running states, persistent across grid steps
    """
    _, TCB, _ = x_f_ref.shape
    Bp, H = hf.shape
    TC = TCB // Bp

    chunk = pl.program_id(0)
    nchunks = pl.num_programs(0)

    @pl.when(chunk == 0)
    def _init():
        hf[...] = jnp.zeros_like(hf)
        cf[...] = jnp.zeros_like(cf)
        hb[...] = jnp.zeros_like(hb)
        cb[...] = jnp.zeros_like(cb)

    # Hoisted input projection: one well-shaped bf16 MXU matmul per direction per chunk
    # (bias folded in, so nothing is re-broadcast inside the time loop).
    gxf_scr[...] = (jnp.dot(x_f_ref[0], wih_f_ref[...],
                            preferred_element_type=jnp.float32) + b_f_ref[...])
    gxb_scr[...] = (jnp.dot(x_b_ref[0], wih_b_ref[...],
                            preferred_element_type=jnp.float32) + b_b_ref[...])

    whh_f = whh_f_ref[...]
    whh_b = whh_b_ref[...]
    lens = lens_ref[...]                               # (Bp, 1) int32
    t0_f = chunk * TC                                  # global start time of forward chunk
    t0_b = (nchunks - 1 - chunk) * TC                  # global start time of backward chunk

    def cell(gates, c_prev):
        # PyTorch gate order: i, f, g, o
        i_g = jax.nn.sigmoid(gates[:, 0:H])
        f_g = jax.nn.sigmoid(gates[:, H:2 * H])
        g_g = jnp.tanh(gates[:, 2 * H:3 * H])
        o_g = jax.nn.sigmoid(gates[:, 3 * H:4 * H])
        c_new = f_g * c_prev + i_g * g_g
        h_new = o_g * jnp.tanh(c_new)
        return h_new, c_new

    def step(lt, carry):
        # ---- forward direction: global time t0_f + lt (increasing) ----
        off = pl.multiple_of(lt * Bp, Bp)              # 8-sublane aligned row offset
        m = ((t0_f + lt) < lens).astype(jnp.float32)   # (Bp, 1) packed-sequence mask
        gates = gxf_scr[pl.ds(off, Bp), :] + jnp.dot(
            hf[...].astype(whh_f.dtype), whh_f, preferred_element_type=jnp.float32)
        h_new, c_new = cell(gates, cf[...])
        hf[...] = m * h_new + (1.0 - m) * hf[...]
        cf[...] = m * c_new + (1.0 - m) * cf[...]
        out_f_ref[0, pl.ds(off, Bp), :] = (h_new * m).astype(out_f_ref.dtype)

        # ---- backward direction: global time t0_b + (TC-1-lt) (decreasing overall) ----
        lt_b = TC - 1 - lt
        off_b = pl.multiple_of(lt_b * Bp, Bp)
        mb = ((t0_b + lt_b) < lens).astype(jnp.float32)
        gates_b = gxb_scr[pl.ds(off_b, Bp), :] + jnp.dot(
            hb[...].astype(whh_b.dtype), whh_b, preferred_element_type=jnp.float32)
        h_newb, c_newb = cell(gates_b, cb[...])
        hb[...] = mb * h_newb + (1.0 - mb) * hb[...]
        cb[...] = mb * c_newb + (1.0 - mb) * cb[...]
        out_b_ref[0, pl.ds(off_b, Bp), :] = (h_newb * mb).astype(out_b_ref.dtype)
        return carry

    # Full unroll for short chunks; partial unroll keeps LLO visibility on long chunks.
    lax.fori_loop(0, TC, step, 0, unroll=True if TC <= 32 else 4)


def linear_kernel(x_ref, w_ref, b_ref, out_ref):
    """hidden2tag on a row tile; output last dim padded to 128 lanes (lane-dense stores)."""
    out_ref[...] = (jnp.dot(x_ref[...], w_ref[...], preferred_element_type=jnp.float32)
                    + b_ref[...])


# -----------------------------------------------------------------------------
# Wrappers
# -----------------------------------------------------------------------------
def run_bilstm_layer(x, lens_col, wih_f, wih_b, whh_f, whh_b, b_f, b_b):
    NT, TCB, E = x.shape
    Bp = lens_col.shape[0]
    H = whh_f.shape[0]
    G = 4 * H
    fwd3 = lambda t: (t, 0, 0)
    bwd3 = lambda t: (NT - 1 - t, 0, 0)      # mirrored chunk order for the backward direction
    full2 = lambda t: (0, 0)
    return pl.pallas_call(
        bilstm_layer_kernel,
        out_shape=(jax.ShapeDtypeStruct((NT, TCB, H), jnp.bfloat16),
                   jax.ShapeDtypeStruct((NT, TCB, H), jnp.bfloat16)),
        grid=(NT,),
        in_specs=[
            pl.BlockSpec((1, TCB, E), fwd3),   # x, forward chunk order
            pl.BlockSpec((1, TCB, E), bwd3),   # same x, mirrored chunk order
            pl.BlockSpec((Bp, 1), full2),      # lengths
            pl.BlockSpec((E, G), full2),       # W_ih forward
            pl.BlockSpec((E, G), full2),       # W_ih backward
            pl.BlockSpec((H, G), full2),       # W_hh forward
            pl.BlockSpec((H, G), full2),       # W_hh backward
            pl.BlockSpec((1, G), full2),       # bias forward
            pl.BlockSpec((1, G), full2),       # bias backward
        ],
        out_specs=(
            pl.BlockSpec((1, TCB, H), fwd3),
            pl.BlockSpec((1, TCB, H), bwd3),
        ),
        scratch_shapes=[
            pltpu.VMEM((TCB, G), jnp.float32),   # hoisted gates, forward
            pltpu.VMEM((TCB, G), jnp.float32),   # hoisted gates, backward
            pltpu.VMEM((Bp, H), jnp.float32),    # h forward
            pltpu.VMEM((Bp, H), jnp.float32),    # c forward
            pltpu.VMEM((Bp, H), jnp.float32),    # h backward
            pltpu.VMEM((Bp, H), jnp.float32),    # c backward
        ],
        compiler_params=pltpu.CompilerParams(dimension_semantics=("arbitrary",)),
    )(x, x, lens_col, wih_f, wih_b, whh_f, whh_b, b_f, b_b)


def run_linear(x, w_pad, b_pad):
    N, K = x.shape
    P = w_pad.shape[1]
    RB = next((r for r in (1024, 512, 256, 128, 64, 32, 16, 8) if N % r == 0), N)
    return pl.pallas_call(
        linear_kernel,
        out_shape=jax.ShapeDtypeStruct((N, P), jnp.float32),
        grid=(N // RB,),
        in_specs=[pl.BlockSpec((RB, K), lambda i: (i, 0)),
                  pl.BlockSpec((K, P), lambda i: (0, 0)),
                  pl.BlockSpec((1, P), lambda i: (0, 0))],
        out_specs=pl.BlockSpec((RB, P), lambda i: (i, 0)),
        compiler_params=pltpu.CompilerParams(dimension_semantics=("parallel",)),
    )(x, w_pad, b_pad)


def bilstm_forward(params, batch_input, batch_input_lens, batch_mask_idx,
                   num_layers, hidden_dim, tagset_size):
    B, T = batch_input.shape
    H = hidden_dim // 2                                    # per-direction hidden size

    # Time-chunking: the grid streams chunks through VMEM; h/c persist in scratch.
    TC = T if T <= 128 else 128
    T_pad = ((T + TC - 1) // TC) * TC
    NT = T_pad // TC
    Bp = ((B + 7) // 8) * 8                                # 8-sublane aligned batch

    # Embedding lookup (XLA gather glue), time-major; bf16 activations for the MXU.
    ids_tm = jnp.transpose(batch_input)                            # (T, B)
    emb = params["embedding"][ids_tm].astype(jnp.bfloat16)         # (T, B, E)
    emb = jnp.pad(emb, ((0, T_pad - T), (0, Bp - B), (0, 0)))      # padded steps/rows -> mask 0
    E = emb.shape[-1]

    lens_col = jnp.pad(batch_input_lens.astype(jnp.int32),
                       (0, Bp - B)).reshape(Bp, 1)                 # padded rows: length 0

    x = emb.reshape(NT, TC * Bp, E)          # chunk-flattened rows: r = local_t * Bp + b
    for l in range(num_layers):
        p = params["lstm"][l]
        out_f, out_b = run_bilstm_layer(x, lens_col, p["wih_f"], p["wih_b"],
                                        p["whh_f"], p["whh_b"], p["b_f"], p["b_b"])
        x = jnp.concatenate([out_f, out_b], axis=-1)               # (NT, TC*Bp, 2H) bf16

    flat = x.reshape(T_pad * Bp, hidden_dim)                       # row index = t*Bp + b
    tags = run_linear(flat, params["w_tag"], params["b_tag"])[:, :tagset_size]

    # batch_mask indexes the batch-first flatten (b*T + t); remap to our time-major flatten.
    b_idx = batch_mask_idx // T
    t_idx = batch_mask_idx % T
    return tags[t_idx * Bp + b_idx]


# -----------------------------------------------------------------------------
# Deterministic parameter construction
# -----------------------------------------------------------------------------
def make_params(key, vocab_size, tagset_size, embedding_dim, hidden_dim, num_layers):
    H = hidden_dim // 2
    tagp = ((tagset_size + 127) // 128) * 128              # lane-dense padded tag width
    keys = jax.random.split(key, 2 + num_layers)
    params = {"embedding": jax.random.normal(keys[0], (vocab_size, embedding_dim),
                                             dtype=jnp.float32)}
    bound = 1.0 / np.sqrt(H)
    layers = []
    for l in range(num_layers):
        in_size = embedding_dim if l == 0 else hidden_dim
        lk = jax.random.split(keys[1 + l], 6)
        u = lambda k, shape: jax.random.uniform(k, shape, jnp.float32, -bound, bound)
        layers.append({
            # weights pre-transposed to (in, 4H); bf16 for the MXU
            "wih_f": u(lk[0], (in_size, 4 * H)).astype(jnp.bfloat16),
            "whh_f": u(lk[1], (H, 4 * H)).astype(jnp.bfloat16),
            # TODO(synk): for real PyTorch weight import this bias must be b_ih + b_hh.
            "b_f":   u(lk[2], (1, 4 * H)),
            "wih_b": u(lk[3], (in_size, 4 * H)).astype(jnp.bfloat16),
            "whh_b": u(lk[4], (H, 4 * H)).astype(jnp.bfloat16),
            "b_b":   u(lk[5], (1, 4 * H)),
        })
    params["lstm"] = layers
    lb = 1.0 / np.sqrt(hidden_dim)
    fk = jax.random.split(keys[-1], 2)
    w = jax.random.uniform(fk[0], (hidden_dim, tagset_size), jnp.float32, -lb, lb)
    b = jax.random.uniform(fk[1], (1, tagset_size), jnp.float32, -lb, lb)
    # pad hidden2tag to 128 output lanes (kernel stores are unmasked; wrapper slices back)
    params["w_tag"] = jnp.pad(w, ((0, 0), (0, tagp - tagset_size))).astype(jnp.bfloat16)
    params["b_tag"] = jnp.pad(b, ((0, 0), (0, tagp - tagset_size)))
    return params


# -----------------------------------------------------------------------------
# Main
# -----------------------------------------------------------------------------
if __name__ == "__main__":
    vocab_size = 50
    tagset = ("O", "B-PER", "I-PER", "B-LOC", "I-LOC")
    embedding_dim = 32
    hidden_dim = 32
    num_layers = 1
    B, T = 2, 8

    key = jax.random.PRNGKey(0)
    pkey, dkey = jax.random.split(key)
    params = make_params(pkey, vocab_size, len(tagset), embedding_dim, hidden_dim, num_layers)

    batch_input = jax.random.randint(dkey, (B, T), 0, vocab_size, dtype=jnp.int32)
    lens_np = np.array([8, 5], dtype=np.int32)              # sorted descending (enforce_sorted)
    batch_input_lens = jnp.asarray(lens_np)

    # batch_mask: indices of valid positions in the flattened batch-first (B*T) output
    # (static-size integer index array - JAX cannot do dynamic-shape boolean masking).
    mask_idx_np = np.concatenate(
        [b * T + np.arange(lens_np[b]) for b in range(B)]).astype(np.int32)
    batch_mask_idx = jnp.asarray(mask_idx_np)

    fwd = jax.jit(bilstm_forward, static_argnums=(4, 5, 6))
    out = fwd(params, batch_input, batch_input_lens, batch_mask_idx,
              num_layers, hidden_dim, len(tagset))
    out = jax.block_until_ready(out)

    assert out.shape == (int(lens_np.sum()), len(tagset)), out.shape
    assert out.dtype == jnp.float32
    assert bool(jnp.all(jnp.isfinite(out)))
    print("KERNEL_OK")
</pallas_src>

<mosaic_0001>
module attributes {stable_mosaic.version = 11 : i64} {
  func.func @linear_kernel(%arg0: i32, %arg1: memref<64x32xbf16, #tpu.memory_space<vmem>>, %arg2: memref<32x128xbf16, #tpu.memory_space<vmem>>, %arg3: memref<1x128xf32, #tpu.memory_space<vmem>>, %arg4: memref<64x128xf32, #tpu.memory_space<vmem>>) attributes {dimension_semantics = [#tpu.dimension_semantics<parallel>], iteration_bounds = array<i64: 1>, scalar_prefetch = 0 : i64, scratch_operands = 0 : i64, tpu.core_type = #tpu.core_type<tc>, window_params = [{transform_indices = @transform_0, window_bounds = array<i64: 64, 32>}, {pipeline_mode = #tpu.pipeline_mode<synchronous>, transform_indices = @transform_1, window_bounds = array<i64: 32, 128>}, {pipeline_mode = #tpu.pipeline_mode<synchronous>, transform_indices = @transform_2, window_bounds = array<i64: 1, 128>}, {transform_indices = @transform_3, window_bounds = array<i64: 64, 128>}]} {
    %c0 = arith.constant 0 : index
    %c0_0 = arith.constant 0 : index
    %0 = vector.load %arg1[%c0, %c0_0] : memref<64x32xbf16, #tpu.memory_space<vmem>>, vector<64x32xbf16>
    %c0_1 = arith.constant 0 : index
    %c0_2 = arith.constant 0 : index
    %1 = vector.load %arg2[%c0_1, %c0_2] : memref<32x128xbf16, #tpu.memory_space<vmem>>, vector<32x128xbf16>
    %cst = arith.constant dense<0.000000e+00> : vector<64x128xf32>
    %2 = tpu.matmul %0, %1, %cst {dimension_numbers = #tpu.dot_dimension_numbers<[1], [0], [0], [1], [0, 0, 1, 1], [], []>} : vector<64x32xbf16>, vector<32x128xbf16>, vector<64x128xf32> -> vector<64x128xf32>
    %c0_3 = arith.constant 0 : index
    %c0_4 = arith.constant 0 : index
    %3 = vector.load %arg3[%c0_3, %c0_4] : memref<1x128xf32, #tpu.memory_space<vmem>>, vector<1x128xf32>
    %4 = vector.broadcast %3 : vector<1x128xf32> to vector<64x128xf32>
    %5 = arith.addf %2, %4 : vector<64x128xf32>
    %c0_5 = arith.constant 0 : index
    %c0_6 = arith.constant 0 : index
    %6 = vector.load %arg4[%c0_5, %c0_6] : memref<64x128xf32, #tpu.memory_space<vmem>>, vector<64x128xf32>
    tpu.vector_store %arg4[%c0_5, %c0_6], %5 {strides = array<i32>} : memref<64x128xf32, #tpu.memory_space<vmem>>, vector<64x128xf32>,
    return
  }
  func.func @transform_0(%arg0: i32) -> (i32, i32) {
    %c0_i32 = arith.constant 0 : i32
    %c0_i32_0 = arith.constant 0 : i32
    return %arg0, %c0_i32 : i32, i32
  }
  func.func @transform_1(%arg0: i32) -> (i32, i32) {
    %c0_i32 = arith.constant 0 : i32
    %c0_i32_0 = arith.constant 0 : i32
    %c0_i32_1 = arith.constant 0 : i32
    return %c0_i32, %c0_i32_0 : i32, i32
  }
  func.func @transform_2(%arg0: i32) -> (i32, i32) {
    %c0_i32 = arith.constant 0 : i32
    %c0_i32_0 = arith.constant 0 : i32
    %c0_i32_1 = arith.constant 0 : i32
    return %c0_i32, %c0_i32_0 : i32, i32
  }
  func.func @transform_3(%arg0: i32) -> (i32, i32) {
    %c0_i32 = arith.constant 0 : i32
    %c0_i32_0 = arith.constant 0 : i32
    return %arg0, %c0_i32 : i32, i32
  }
}

module attributes {stable_mosaic.version = 11 : i64} {
  func.func @bilstm_layer_kernel(%arg0: i32, %arg1: memref<1x64x32xbf16, #tpu.memory_space<vmem>>, %arg2: memref<1x64x32xbf16, #tpu.memory_space<vmem>>, %arg3: memref<8x1xi32, #tpu.memory_space<vmem>>, %arg4: memref<32x64xbf16, #tpu.memory_space<vmem>>, %arg5: memref<32x64xbf16, #tpu.memory_space<vmem>>, %arg6: memref<16x64xbf16, #tpu.memory_space<vmem>>, %arg7: memref<16x64xbf16, #tpu.memory_space<vmem>>, %arg8: memref<1x64xf32, #tpu.memory_space<vmem>>, %arg9: memref<1x64xf32, #tpu.memory_space<vmem>>, %arg10: memref<1x64x16xbf16, #tpu.memory_space<vmem>>, %arg11: memref<1x64x16xbf16, #tpu.memory_space<vmem>>, %arg12: memref<64x64xf32, #tpu.memory_space<vmem>>, %arg13: memref<64x64xf32, #tpu.memory_space<vmem>>, %arg14: memref<8x16xf32, #tpu.memory_space<vmem>>, %arg15: memref<8x16xf32, #tpu.memory_space<vmem>>, %arg16: memref<8x16xf32, #tpu.memory_space<vmem>>, %arg17: memref<8x16xf32, #tpu.memory_space<vmem>>) attributes {dimension_semantics = [#tpu.dimension_semantics<arbitrary>], iteration_bounds = array<i64: 1>, scalar_prefetch = 0 : i64, scratch_operands = 6 : i64, tpu.core_type = #tpu.core_type<tc>, window_params = [{transform_indices = @transform_0, window_bounds = array<i64: 1, 64, 32>}, {transform_indices = @transform_1, window_bounds = array<i64: 1, 64, 32>}, {pipeline_mode = #tpu.pipeline_mode<synchronous>, transform_indices = @transform_2, window_bounds = array<i64: 8, 1>}, {pipeline_mode = #tpu.pipeline_mode<synchronous>, transform_indices = @transform_3, window_bounds = array<i64: 32, 64>}, {pipeline_mode = #tpu.pipeline_mode<synchronous>, transform_indices = @transform_4, window_bounds = array<i64: 32, 64>}, {pipeline_mode = #tpu.pipeline_mode<synchronous>, transform_indices = @transform_5, window_bounds = array<i64: 16, 64>}, {pipeline_mode = #tpu.pipeline_mode<synchronous>, transform_indices = @transform_6, window_bounds = array<i64: 16, 64>}, {pipeline_mode = #tpu.pipeline_mode<synchronous>, transform_indices = @transform_7, window_bounds = array<i64: 1, 64>}, {pipeline_mode = #tpu.pipeline_mode<synchronous>, transform_indices = @transform_8, window_bounds = array<i64: 1, 64>}, {transform_indices = @transform_9, window_bounds = array<i64: 1, 64, 16>}, {transform_indices = @transform_10, window_bounds = array<i64: 1, 64, 16>}]} {
    %c0_i32 = arith.constant 0 : i32
    %0 = arith.cmpi eq, %arg0, %c0_i32 : i32
    %1 = arith.extui %0 : i1 to i32
    %c0_i32_0 = arith.constant 0 : i32
    %2 = arith.cmpi ne, %1, %c0_i32_0 : i32
    scf.if %2 {
      %cst_389 = arith.constant 0.000000e+00 : f32
      %1057 = vector.broadcast %cst_389 : f32 to vector<8x16xf32>
      %c0_390 = arith.constant 0 : index
      %c0_391 = arith.constant 0 : index
      %1058 = vector.load %arg14[%c0_390, %c0_391] : memref<8x16xf32, #tpu.memory_space<vmem>>, vector<8x16xf32>
      tpu.vector_store %arg14[%c0_390, %c0_391], %1057 {strides = array<i32>} : memref<8x16xf32, #tpu.memory_space<vmem>>, vector<8x16xf32>,
      %cst_392 = arith.constant 0.000000e+00 : f32
      %1059 = vector.broadcast %cst_392 : f32 to vector<8x16xf32>
      %c0_393 = arith.constant 0 : index
      %c0_394 = arith.constant 0 : index
      %1060 = vector.load %arg15[%c0_393, %c0_394] : memref<8x16xf32, #tpu.memory_space<vmem>>, vector<8x16xf32>
      tpu.vector_store %arg15[%c0_393, %c0_394], %1059 {strides = array<i32>} : memref<8x16xf32, #tpu.memory_space<vmem>>, vector<8x16xf32>,
      %cst_395 = arith.constant 0.000000e+00 : f32
      %1061 = vector.broadcast %cst_395 : f32 to vector<8x16xf32>
      %c0_396 = arith.constant 0 : index
      %c0_397 = arith.constant 0 : index
      %1062 = vector.load %arg16[%c0_396, %c0_397] : memref<8x16xf32, #tpu.memory_space<vmem>>, vector<8x16xf32>
      tpu.vector_store %arg16[%c0_396, %c0_397], %1061 {strides = array<i32>} : memref<8x16xf32, #tpu.memory_space<vmem>>, vector<8x16xf32>,
      %cst_398 = arith.constant 0.000000e+00 : f32
      %1063 = vector.broadcast %cst_398 : f32 to vector<8x16xf32>
      %c0_399 = arith.constant 0 : index
      %c0_400 = arith.constant 0 : index
      %1064 = vector.load %arg17[%c0_399, %c0_400] : memref<8x16xf32, #tpu.memory_space<vmem>>, vector<8x16xf32>
      tpu.vector_store %arg17[%c0_399, %c0_400], %1063 {strides = array<i32>} : memref<8x16xf32, #tpu.memory_space<vmem>>, vector<8x16xf32>,
    } else {
    }
    %c0 = arith.constant 0 : index
    %c0_1 = arith.constant 0 : index
    %c0_2 = arith.constant 0 : index
    %3 = vector.load %arg1[%c0, %c0_1, %c0_2] : memref<1x64x32xbf16, #tpu.memory_space<vmem>>, vector<1x64x32xbf16>
    %4 = vector.shape_cast %3 : vector<1x64x32xbf16> to vector<64x32xbf16>
    %c0_3 = arith.constant 0 : index
    %c0_4 = arith.constant 0 : index
    %5 = vector.load %arg4[%c0_3, %c0_4] : memref<32x64xbf16, #tpu.memory_space<vmem>>, vector<32x64xbf16>
    %cst = arith.constant dense<0.000000e+00> : vector<64x64xf32>
    %6 = tpu.matmul %4, %5, %cst {dimension_numbers = #tpu.dot_dimension_numbers<[1], [0], [0], [1], [0, 0, 1, 1], [], []>} : vector<64x32xbf16>, vector<32x64xbf16>, vector<64x64xf32> -> vector<64x64xf32>
    %c0_5 = arith.constant 0 : index
    %c0_6 = arith.constant 0 : index
    %7 = vector.load %arg8[%c0_5, %c0_6] : memref<1x64xf32, #tpu.memory_space<vmem>>, vector<1x64xf32>
    %8 = vector.broadcast %7 : vector<1x64xf32> to vector<64x64xf32>
    %9 = arith.addf %6, %8 : vector<64x64xf32>
    %c0_7 = arith.constant 0 : index
    %c0_8 = arith.constant 0 : index
    %10 = vector.load %arg12[%c0_7, %c0_8] : memref<64x64xf32, #tpu.memory_space<vmem>>, vector<64x64xf32>
    tpu.vector_store %arg12[%c0_7, %c0_8], %9 {strides = array<i32>} : memref<64x64xf32, #tpu.memory_space<vmem>>, vector<64x64xf32>,
    %c0_9 = arith.constant 0 : index
    %c0_10 = arith.constant 0 : index
    %c0_11 = arith.constant 0 : index
    %11 = vector.load %arg2[%c0_9, %c0_10, %c0_11] : memref<1x64x32xbf16, #tpu.memory_space<vmem>>, vector<1x64x32xbf16>
    %12 = vector.shape_cast %11 : vector<1x64x32xbf16> to vector<64x32xbf16>
    %c0_12 = arith.constant 0 : index
    %c0_13 = arith.constant 0 : index
    %13 = vector.load %arg5[%c0_12, %c0_13] : memref<32x64xbf16, #tpu.memory_space<vmem>>, vector<32x64xbf16>
    %cst_14 = arith.constant dense<0.000000e+00> : vector<64x64xf32>
    %14 = tpu.matmul %12, %13, %cst_14 {dimension_numbers = #tpu.dot_dimension_numbers<[1], [0], [0], [1], [0, 0, 1, 1], [], []>} : vector<64x32xbf16>, vector<32x64xbf16>, vector<64x64xf32> -> vector<64x64xf32>
    %c0_15 = arith.constant 0 : index
    %c0_16 = arith.constant 0 : index
    %15 = vector.load %arg9[%c0_15, %c0_16] : memref<1x64xf32, #tpu.memory_space<vmem>>, vector<1x64xf32>
    %16 = vector.broadcast %15 : vector<1x64xf32> to vector<64x64xf32>
    %17 = arith.addf %14, %16 : vector<64x64xf32>
    %c0_17 = arith.constant 0 : index
    %c0_18 = arith.constant 0 : index
    %18 = vector.load %arg13[%c0_17, %c0_18] : memref<64x64xf32, #tpu.memory_space<vmem>>, vector<64x64xf32>
    tpu.vector_store %arg13[%c0_17, %c0_18], %17 {strides = array<i32>} : memref<64x64xf32, #tpu.memory_space<vmem>>, vector<64x64xf32>,
    %c0_19 = arith.constant 0 : index
    %c0_20 = arith.constant 0 : index
    %19 = vector.load %arg6[%c0_19, %c0_20] : memref<16x64xbf16, #tpu.memory_space<vmem>>, vector<16x64xbf16>
    %c0_21 = arith.constant 0 : index
    %c0_22 = arith.constant 0 : index
    %20 = vector.load %arg7[%c0_21, %c0_22] : memref<16x64xbf16, #tpu.memory_space<vmem>>, vector<16x64xbf16>
    %c0_23 = arith.constant 0 : index
    %c0_24 = arith.constant 0 : index
    %21 = vector.load %arg3[%c0_23, %c0_24] : memref<8x1xi32, #tpu.memory_space<vmem>>, vector<8x1xi32>
    %c8_i32 = arith.constant 8 : i32
    %22 = arith.muli %arg0, %c8_i32 : i32
    %c0_i32_25 = arith.constant 0 : i32
    %23 = arith.subi %c0_i32_25, %arg0 : i32
    %c8_i32_26 = arith.constant 8 : i32
    %24 = arith.muli %23, %c8_i32_26 : i32
    %c0_i32_27 = arith.constant 0 : i32
    %c8_i32_28 = arith.constant 8 : i32
    %25 = arith.muli %c0_i32_27, %c8_i32_28 : i32
    %26 = tpu.assume_multiple %25, 8 : i32
    %27 = arith.addi %22, %c0_i32_27 : i32
    %28 = vector.broadcast %27 : i32 to vector<8x1xi32>
    %29 = arith.cmpi slt, %28, %21 : vector<8x1xi32>
    %30 = arith.extui %29 : vector<8x1xi1> to vector<8x1xi32>
    %31 = arith.sitofp %30 : vector<8x1xi32> to vector<8x1xf32>
    %32 = arith.index_cast %26 : i32 to index
    %c0_29 = arith.constant 0 : index
    %33 = vector.load %arg12[%32, %c0_29] : memref<64x64xf32, #tpu.memory_space<vmem>>, vector<8x64xf32>
    %c0_30 = arith.constant 0 : index
    %c0_31 = arith.constant 0 : index
    %34 = vector.load %arg14[%c0_30, %c0_31] : memref<8x16xf32, #tpu.memory_space<vmem>>, vector<8x16xf32>
    %35 = arith.truncf %34 : vector<8x16xf32> to vector<8x16xbf16>
    %cst_32 = arith.constant dense<0.000000e+00> : vector<8x64xf32>
    %36 = tpu.matmul %35, %19, %cst_32 {dimension_numbers = #tpu.dot_dimension_numbers<[1], [0], [0], [1], [0, 0, 1, 1], [], []>} : vector<8x16xbf16>, vector<16x64xbf16>, vector<8x64xf32> -> vector<8x64xf32>
    %37 = arith.addf %33, %36 : vector<8x64xf32>
    %c0_33 = arith.constant 0 : index
    %c0_34 = arith.constant 0 : index
    %38 = vector.load %arg15[%c0_33, %c0_34] : memref<8x16xf32, #tpu.memory_space<vmem>>, vector<8x16xf32>
    %39 = vector.extract_strided_slice %37 {offsets = [0, 0], sizes = [8, 16], strides = [1, 1]} : vector<8x64xf32> to vector<8x16xf32>
    %40 = arith.negf %39 : vector<8x16xf32>
    %41 = math.exp %40 : vector<8x16xf32>
    %cst_35 = arith.constant 1.000000e+00 : f32
    %42 = vector.broadcast %cst_35 : f32 to vector<8x16xf32>
    %43 = arith.addf %42, %41 : vector<8x16xf32>
    %44 = arith.divf %42, %43 : vector<8x16xf32>
    %45 = vector.extract_strided_slice %37 {offsets = [0, 16], sizes = [8, 16], strides = [1, 1]} : vector<8x64xf32> to vector<8x16xf32>
    %46 = arith.negf %45 : vector<8x16xf32>
    %47 = math.exp %46 : vector<8x16xf32>
    %cst_36 = arith.constant 1.000000e+00 : f32
    %48 = vector.broadcast %cst_36 : f32 to vector<8x16xf32>
    %49 = arith.addf %48, %47 : vector<8x16xf32>
    %50 = arith.divf %48, %49 : vector<8x16xf32>
    %51 = vector.extract_strided_slice %37 {offsets = [0, 32], sizes = [8, 16], strides = [1, 1]} : vector<8x64xf32> to vector<8x16xf32>
    %52 = math.tanh %51 : vector<8x16xf32>
    %53 = vector.extract_strided_slice %37 {offsets = [0, 48], sizes = [8, 16], strides = [1, 1]} : vector<8x64xf32> to vector<8x16xf32>
    %54 = arith.negf %53 : vector<8x16xf32>
    %55 = math.exp %54 : vector<8x16xf32>
    %cst_37 = arith.constant 1.000000e+00 : f32
    %56 = vector.broadcast %cst_37 : f32 to vector<8x16xf32>
    %57 = arith.addf %56, %55 : vector<8x16xf32>
    %58 = arith.divf %56, %57 : vector<8x16xf32>
    %59 = arith.mulf %50, %38 : vector<8x16xf32>
    %60 = arith.mulf %44, %52 : vector<8x16xf32>
    %61 = arith.addf %59, %60 : vector<8x16xf32>
    %62 = math.tanh %61 : vector<8x16xf32>
    %63 = arith.mulf %58, %62 : vector<8x16xf32>
    %64 = vector.broadcast %31 : vector<8x1xf32> to vector<8x16xf32>
    %65 = arith.mulf %64, %63 : vector<8x16xf32>
    %cst_38 = arith.constant 1.000000e+00 : f32
    %66 = vector.broadcast %cst_38 : f32 to vector<8x1xf32>
    %67 = arith.subf %66, %31 : vector<8x1xf32>
    %c0_39 = arith.constant 0 : index
    %c0_40 = arith.constant 0 : index
    %68 = vector.load %arg14[%c0_39, %c0_40] : memref<8x16xf32, #tpu.memory_space<vmem>>, vector<8x16xf32>
    %69 = vector.broadcast %67 : vector<8x1xf32> to vector<8x16xf32>
    %70 = arith.mulf %69, %68 : vector<8x16xf32>
    %71 = arith.addf %65, %70 : vector<8x16xf32>
    %c0_41 = arith.constant 0 : index
    %c0_42 = arith.constant 0 : index
    %72 = vector.load %arg14[%c0_41, %c0_42] : memref<8x16xf32, #tpu.memory_space<vmem>>, vector<8x16xf32>
    tpu.vector_store %arg14[%c0_41, %c0_42], %71 {strides = array<i32>} : memref<8x16xf32, #tpu.memory_space<vmem>>, vector<8x16xf32>,
    %73 = vector.broadcast %31 : vector<8x1xf32> to vector<8x16xf32>
    %74 = arith.mulf %73, %61 : vector<8x16xf32>
    %cst_43 = arith.constant 1.000000e+00 : f32
    %75 = vector.broadcast %cst_43 : f32 to vector<8x1xf32>
    %76 = arith.subf %75, %31 : vector<8x1xf32>
    %c0_44 = arith.constant 0 : index
    %c0_45 = arith.constant 0 : index
    %77 = vector.load %arg15[%c0_44, %c0_45] : memref<8x16xf32, #tpu.memory_space<vmem>>, vector<8x16xf32>
    %78 = vector.broadcast %76 : vector<8x1xf32> to vector<8x16xf32>
    %79 = arith.mulf %78, %77 : vector<8x16xf32>
    %80 = arith.addf %74, %79 : vector<8x16xf32>
    %c0_46 = arith.constant 0 : index
    %c0_47 = arith.constant 0 : index
    %81 = vector.load %arg15[%c0_46, %c0_47] : memref<8x16xf32, #tpu.memory_space<vmem>>, vector<8x16xf32>
    tpu.vector_store %arg15[%c0_46, %c0_47], %80 {strides = array<i32>} : memref<8x16xf32, #tpu.memory_space<vmem>>, vector<8x16xf32>,
    %82 = vector.broadcast %31 : vector<8x1xf32> to vector<8x16xf32>
    %83 = arith.mulf %63, %82 : vector<8x16xf32>
    %84 = arith.truncf %83 : vector<8x16xf32> to vector<8x16xbf16>
    %c0_48 = arith.constant 0 : index
    %85 = arith.index_cast %26 : i32 to index
    %c0_49 = arith.constant 0 : index
    %86 = vector.load %arg10[%c0_48, %85, %c0_49] : memref<1x64x16xbf16, #tpu.memory_space<vmem>>, vector<1x8x16xbf16>
    %87 = vector.shape_cast %86 : vector<1x8x16xbf16> to vector<8x16xbf16>
    %88 = vector.shape_cast %84 : vector<8x16xbf16> to vector<1x8x16xbf16>
    tpu.vector_store %arg10[%c0_48, %85, %c0_49], %88 {strides = array<i32>} : memref<1x64x16xbf16, #tpu.memory_space<vmem>>, vector<1x8x16xbf16>,
    %c7_i32 = arith.constant 7 : i32
    %89 = arith.subi %c7_i32, %c0_i32_27 : i32
    %c8_i32_50 = arith.constant 8 : i32
    %90 = arith.muli %89, %c8_i32_50 : i32
    %91 = tpu.assume_multiple %90, 8 : i32
    %92 = arith.addi %24, %89 : i32
    %93 = vector.broadcast %92 : i32 to vector<8x1xi32>
    %94 = arith.cmpi slt, %93, %21 : vector<8x1xi32>
    %95 = arith.extui %94 : vector<8x1xi1> to vector<8x1xi32>
    %96 = arith.sitofp %95 : vector<8x1xi32> to vector<8x1xf32>
    %97 = arith.index_cast %91 : i32 to index
    %c0_51 = arith.constant 0 : index
    %98 = vector.load %arg13[%97, %c0_51] : memref<64x64xf32, #tpu.memory_space<vmem>>, vector<8x64xf32>
    %c0_52 = arith.constant 0 : index
    %c0_53 = arith.constant 0 : index
    %99 = vector.load %arg16[%c0_52, %c0_53] : memref<8x16xf32, #tpu.memory_space<vmem>>, vector<8x16xf32>
    %100 = arith.truncf %99 : vector<8x16xf32> to vector<8x16xbf16>
    %cst_54 = arith.constant dense<0.000000e+00> : vector<8x64xf32>
    %101 = tpu.matmul %100, %20, %cst_54 {dimension_numbers = #tpu.dot_dimension_numbers<[1], [0], [0], [1], [0, 0, 1, 1], [], []>} : vector<8x16xbf16>, vector<16x64xbf16>, vector<8x64xf32> -> vector<8x64xf32>
    %102 = arith.addf %98, %101 : vector<8x64xf32>
    %c0_55 = arith.constant 0 : index
    %c0_56 = arith.constant 0 : index
    %103 = vector.load %arg17[%c0_55, %c0_56] : memref<8x16xf32, #tpu.memory_space<vmem>>, vector<8x16xf32>
    %104 = vector.extract_strided_slice %102 {offsets = [0, 0], sizes = [8, 16], strides = [1, 1]} : vector<8x64xf32> to vector<8x16xf32>
    %105 = arith.negf %104 : vector<8x16xf32>
    %106 = math.exp %105 : vector<8x16xf32>
    %cst_57 = arith.constant 1.000000e+00 : f32
    %107 = vector.broadcast %cst_57 : f32 to vector<8x16xf32>
    %108 = arith.addf %107, %106 : vector<8x16xf32>
    %109 = arith.divf %107, %108 : vector<8x16xf32>
    %110 = vector.extract_strided_slice %102 {offsets = [0, 16], sizes = [8, 16], strides = [1, 1]} : vector<8x64xf32> to vector<8x16xf32>
    %111 = arith.negf %110 : vector<8x16xf32>
    %112 = math.exp %111 : vector<8x16xf32>
    %cst_58 = arith.constant 1.000000e+00 : f32
    %113 = vector.broadcast %cst_58 : f32 to vector<8x16xf32>
    %114 = arith.addf %113, %112 : vector<8x16xf32>
    %115 = arith.divf %113, %114 : vector<8x16xf32>
    %116 = vector.extract_strided_slice %102 {offsets = [0, 32], sizes = [8, 16], strides = [1, 1]} : vector<8x64xf32> to vector<8x16xf32>
    %117 = math.tanh %116 : vector<8x16xf32>
    %118 = vector.extract_strided_slice %102 {offsets = [0, 48], sizes = [8, 16], strides = [1, 1]} : vector<8x64xf32> to vector<8x16xf32>
    %119 = arith.negf %118 : vector<8x16xf32>
    %120 = math.exp %119 : vector<8x16xf32>
    %cst_59 = arith.constant 1.000000e+00 : f32
    %121 = vector.broadcast %cst_59 : f32 to vector<8x16xf32>
    %122 = arith.addf %121, %120 : vector<8x16xf32>
    %123 = arith.divf %121, %122 : vector<8x16xf32>
    %124 = arith.mulf %115, %103 : vector<8x16xf32>
    %125 = arith.mulf %109, %117 : vector<8x16xf32>
    %126 = arith.addf %124, %125 : vector<8x16xf32>
    %127 = math.tanh %126 : vector<8x16xf32>
    %128 = arith.mulf %123, %127 : vector<8x16xf32>
    %129 = vector.broadcast %96 : vector<8x1xf32> to vector<8x16xf32>
    %130 = arith.mulf %129, %128 : vector<8x16xf32>
    %cst_60 = arith.constant 1.000000e+00 : f32
    %131 = vector.broadcast %cst_60 : f32 to vector<8x1xf32>
    %132 = arith.subf %131, %96 : vector<8x1xf32>
    %c0_61 = arith.constant 0 : index
    %c0_62 = arith.constant 0 : index
    %133 = vector.load %arg16[%c0_61, %c0_62] : memref<8x16xf32, #tpu.memory_space<vmem>>, vector<8x16xf32>
    %134 = vector.broadcast %132 : vector<8x1xf32> to vector<8x16xf32>
    %135 = arith.mulf %134, %133 : vector<8x16xf32>
    %136 = arith.addf %130, %135 : vector<8x16xf32>
    %c0_63 = arith.constant 0 : index
    %c0_64 = arith.constant 0 : index
    %137 = vector.load %arg16[%c0_63, %c0_64] : memref<8x16xf32, #tpu.memory_space<vmem>>, vector<8x16xf32>
    tpu.vector_store %arg16[%c0_63, %c0_64], %136 {strides = array<i32>} : memref<8x16xf32, #tpu.memory_space<vmem>>, vector<8x16xf32>,
    %138 = vector.broadcast %96 : vector<8x1xf32> to vector<8x16xf32>
    %139 = arith.mulf %138, %126 : vector<8x16xf32>
    %cst_65 = arith.constant 1.000000e+00 : f32
    %140 = vector.broadcast %cst_65 : f32 to vector<8x1xf32>
    %141 = arith.subf %140, %96 : vector<8x1xf32>
    %c0_66 = arith.constant 0 : index
    %c0_67 = arith.constant 0 : index
    %142 = vector.load %arg17[%c0_66, %c0_67] : memref<8x16xf32, #tpu.memory_space<vmem>>, vector<8x16xf32>
    %143 = vector.broadcast %141 : vector<8x1xf32> to vector<8x16xf32>
    %144 = arith.mulf %143, %142 : vector<8x16xf32>
    %145 = arith.addf %139, %144 : vector<8x16xf32>
    %c0_68 = arith.constant 0 : index
    %c0_69 = arith.constant 0 : index
    %146 = vector.load %arg17[%c0_68, %c0_69] : memref<8x16xf32, #tpu.memory_space<vmem>>, vector<8x16xf32>
    tpu.vector_store %arg17[%c0_68, %c0_69], %145 {strides = array<i32>} : memref<8x16xf32, #tpu.memory_space<vmem>>, vector<8x16xf32>,
    %147 = vector.broadcast %96 : vector<8x1xf32> to vector<8x16xf32>
    %148 = arith.mulf %128, %147 : vector<8x16xf32>
    %149 = arith.truncf %148 : vector<8x16xf32> to vector<8x16xbf16>
    %c0_70 = arith.constant 0 : index
    %150 = arith.index_cast %91 : i32 to index
    %c0_71 = arith.constant 0 : index
    %151 = vector.load %arg11[%c0_70, %150, %c0_71] : memref<1x64x16xbf16, #tpu.memory_space<vmem>>, vector<1x8x16xbf16>
    %152 = vector.shape_cast %151 : vector<1x8x16xbf16> to vector<8x16xbf16>
    %153 = vector.shape_cast %149 : vector<8x16xbf16> to vector<1x8x16xbf16>
    tpu.vector_store %arg11[%c0_70, %150, %c0_71], %153 {strides = array<i32>} : memref<1x64x16xbf16, #tpu.memory_space<vmem>>, vector<1x8x16xbf16>,
    %c1_i32 = arith.constant 1 : i32
    %c8_i32_72 = arith.constant 8 : i32
    %154 = arith.muli %c1_i32, %c8_i32_72 : i32
    %155 = tpu.assume_multiple %154, 8 : i32
    %156 = arith.addi %22, %c1_i32 : i32
    %157 = vector.broadcast %156 : i32 to vector<8x1xi32>
    %158 = arith.cmpi slt, %157, %21 : vector<8x1xi32>
    %159 = arith.extui %158 : vector<8x1xi1> to vector<8x1xi32>
    %160 = arith.sitofp %159 : vector<8x1xi32> to vector<8x1xf32>
    %161 = arith.index_cast %155 : i32 to index
    %c0_73 = arith.constant 0 : index
    %162 = vector.load %arg12[%161, %c0_73] : memref<64x64xf32, #tpu.memory_space<vmem>>, vector<8x64xf32>
    %c0_74 = arith.constant 0 : index
    %c0_75 = arith.constant 0 : index
    %163 = vector.load %arg14[%c0_74, %c0_75] : memref<8x16xf32, #tpu.memory_space<vmem>>, vector<8x16xf32>
    %164 = arith.truncf %163 : vector<8x16xf32> to vector<8x16xbf16>
    %cst_76 = arith.constant dense<0.000000e+00> : vector<8x64xf32>
    %165 = tpu.matmul %164, %19, %cst_76 {dimension_numbers = #tpu.dot_dimension_numbers<[1], [0], [0], [1], [0, 0, 1, 1], [], []>} : vector<8x16xbf16>, vector<16x64xbf16>, vector<8x64xf32> -> vector<8x64xf32>
    %166 = arith.addf %162, %165 : vector<8x64xf32>
    %c0_77 = arith.constant 0 : index
    %c0_78 = arith.constant 0 : index
    %167 = vector.load %arg15[%c0_77, %c0_78] : memref<8x16xf32, #tpu.memory_space<vmem>>, vector<8x16xf32>
    %168 = vector.extract_strided_slice %166 {offsets = [0, 0], sizes = [8, 16], strides = [1, 1]} : vector<8x64xf32> to vector<8x16xf32>
    %169 = arith.negf %168 : vector<8x16xf32>
    %170 = math.exp %169 : vector<8x16xf32>
    %cst_79 = arith.constant 1.000000e+00 : f32
    %171 = vector.broadcast %cst_79 : f32 to vector<8x16xf32>
    %172 = arith.addf %171, %170 : vector<8x16xf32>
    %173 = arith.divf %171, %172 : vector<8x16xf32>
    %174 = vector.extract_strided_slice %166 {offsets = [0, 16], sizes = [8, 16], strides = [1, 1]} : vector<8x64xf32> to vector<8x16xf32>
    %175 = arith.negf %174 : vector<8x16xf32>
    %176 = math.exp %175 : vector<8x16xf32>
    %cst_80 = arith.constant 1.000000e+00 : f32
    %177 = vector.broadcast %cst_80 : f32 to vector<8x16xf32>
    %178 = arith.addf %177, %176 : vector<8x16xf32>
    %179 = arith.divf %177, %178 : vector<8x16xf32>
    %180 = vector.extract_strided_slice %166 {offsets = [0, 32], sizes = [8, 16], strides = [1, 1]} : vector<8x64xf32> to vector<8x16xf32>
    %181 = math.tanh %180 : vector<8x16xf32>
    %182 = vector.extract_strided_slice %166 {offsets = [0, 48], sizes = [8, 16], strides = [1, 1]} : vector<8x64xf32> to vector<8x16xf32>
    %183 = arith.negf %182 : vector<8x16xf32>
    %184 = math.exp %183 : vector<8x16xf32>
    %cst_81 = arith.constant 1.000000e+00 : f32
    %185 = vector.broadcast %cst_81 : f32 to vector<8x16xf32>
    %186 = arith.addf %185, %184 : vector<8x16xf32>
    %187 = arith.divf %185, %186 : vector<8x16xf32>
    %188 = arith.mulf %179, %167 : vector<8x16xf32>
    %189 = arith.mulf %173, %181 : vector<8x16xf32>
    %190 = arith.addf %188, %189 : vector<8x16xf32>
    %191 = math.tanh %190 : vector<8x16xf32>
    %192 = arith.mulf %187, %191 : vector<8x16xf32>
    %193 = vector.broadcast %160 : vector<8x1xf32> to vector<8x16xf32>
    %194 = arith.mulf %193, %192 : vector<8x16xf32>
    %cst_82 = arith.constant 1.000000e+00 : f32
    %195 = vector.broadcast %cst_82 : f32 to vector<8x1xf32>
    %196 = arith.subf %195, %160 : vector<8x1xf32>
    %c0_83 = arith.constant 0 : index
    %c0_84 = arith.constant 0 : index
    %197 = vector.load %arg14[%c0_83, %c0_84] : memref<8x16xf32, #tpu.memory_space<vmem>>, vector<8x16xf32>
    %198 = vector.broadcast %196 : vector<8x1xf32> to vector<8x16xf32>
    %199 = arith.mulf %198, %197 : vector<8x16xf32>
    %200 = arith.addf %194, %199 : vector<8x16xf32>
    %c0_85 = arith.constant 0 : index
    %c0_86 = arith.constant 0 : index
    %201 = vector.load %arg14[%c0_85, %c0_86] : memref<8x16xf32, #tpu.memory_space<vmem>>, vector<8x16xf32>
    tpu.vector_store %arg14[%c0_85, %c0_86], %200 {strides = array<i32>} : memref<8x16xf32, #tpu.memory_space<vmem>>, vector<8x16xf32>,
    %202 = vector.broadcast %160 : vector<8x1xf32> to vector<8x16xf32>
    %203 = arith.mulf %202, %190 : vector<8x16xf32>
    %cst_87 = arith.constant 1.000000e+00 : f32
    %204 = vector.broadcast %cst_87 : f32 to vector<8x1xf32>
    %205 = arith.subf %204, %160 : vector<8x1xf32>
    %c0_88 = arith.constant 0 : index
    %c0_89 = arith.constant 0 : index
    %206 = vector.load %arg15[%c0_88, %c0_89] : memref<8x16xf32, #tpu.memory_space<vmem>>, vector<8x16xf32>
    %207 = vector.broadcast %205 : vector<8x1xf32> to vector<8x16xf32>
    %208 = arith.mulf %207, %206 : vector<8x16xf32>
    %209 = arith.addf %203, %208 : vector<8x16xf32>
    %c0_90 = arith.constant 0 : index
    %c0_91 = arith.constant 0 : index
    %210 = vector.load %arg15[%c0_90, %c0_91] : memref<8x16xf32, #tpu.memory_space<vmem>>, vector<8x16xf32>
    tpu.vector_store %arg15[%c0_90, %c0_91], %209 {strides = array<i32>} : memref<8x16xf32, #tpu.memory_space<vmem>>, vector<8x16xf32>,
    %211 = vector.broadcast %160 : vector<8x1xf32> to vector<8x16xf32>
    %212 = arith.mulf %192, %211 : vector<8x16xf32>
    %213 = arith.truncf %212 : vector<8x16xf32> to vector<8x16xbf16>
    %c0_92 = arith.constant 0 : index
    %214 = arith.index_cast %155 : i32 to index
    %c0_93 = arith.constant 0 : index
    %215 = vector.load %arg10[%c0_92, %214, %c0_93] : memref<1x64x16xbf16, #tpu.memory_space<vmem>>, vector<1x8x16xbf16>
    %216 = vector.shape_cast %215 : vector<1x8x16xbf16> to vector<8x16xbf16>
    %217 = vector.shape_cast %213 : vector<8x16xbf16> to vector<1x8x16xbf16>
    tpu.vector_store %arg10[%c0_92, %214, %c0_93], %217 {strides = array<i32>} : memref<1x64x16xbf16, #tpu.memory_space<vmem>>, vector<1x8x16xbf16>,
    %c7_i32_94 = arith.constant 7 : i32
    %218 = arith.subi %c7_i32_94, %c1_i32 : i32
    %c8_i32_95 = arith.constant 8 : i32
    %219 = arith.muli %218, %c8_i32_95 : i32
    %220 = tpu.assume_multiple %219, 8 : i32
    %221 = arith.addi %24, %218 : i32
    %222 = vector.broadcast %221 : i32 to vector<8x1xi32>
    %223 = arith.cmpi slt, %222, %21 : vector<8x1xi32>
    %224 = arith.extui %223 : vector<8x1xi1> to vector<8x1xi32>
    %225 = arith.sitofp %224 : vector<8x1xi32> to vector<8x1xf32>
    %226 = arith.index_cast %220 : i32 to index
    %c0_96 = arith.constant 0 : index
    %227 = vector.load %arg13[%226, %c0_96] : memref<64x64xf32, #tpu.memory_space<vmem>>, vector<8x64xf32>
    %c0_97 = arith.constant 0 : index
    %c0_98 = arith.constant 0 : index
    %228 = vector.load %arg16[%c0_97, %c0_98] : memref<8x16xf32, #tpu.memory_space<vmem>>, vector<8x16xf32>
    %229 = arith.truncf %228 : vector<8x16xf32> to vector<8x16xbf16>
    %cst_99 = arith.constant dense<0.000000e+00> : vector<8x64xf32>
    %230 = tpu.matmul %229, %20, %cst_99 {dimension_numbers = #tpu.dot_dimension_numbers<[1], [0], [0], [1], [0, 0, 1, 1], [], []>} : vector<8x16xbf16>, vector<16x64xbf16>, vector<8x64xf32> -> vector<8x64xf32>
    %231 = arith.addf %227, %230 : vector<8x64xf32>
    %c0_100 = arith.constant 0 : index
    %c0_101 = arith.constant 0 : index
    %232 = vector.load %arg17[%c0_100, %c0_101] : memref<8x16xf32, #tpu.memory_space<vmem>>, vector<8x16xf32>
    %233 = vector.extract_strided_slice %231 {offsets = [0, 0], sizes = [8, 16], strides = [1, 1]} : vector<8x64xf32> to vector<8x16xf32>
    %234 = arith.negf %233 : vector<8x16xf32>
    %235 = math.exp %234 : vector<8x16xf32>
    %cst_102 = arith.constant 1.000000e+00 : f32
    %236 = vector.broadcast %cst_102 : f32 to vector<8x16xf32>
    %237 = arith.addf %236, %235 : vector<8x16xf32>
    %238 = arith.divf %236, %237 : vector<8x16xf32>
    %239 = vector.extract_strided_slice %231 {offsets = [0, 16], sizes = [8, 16], strides = [1, 1]} : vector<8x64xf32> to vector<8x16xf32>
    %240 = arith.negf %239 : vector<8x16xf32>
    %241 = math.exp %240 : vector<8x16xf32>
    %cst_103 = arith.constant 1.000000e+00 : f32
    %242 = vector.broadcast %cst_103 : f32 to vector<8x16xf32>
    %243 = arith.addf %242, %241 : vector<8x16xf32>
    %244 = arith.divf %242, %243 : vector<8x16xf32>
    %245 = vector.extract_strided_slice %231 {offsets = [0, 32], sizes = [8, 16], strides = [1, 1]} : vector<8x64xf32> to vector<8x16xf32>
    %246 = math.tanh %245 : vector<8x16xf32>
    %247 = vector.extract_strided_slice %231 {offsets = [0, 48], sizes = [8, 16], strides = [1, 1]} : vector<8x64xf32> to vector<8x16xf32>
    %248 = arith.negf %247 : vector<8x16xf32>
    %249 = math.exp %248 : vector<8x16xf32>
    %cst_104 = arith.constant 1.000000e+00 : f32
    %250 = vector.broadcast %cst_104 : f32 to vector<8x16xf32>
    %251 = arith.addf %250, %249 : vector<8x16xf32>
    %252 = arith.divf %250, %251 : vector<8x16xf32>
    %253 = arith.mulf %244, %232 : vector<8x16xf32>
    %254 = arith.mulf %238, %246 : vector<8x16xf32>
    %255 = arith.addf %253, %254 : vector<8x16xf32>
    %256 = math.tanh %255 : vector<8x16xf32>
    %257 = arith.mulf %252, %256 : vector<8x16xf32>
    %258 = vector.broadcast %225 : vector<8x1xf32> to vector<8x16xf32>
    %259 = arith.mulf %258, %257 : vector<8x16xf32>
    %cst_105 = arith.constant 1.000000e+00 : f32
    %260 = vector.broadcast %cst_105 : f32 to vector<8x1xf32>
    %261 = arith.subf %260, %225 : vector<8x1xf32>
    %c0_106 = arith.constant 0 : index
    %c0_107 = arith.constant 0 : index
    %262 = vector.load %arg16[%c0_106, %c0_107] : memref<8x16xf32, #tpu.memory_space<vmem>>, vector<8x16xf32>
    %263 = vector.broadcast %261 : vector<8x1xf32> to vector<8x16xf32>
    %264 = arith.mulf %263, %262 : vector<8x16xf32>
    %265 = arith.addf %259, %264 : vector<8x16xf32>
    %c0_108 = arith.constant 0 : index
    %c0_109 = arith.constant 0 : index
    %266 = vector.load %arg16[%c0_108, %c0_109] : memref<8x16xf32, #tpu.memory_space<vmem>>, vector<8x16xf32>
    tpu.vector_store %arg16[%c0_108, %c0_109], %265 {strides = array<i32>} : memref<8x16xf32, #tpu.memory_space<vmem>>, vector<8x16xf32>,
    %267 = vector.broadcast %225 : vector<8x1xf32> to vector<8x16xf32>
    %268 = arith.mulf %267, %255 : vector<8x16xf32>
    %cst_110 = arith.constant 1.000000e+00 : f32
    %269 = vector.broadcast %cst_110 : f32 to vector<8x1xf32>
    %270 = arith.subf %269, %225 : vector<8x1xf32>
    %c0_111 = arith.constant 0 : index
    %c0_112 = arith.constant 0 : index
    %271 = vector.load %arg17[%c0_111, %c0_112] : memref<8x16xf32, #tpu.memory_space<vmem>>, vector<8x16xf32>
    %272 = vector.broadcast %270 : vector<8x1xf32> to vector<8x16xf32>
    %273 = arith.mulf %272, %271 : vector<8x16xf32>
    %274 = arith.addf %268, %273 : vector<8x16xf32>
    %c0_113 = arith.constant 0 : index
    %c0_114 = arith.constant 0 : index
    %275 = vector.load %arg17[%c0_113, %c0_114] : memref<8x16xf32, #tpu.memory_space<vmem>>, vector<8x16xf32>
    tpu.vector_store %arg17[%c0_113, %c0_114], %274 {strides = array<i32>} : memref<8x16xf32, #tpu.memory_space<vmem>>, vector<8x16xf32>,
    %276 = vector.broadcast %225 : vector<8x1xf32> to vector<8x16xf32>
    %277 = arith.mulf %257, %276 : vector<8x16xf32>
    %278 = arith.truncf %277 : vector<8x16xf32> to vector<8x16xbf16>
    %c0_115 = arith.constant 0 : index
    %279 = arith.index_cast %220 : i32 to index
    %c0_116 = arith.constant 0 : index
    %280 = vector.load %arg11[%c0_115, %279, %c0_116] : memref<1x64x16xbf16, #tpu.memory_space<vmem>>, vector<1x8x16xbf16>
    %281 = vector.shape_cast %280 : vector<1x8x16xbf16> to vector<8x16xbf16>
    %282 = vector.shape_cast %278 : vector<8x16xbf16> to vector<1x8x16xbf16>
    tpu.vector_store %arg11[%c0_115, %279, %c0_116], %282 {strides = array<i32>} : memref<1x64x16xbf16, #tpu.memory_space<vmem>>, vector<1x8x16xbf16>,
    %c2_i32 = arith.constant 2 : i32
    %c8_i32_117 = arith.constant 8 : i32
    %283 = arith.muli %c2_i32, %c8_i32_117 : i32
    %284 = tpu.assume_multiple %283, 8 : i32
    %285 = arith.addi %22, %c2_i32 : i32
    %286 = vector.broadcast %285 : i32 to vector<8x1xi32>
    %287 = arith.cmpi slt, %286, %21 : vector<8x1xi32>
    %288 = arith.extui %287 : vector<8x1xi1> to vector<8x1xi32>
    %289 = arith.sitofp %288 : vector<8x1xi32> to vector<8x1xf32>
    %290 = arith.index_cast %284 : i32 to index
    %c0_118 = arith.constant 0 : index
    %291 = vector.load %arg12[%290, %c0_118] : memref<64x64xf32, #tpu.memory_space<vmem>>, vector<8x64xf32>
    %c0_119 = arith.constant 0 : index
    %c0_120 = arith.constant 0 : index
    %292 = vector.load %arg14[%c0_119, %c0_120] : memref<8x16xf32, #tpu.memory_space<vmem>>, vector<8x16xf32>
    %293 = arith.truncf %292 : vector<8x16xf32> to vector<8x16xbf16>
    %cst_121 = arith.constant dense<0.000000e+00> : vector<8x64xf32>
    %294 = tpu.matmul %293, %19, %cst_121 {dimension_numbers = #tpu.dot_dimension_numbers<[1], [0], [0], [1], [0, 0, 1, 1], [], []>} : vector<8x16xbf16>, vector<16x64xbf16>, vector<8x64xf32> -> vector<8x64xf32>
    %295 = arith.addf %291, %294 : vector<8x64xf32>
    %c0_122 = arith.constant 0 : index
    %c0_123 = arith.constant 0 : index
    %296 = vector.load %arg15[%c0_122, %c0_123] : memref<8x16xf32, #tpu.memory_space<vmem>>, vector<8x16xf32>
    %297 = vector.extract_strided_slice %295 {offsets = [0, 0], sizes = [8, 16], strides = [1, 1]} : vector<8x64xf32> to vector<8x16xf32>
    %298 = arith.negf %297 : vector<8x16xf32>
    %299 = math.exp %298 : vector<8x16xf32>
    %cst_124 = arith.constant 1.000000e+00 : f32
    %300 = vector.broadcast %cst_124 : f32 to vector<8x16xf32>
    %301 = arith.addf %300, %299 : vector<8x16xf32>
    %302 = arith.divf %300, %301 : vector<8x16xf32>
    %303 = vector.extract_strided_slice %295 {offsets = [0, 16], sizes = [8, 16], strides = [1, 1]} : vector<8x64xf32> to vector<8x16xf32>
    %304 = arith.negf %303 : vector<8x16xf32>
    %305 = math.exp %304 : vector<8x16xf32>
    %cst_125 = arith.constant 1.000000e+00 : f32
    %306 = vector.broadcast %cst_125 : f32 to vector<8x16xf32>
    %307 = arith.addf %306, %305 : vector<8x16xf32>
    %308 = arith.divf %306, %307 : vector<8x16xf32>
    %309 = vector.extract_strided_slice %295 {offsets = [0, 32], sizes = [8, 16], strides = [1, 1]} : vector<8x64xf32> to vector<8x16xf32>
    %310 = math.tanh %309 : vector<8x16xf32>
    %311 = vector.extract_strided_slice %295 {offsets = [0, 48], sizes = [8, 16], strides = [1, 1]} : vector<8x64xf32> to vector<8x16xf32>
    %312 = arith.negf %311 : vector<8x16xf32>
    %313 = math.exp %312 : vector<8x16xf32>
    %cst_126 = arith.constant 1.000000e+00 : f32
    %314 = vector.broadcast %cst_126 : f32 to vector<8x16xf32>
    %315 = arith.addf %314, %313 : vector<8x16xf32>
    %316 = arith.divf %314, %315 : vector<8x16xf32>
    %317 = arith.mulf %308, %296 : vector<8x16xf32>
    %318 = arith.mulf %302, %310 : vector<8x16xf32>
    %319 = arith.addf %317, %318 : vector<8x16xf32>
    %320 = math.tanh %319 : vector<8x16xf32>
    %321 = arith.mulf %316, %320 : vector<8x16xf32>
    %322 = vector.broadcast %289 : vector<8x1xf32> to vector<8x16xf32>
    %323 = arith.mulf %322, %321 : vector<8x16xf32>
    %cst_127 = arith.constant 1.000000e+00 : f32
    %324 = vector.broadcast %cst_127 : f32 to vector<8x1xf32>
    %325 = arith.subf %324, %289 : vector<8x1xf32>
    %c0_128 = arith.constant 0 : index
    %c0_129 = arith.constant 0 : index
    %326 = vector.load %arg14[%c0_128, %c0_129] : memref<8x16xf32, #tpu.memory_space<vmem>>, vector<8x16xf32>
    %327 = vector.broadcast %325 : vector<8x1xf32> to vector<8x16xf32>
    %328 = arith.mulf %327, %326 : vector<8x16xf32>
    %329 = arith.addf %323, %328 : vector<8x16xf32>
    %c0_130 = arith.constant 0 : index
    %c0_131 = arith.constant 0 : index
    %330 = vector.load %arg14[%c0_130, %c0_131] : memref<8x16xf32, #tpu.memory_space<vmem>>, vector<8x16xf32>
    tpu.vector_store %arg14[%c0_130, %c0_131], %329 {strides = array<i32>} : memref<8x16xf32, #tpu.memory_space<vmem>>, vector<8x16xf32>,
    %331 = vector.broadcast %289 : vector<8x1xf32> to vector<8x16xf32>
    %332 = arith.mulf %331, %319 : vector<8x16xf32>
    %cst_132 = arith.constant 1.000000e+00 : f32
    %333 = vector.broadcast %cst_132 : f32 to vector<8x1xf32>
    %334 = arith.subf %333, %289 : vector<8x1xf32>
    %c0_133 = arith.constant 0 : index
    %c0_134 = arith.constant 0 : index
    %335 = vector.load %arg15[%c0_133, %c0_134] : memref<8x16xf32, #tpu.memory_space<vmem>>, vector<8x16xf32>
    %336 = vector.broadcast %334 : vector<8x1xf32> to vector<8x16xf32>
    %337 = arith.mulf %336, %335 : vector<8x16xf32>
    %338 = arith.addf %332, %337 : vector<8x16xf32>
    %c0_135 = arith.constant 0 : index
    %c0_136 = arith.constant 0 : index
    %339 = vector.load %arg15[%c0_135, %c0_136] : memref<8x16xf32, #tpu.memory_space<vmem>>, vector<8x16xf32>
    tpu.vector_store %arg15[%c0_135, %c0_136], %338 {strides = array<i32>} : memref<8x16xf32, #tpu.memory_space<vmem>>, vector<8x16xf32>,
    %340 = vector.broadcast %289 : vector<8x1xf32> to vector<8x16xf32>
    %341 = arith.mulf %321, %340 : vector<8x16xf32>
    %342 = arith.truncf %341 : vector<8x16xf32> to vector<8x16xbf16>
    %c0_137 = arith.constant 0 : index
    %343 = arith.index_cast %284 : i32 to index
    %c0_138 = arith.constant 0 : index
    %344 = vector.load %arg10[%c0_137, %343, %c0_138] : memref<1x64x16xbf16, #tpu.memory_space<vmem>>, vector<1x8x16xbf16>
    %345 = vector.shape_cast %344 : vector<1x8x16xbf16> to vector<8x16xbf16>
    %346 = vector.shape_cast %342 : vector<8x16xbf16> to vector<1x8x16xbf16>
    tpu.vector_store %arg10[%c0_137, %343, %c0_138], %346 {strides = array<i32>} : memref<1x64x16xbf16, #tpu.memory_space<vmem>>, vector<1x8x16xbf16>,
    %c7_i32_139 = arith.constant 7 : i32
    %347 = arith.subi %c7_i32_139, %c2_i32 : i32
    %c8_i32_140 = arith.constant 8 : i32
    %348 = arith.muli %347, %c8_i32_140 : i32
    %349 = tpu.assume_multiple %348, 8 : i32
    %350 = arith.addi %24, %347 : i32
    %351 = vector.broadcast %350 : i32 to vector<8x1xi32>
    %352 = arith.cmpi slt, %351, %21 : vector<8x1xi32>
    %353 = arith.extui %352 : vector<8x1xi1> to vector<8x1xi32>
    %354 = arith.sitofp %353 : vector<8x1xi32> to vector<8x1xf32>
    %355 = arith.index_cast %349 : i32 to index
    %c0_141 = arith.constant 0 : index
    %356 = vector.load %arg13[%355, %c0_141] : memref<64x64xf32, #tpu.memory_space<vmem>>, vector<8x64xf32>
    %c0_142 = arith.constant 0 : index
    %c0_143 = arith.constant 0 : index
    %357 = vector.load %arg16[%c0_142, %c0_143] : memref<8x16xf32, #tpu.memory_space<vmem>>, vector<8x16xf32>
    %358 = arith.truncf %357 : vector<8x16xf32> to vector<8x16xbf16>
    %cst_144 = arith.constant dense<0.000000e+00> : vector<8x64xf32>
    %359 = tpu.matmul %358, %20, %cst_144 {dimension_numbers = #tpu.dot_dimension_numbers<[1], [0], [0], [1], [0, 0, 1, 1], [], []>} : vector<8x16xbf16>, vector<16x64xbf16>, vector<8x64xf32> -> vector<8x64xf32>
    %360 = arith.addf %356, %359 : vector<8x64xf32>
    %c0_145 = arith.constant 0 : index
    %c0_146 = arith.constant 0 : index
    %361 = vector.load %arg17[%c0_145, %c0_146] : memref<8x16xf32, #tpu.memory_space<vmem>>, vector<8x16xf32>
    %362 = vector.extract_strided_slice %360 {offsets = [0, 0], sizes = [8, 16], strides = [1, 1]} : vector<8x64xf32> to vector<8x16xf32>
    %363 = arith.negf %362 : vector<8x16xf32>
    %364 = math.exp %363 : vector<8x16xf32>
    %cst_147 = arith.constant 1.000000e+00 : f32
    %365 = vector.broadcast %cst_147 : f32 to vector<8x16xf32>
    %366 = arith.addf %365, %364 : vector<8x16xf32>
    %367 = arith.divf %365, %366 : vector<8x16xf32>
    %368 = vector.extract_strided_slice %360 {offsets = [0, 16], sizes = [8, 16], strides = [1, 1]} : vector<8x64xf32> to vector<8x16xf32>
    %369 = arith.negf %368 : vector<8x16xf32>
    %370 = math.exp %369 : vector<8x16xf32>
    %cst_148 = arith.constant 1.000000e+00 : f32
    %371 = vector.broadcast %cst_148 : f32 to vector<8x16xf32>
    %372 = arith.addf %371, %370 : vector<8x16xf32>
    %373 = arith.divf %371, %372 : vector<8x16xf32>
    %374 = vector.extract_strided_slice %360 {offsets = [0, 32], sizes = [8, 16], strides = [1, 1]} : vector<8x64xf32> to vector<8x16xf32>
    %375 = math.tanh %374 : vector<8x16xf32>
    %376 = vector.extract_strided_slice %360 {offsets = [0, 48], sizes = [8, 16], strides = [1, 1]} : vector<8x64xf32> to vector<8x16xf32>
    %377 = arith.negf %376 : vector<8x16xf32>
    %378 = math.exp %377 : vector<8x16xf32>
    %cst_149 = arith.constant 1.000000e+00 : f32
    %379 = vector.broadcast %cst_149 : f32 to vector<8x16xf32>
    %380 = arith.addf %379, %378 : vector<8x16xf32>
    %381 = arith.divf %379, %380 : vector<8x16xf32>
    %382 = arith.mulf %373, %361 : vector<8x16xf32>
    %383 = arith.mulf %367, %375 : vector<8x16xf32>
    %384 = arith.addf %382, %383 : vector<8x16xf32>
    %385 = math.tanh %384 : vector<8x16xf32>
    %386 = arith.mulf %381, %385 : vector<8x16xf32>
    %387 = vector.broadcast %354 : vector<8x1xf32> to vector<8x16xf32>
    %388 = arith.mulf %387, %386 : vector<8x16xf32>
    %cst_150 = arith.constant 1.000000e+00 : f32
    %389 = vector.broadcast %cst_150 : f32 to vector<8x1xf32>
    %390 = arith.subf %389, %354 : vector<8x1xf32>
    %c0_151 = arith.constant 0 : index
    %c0_152 = arith.constant 0 : index
    %391 = vector.load %arg16[%c0_151, %c0_152] : memref<8x16xf32, #tpu.memory_space<vmem>>, vector<8x16xf32>
    %392 = vector.broadcast %390 : vector<8x1xf32> to vector<8x16xf32>
    %393 = arith.mulf %392, %391 : vector<8x16xf32>
    %394 = arith.addf %388, %393 : vector<8x16xf32>
    %c0_153 = arith.constant 0 : index
    %c0_154 = arith.constant 0 : index
    %395 = vector.load %arg16[%c0_153, %c0_154] : memref<8x16xf32, #tpu.memory_space<vmem>>, vector<8x16xf32>
    tpu.vector_store %arg16[%c0_153, %c0_154], %394 {strides = array<i32>} : memref<8x16xf32, #tpu.memory_space<vmem>>, vector<8x16xf32>,
    %396 = vector.broadcast %354 : vector<8x1xf32> to vector<8x16xf32>
    %397 = arith.mulf %396, %384 : vector<8x16xf32>
    %cst_155 = arith.constant 1.000000e+00 : f32
    %398 = vector.broadcast %cst_155 : f32 to vector<8x1xf32>
    %399 = arith.subf %398, %354 : vector<8x1xf32>
    %c0_156 = arith.constant 0 : index
    %c0_157 = arith.constant 0 : index
    %400 = vector.load %arg17[%c0_156, %c0_157] : memref<8x16xf32, #tpu.memory_space<vmem>>, vector<8x16xf32>
    %401 = vector.broadcast %399 : vector<8x1xf32> to vector<8x16xf32>
    %402 = arith.mulf %401, %400 : vector<8x16xf32>
    %403 = arith.addf %397, %402 : vector<8x16xf32>
    %c0_158 = arith.constant 0 : index
    %c0_159 = arith.constant 0 : index
    %404 = vector.load %arg17[%c0_158, %c0_159] : memref<8x16xf32, #tpu.memory_space<vmem>>, vector<8x16xf32>
    tpu.vector_store %arg17[%c0_158, %c0_159], %403 {strides = array<i32>} : memref<8x16xf32, #tpu.memory_space<vmem>>, vector<8x16xf32>,
    %405 = vector.broadcast %354 : vector<8x1xf32> to vector<8x16xf32>
    %406 = arith.mulf %386, %405 : vector<8x16xf32>
    %407 = arith.truncf %406 : vector<8x16xf32> to vector<8x16xbf16>
    %c0_160 = arith.constant 0 : index
    %408 = arith.index_cast %349 : i32 to index
    %c0_161 = arith.constant 0 : index
    %409 = vector.load %arg11[%c0_160, %408, %c0_161] : memref<1x64x16xbf16, #tpu.memory_space<vmem>>, vector<1x8x16xbf16>
    %410 = vector.shape_cast %409 : vector<1x8x16xbf16> to vector<8x16xbf16>
    %411 = vector.shape_cast %407 : vector<8x16xbf16> to vector<1x8x16xbf16>
    tpu.vector_store %arg11[%c0_160, %408, %c0_161], %411 {strides = array<i32>} : memref<1x64x16xbf16, #tpu.memory_space<vmem>>, vector<1x8x16xbf16>,
    %c3_i32 = arith.constant 3 : i32
    %c8_i32_162 = arith.constant 8 : i32
    %412 = arith.muli %c3_i32, %c8_i32_162 : i32
    %413 = tpu.assume_multiple %412, 8 : i32
    %414 = arith.addi %22, %c3_i32 : i32
    %415 = vector.broadcast %414 : i32 to vector<8x1xi32>
    %416 = arith.cmpi slt, %415, %21 : vector<8x1xi32>
    %417 = arith.extui %416 : vector<8x1xi1> to vector<8x1xi32>
    %418 = arith.sitofp %417 : vector<8x1xi32> to vector<8x1xf32>
    %419 = arith.index_cast %413 : i32 to index
    %c0_163 = arith.constant 0 : index
    %420 = vector.load %arg12[%419, %c0_163] : memref<64x64xf32, #tpu.memory_space<vmem>>, vector<8x64xf32>
    %c0_164 = arith.constant 0 : index
    %c0_165 = arith.constant 0 : index
    %421 = vector.load %arg14[%c0_164, %c0_165] : memref<8x16xf32, #tpu.memory_space<vmem>>, vector<8x16xf32>
    %422 = arith.truncf %421 : vector<8x16xf32> to vector<8x16xbf16>
    %cst_166 = arith.constant dense<0.000000e+00> : vector<8x64xf32>
    %423 = tpu.matmul %422, %19, %cst_166 {dimension_numbers = #tpu.dot_dimension_numbers<[1], [0], [0], [1], [0, 0, 1, 1], [], []>} : vector<8x16xbf16>, vector<16x64xbf16>, vector<8x64xf32> -> vector<8x64xf32>
    %424 = arith.addf %420, %423 : vector<8x64xf32>
    %c0_167 = arith.constant 0 : index
    %c0_168 = arith.constant 0 : index
    %425 = vector.load %arg15[%c0_167, %c0_168] : memref<8x16xf32, #tpu.memory_space<vmem>>, vector<8x16xf32>
    %426 = vector.extract_strided_slice %424 {offsets = [0, 0], sizes = [8, 16], strides = [1, 1]} : vector<8x64xf32> to vector<8x16xf32>
    %427 = arith.negf %426 : vector<8x16xf32>
    %428 = math.exp %427 : vector<8x16xf32>
    %cst_169 = arith.constant 1.000000e+00 : f32
    %429 = vector.broadcast %cst_169 : f32 to vector<8x16xf32>
    %430 = arith.addf %429, %428 : vector<8x16xf32>
    %431 = arith.divf %429, %430 : vector<8x16xf32>
    %432 = vector.extract_strided_slice %424 {offsets = [0, 16], sizes = [8, 16], strides = [1, 1]} : vector<8x64xf32> to vector<8x16xf32>
    %433 = arith.negf %432 : vector<8x16xf32>
    %434 = math.exp %433 : vector<8x16xf32>
    %cst_170 = arith.constant 1.000000e+00 : f32
    %435 = vector.broadcast %cst_170 : f32 to vector<8x16xf32>
    %436 = arith.addf %435, %434 : vector<8x16xf32>
    %437 = arith.divf %435, %436 : vector<8x16xf32>
    %438 = vector.extract_strided_slice %424 {offsets = [0, 32], sizes = [8, 16], strides = [1, 1]} : vector<8x64xf32> to vector<8x16xf32>
    %439 = math.tanh %438 : vector<8x16xf32>
    %440 = vector.extract_strided_slice %424 {offsets = [0, 48], sizes = [8, 16], strides = [1, 1]} : vector<8x64xf32> to vector<8x16xf32>
    %441 = arith.negf %440 : vector<8x16xf32>
    %442 = math.exp %441 : vector<8x16xf32>
    %cst_171 = arith.constant 1.000000e+00 : f32
    %443 = vector.broadcast %cst_171 : f32 to vector<8x16xf32>
    %444 = arith.addf %443, %442 : vector<8x16xf32>
    %445 = arith.divf %443, %444 : vector<8x16xf32>
    %446 = arith.mulf %437, %425 : vector<8x16xf32>
    %447 = arith.mulf %431, %439 : vector<8x16xf32>
    %448 = arith.addf %446, %447 : vector<8x16xf32>
    %449 = math.tanh %448 : vector<8x16xf32>
    %450 = arith.mulf %445, %449 : vector<8x16xf32>
    %451 = vector.broadcast %418 : vector<8x1xf32> to vector<8x16xf32>
    %452 = arith.mulf %451, %450 : vector<8x16xf32>
    %cst_172 = arith.constant 1.000000e+00 : f32
    %453 = vector.broadcast %cst_172 : f32 to vector<8x1xf32>
    %454 = arith.subf %453, %418 : vector<8x1xf32>
    %c0_173 = arith.constant 0 : index
    %c0_174 = arith.constant 0 : index
    %455 = vector.load %arg14[%c0_173, %c0_174] : memref<8x16xf32, #tpu.memory_space<vmem>>, vector<8x16xf32>
    %456 = vector.broadcast %454 : vector<8x1xf32> to vector<8x16xf32>
    %457 = arith.mulf %456, %455 : vector<8x16xf32>
    %458 = arith.addf %452, %457 : vector<8x16xf32>
    %c0_175 = arith.constant 0 : index
    %c0_176 = arith.constant 0 : index
    %459 = vector.load %arg14[%c0_175, %c0_176] : memref<8x16xf32, #tpu.memory_space<vmem>>, vector<8x16xf32>
    tpu.vector_store %arg14[%c0_175, %c0_176], %458 {strides = array<i32>} : memref<8x16xf32, #tpu.memory_space<vmem>>, vector<8x16xf32>,
    %460 = vector.broadcast %418 : vector<8x1xf32> to vector<8x16xf32>
    %461 = arith.mulf %460, %448 : vector<8x16xf32>
    %cst_177 = arith.constant 1.000000e+00 : f32
    %462 = vector.broadcast %cst_177 : f32 to vector<8x1xf32>
    %463 = arith.subf %462, %418 : vector<8x1xf32>
    %c0_178 = arith.constant 0 : index
    %c0_179 = arith.constant 0 : index
    %464 = vector.load %arg15[%c0_178, %c0_179] : memref<8x16xf32, #tpu.memory_space<vmem>>, vector<8x16xf32>
    %465 = vector.broadcast %463 : vector<8x1xf32> to vector<8x16xf32>
    %466 = arith.mulf %465, %464 : vector<8x16xf32>
    %467 = arith.addf %461, %466 : vector<8x16xf32>
    %c0_180 = arith.constant 0 : index
    %c0_181 = arith.constant 0 : index
    %468 = vector.load %arg15[%c0_180, %c0_181] : memref<8x16xf32, #tpu.memory_space<vmem>>, vector<8x16xf32>
    tpu.vector_store %arg15[%c0_180, %c0_181], %467 {strides = array<i32>} : memref<8x16xf32, #tpu.memory_space<vmem>>, vector<8x16xf32>,
    %469 = vector.broadcast %418 : vector<8x1xf32> to vector<8x16xf32>
    %470 = arith.mulf %450, %469 : vector<8x16xf32>
    %471 = arith.truncf %470 : vector<8x16xf32> to vector<8x16xbf16>
    %c0_182 = arith.constant 0 : index
    %472 = arith.index_cast %413 : i32 to index
    %c0_183 = arith.constant 0 : index
    %473 = vector.load %arg10[%c0_182, %472, %c0_183] : memref<1x64x16xbf16, #tpu.memory_space<vmem>>, vector<1x8x16xbf16>
    %474 = vector.shape_cast %473 : vector<1x8x16xbf16> to vector<8x16xbf16>
    %475 = vector.shape_cast %471 : vector<8x16xbf16> to vector<1x8x16xbf16>
    tpu.vector_store %arg10[%c0_182, %472, %c0_183], %475 {strides = array<i32>} : memref<1x64x16xbf16, #tpu.memory_space<vmem>>, vector<1x8x16xbf16>,
    %c7_i32_184 = arith.constant 7 : i32
    %476 = arith.subi %c7_i32_184, %c3_i32 : i32
    %c8_i32_185 = arith.constant 8 : i32
    %477 = arith.muli %476, %c8_i32_185 : i32
    %478 = tpu.assume_multiple %477, 8 : i32
    %479 = arith.addi %24, %476 : i32
    %480 = vector.broadcast %479 : i32 to vector<8x1xi32>
    %481 = arith.cmpi slt, %480, %21 : vector<8x1xi32>
    %482 = arith.extui %481 : vector<8x1xi1> to vector<8x1xi32>
    %483 = arith.sitofp %482 : vector<8x1xi32> to vector<8x1xf32>
    %484 = arith.index_cast %478 : i32 to index
    %c0_186 = arith.constant 0 : index
    %485 = vector.load %arg13[%484, %c0_186] : memref<64x64xf32, #tpu.memory_space<vmem>>, vector<8x64xf32>
    %c0_187 = arith.constant 0 : index
    %c0_188 = arith.constant 0 : index
    %486 = vector.load %arg16[%c0_187, %c0_188] : memref<8x16xf32, #tpu.memory_space<vmem>>, vector<8x16xf32>
    %487 = arith.truncf %486 : vector<8x16xf32> to vector<8x16xbf16>
    %cst_189 = arith.constant dense<0.000000e+00> : vector<8x64xf32>
    %488 = tpu.matmul %487, %20, %cst_189 {dimension_numbers = #tpu.dot_dimension_numbers<[1], [0], [0], [1], [0, 0, 1, 1], [], []>} : vector<8x16xbf16>, vector<16x64xbf16>, vector<8x64xf32> -> vector<8x64xf32>
    %489 = arith.addf %485, %488 : vector<8x64xf32>
    %c0_190 = arith.constant 0 : index
    %c0_191 = arith.constant 0 : index
    %490 = vector.load %arg17[%c0_190, %c0_191] : memref<8x16xf32, #tpu.memory_space<vmem>>, vector<8x16xf32>
    %491 = vector.extract_strided_slice %489 {offsets = [0, 0], sizes = [8, 16], strides = [1, 1]} : vector<8x64xf32> to vector<8x16xf32>
    %492 = arith.negf %491 : vector<8x16xf32>
    %493 = math.exp %492 : vector<8x16xf32>
    %cst_192 = arith.constant 1.000000e+00 : f32
    %494 = vector.broadcast %cst_192 : f32 to vector<8x16xf32>
    %495 = arith.addf %494, %493 : vector<8x16xf32>
    %496 = arith.divf %494, %495 : vector<8x16xf32>
    %497 = vector.extract_strided_slice %489 {offsets = [0, 16], sizes = [8, 16], strides = [1, 1]} : vector<8x64xf32> to vector<8x16xf32>
    %498 = arith.negf %497 : vector<8x16xf32>
    %499 = math.exp %498 : vector<8x16xf32>
    %cst_193 = arith.constant 1.000000e+00 : f32
    %500 = vector.broadcast %cst_193 : f32 to vector<8x16xf32>
    %501 = arith.addf %500, %499 : vector<8x16xf32>
    %502 = arith.divf %500, %501 : vector<8x16xf32>
    %503 = vector.extract_strided_slice %489 {offsets = [0, 32], sizes = [8, 16], strides = [1, 1]} : vector<8x64xf32> to vector<8x16xf32>
    %504 = math.tanh %503 : vector<8x16xf32>
    %505 = vector.extract_strided_slice %489 {offsets = [0, 48], sizes = [8, 16], strides = [1, 1]} : vector<8x64xf32> to vector<8x16xf32>
    %506 = arith.negf %505 : vector<8x16xf32>
    %507 = math.exp %506 : vector<8x16xf32>
    %cst_194 = arith.constant 1.000000e+00 : f32
    %508 = vector.broadcast %cst_194 : f32 to vector<8x16xf32>
    %509 = arith.addf %508, %507 : vector<8x16xf32>
    %510 = arith.divf %508, %509 : vector<8x16xf32>
    %511 = arith.mulf %502, %490 : vector<8x16xf32>
    %512 = arith.mulf %496, %504 : vector<8x16xf32>
    %513 = arith.addf %511, %512 : vector<8x16xf32>
    %514 = math.tanh %513 : vector<8x16xf32>
    %515 = arith.mulf %510, %514 : vector<8x16xf32>
    %516 = vector.broadcast %483 : vector<8x1xf32> to vector<8x16xf32>
    %517 = arith.mulf %516, %515 : vector<8x16xf32>
    %cst_195 = arith.constant 1.000000e+00 : f32
    %518 = vector.broadcast %cst_195 : f32 to vector<8x1xf32>
    %519 = arith.subf %518, %483 : vector<8x1xf32>
    %c0_196 = arith.constant 0 : index
    %c0_197 = arith.constant 0 : index
    %520 = vector.load %arg16[%c0_196, %c0_197] : memref<8x16xf32, #tpu.memory_space<vmem>>, vector<8x16xf32>
    %521 = vector.broadcast %519 : vector<8x1xf32> to vector<8x16xf32>
    %522 = arith.mulf %521, %520 : vector<8x16xf32>
    %523 = arith.addf %517, %522 : vector<8x16xf32>
    %c0_198 = arith.constant 0 : index
    %c0_199 = arith.constant 0 : index
    %524 = vector.load %arg16[%c0_198, %c0_199] : memref<8x16xf32, #tpu.memory_space<vmem>>, vector<8x16xf32>
    tpu.vector_store %arg16[%c0_198, %c0_199], %523 {strides = array<i32>} : memref<8x16xf32, #tpu.memory_space<vmem>>, vector<8x16xf32>,
    %525 = vector.broadcast %483 : vector<8x1xf32> to vector<8x16xf32>
    %526 = arith.mulf %525, %513 : vector<8x16xf32>
    %cst_200 = arith.constant 1.000000e+00 : f32
    %527 = vector.broadcast %cst_200 : f32 to vector<8x1xf32>
    %528 = arith.subf %527, %483 : vector<8x1xf32>
    %c0_201 = arith.constant 0 : index
    %c0_202 = arith.constant 0 : index
    %529 = vector.load %arg17[%c0_201, %c0_202] : memref<8x16xf32, #tpu.memory_space<vmem>>, vector<8x16xf32>
    %530 = vector.broadcast %528 : vector<8x1xf32> to vector<8x16xf32>
    %531 = arith.mulf %530, %529 : vector<8x16xf32>
    %532 = arith.addf %526, %531 : vector<8x16xf32>
    %c0_203 = arith.constant 0 : index
    %c0_204 = arith.constant 0 : index
    %533 = vector.load %arg17[%c0_203, %c0_204] : memref<8x16xf32, #tpu.memory_space<vmem>>, vector<8x16xf32>
    tpu.vector_store %arg17[%c0_203, %c0_204], %532 {strides = array<i32>} : memref<8x16xf32, #tpu.memory_space<vmem>>, vector<8x16xf32>,
    %534 = vector.broadcast %483 : vector<8x1xf32> to vector<8x16xf32>
    %535 = arith.mulf %515, %534 : vector<8x16xf32>
    %536 = arith.truncf %535 : vector<8x16xf32> to vector<8x16xbf16>
    %c0_205 = arith.constant 0 : index
    %537 = arith.index_cast %478 : i32 to index
    %c0_206 = arith.constant 0 : index
    %538 = vector.load %arg11[%c0_205, %537, %c0_206] : memref<1x64x16xbf16, #tpu.memory_space<vmem>>, vector<1x8x16xbf16>
    %539 = vector.shape_cast %538 : vector<1x8x16xbf16> to vector<8x16xbf16>
    %540 = vector.shape_cast %536 : vector<8x16xbf16> to vector<1x8x16xbf16>
    tpu.vector_store %arg11[%c0_205, %537, %c0_206], %540 {strides = array<i32>} : memref<1x64x16xbf16, #tpu.memory_space<vmem>>, vector<1x8x16xbf16>,
    %c4_i32 = arith.constant 4 : i32
    %c8_i32_207 = arith.constant 8 : i32
    %541 = arith.muli %c4_i32, %c8_i32_207 : i32
    %542 = tpu.assume_multiple %541, 8 : i32
    %543 = arith.addi %22, %c4_i32 : i32
    %544 = vector.broadcast %543 : i32 to vector<8x1xi32>
    %545 = arith.cmpi slt, %544, %21 : vector<8x1xi32>
    %546 = arith.extui %545 : vector<8x1xi1> to vector<8x1xi32>
    %547 = arith.sitofp %546 : vector<8x1xi32> to vector<8x1xf32>
    %548 = arith.index_cast %542 : i32 to index
    %c0_208 = arith.constant 0 : index
    %549 = vector.load %arg12[%548, %c0_208] : memref<64x64xf32, #tpu.memory_space<vmem>>, vector<8x64xf32>
    %c0_209 = arith.constant 0 : index
    %c0_210 = arith.constant 0 : index
    %550 = vector.load %arg14[%c0_209, %c0_210] : memref<8x16xf32, #tpu.memory_space<vmem>>, vector<8x16xf32>
    %551 = arith.truncf %550 : vector<8x16xf32> to vector<8x16xbf16>
    %cst_211 = arith.constant dense<0.000000e+00> : vector<8x64xf32>
    %552 = tpu.matmul %551, %19, %cst_211 {dimension_numbers = #tpu.dot_dimension_numbers<[1], [0], [0], [1], [0, 0, 1, 1], [], []>} : vector<8x16xbf16>, vector<16x64xbf16>, vector<8x64xf32> -> vector<8x64xf32>
    %553 = arith.addf %549, %552 : vector<8x64xf32>
    %c0_212 = arith.constant 0 : index
    %c0_213 = arith.constant 0 : index
    %554 = vector.load %arg15[%c0_212, %c0_213] : memref<8x16xf32, #tpu.memory_space<vmem>>, vector<8x16xf32>
    %555 = vector.extract_strided_slice %553 {offsets = [0, 0], sizes = [8, 16], strides = [1, 1]} : vector<8x64xf32> to vector<8x16xf32>
    %556 = arith.negf %555 : vector<8x16xf32>
    %557 = math.exp %556 : vector<8x16xf32>
    %cst_214 = arith.constant 1.000000e+00 : f32
    %558 = vector.broadcast %cst_214 : f32 to vector<8x16xf32>
    %559 = arith.addf %558, %557 : vector<8x16xf32>
    %560 = arith.divf %558, %559 : vector<8x16xf32>
    %561 = vector.extract_strided_slice %553 {offsets = [0, 16], sizes = [8, 16], strides = [1, 1]} : vector<8x64xf32> to vector<8x16xf32>
    %562 = arith.negf %561 : vector<8x16xf32>
    %563 = math.exp %562 : vector<8x16xf32>
    %cst_215 = arith.constant 1.000000e+00 : f32
    %564 = vector.broadcast %cst_215 : f32 to vector<8x16xf32>
    %565 = arith.addf %564, %563 : vector<8x16xf32>
    %566 = arith.divf %564, %565 : vector<8x16xf32>
    %567 = vector.extract_strided_slice %553 {offsets = [0, 32], sizes = [8, 16], strides = [1, 1]} : vector<8x64xf32> to vector<8x16xf32>
    %568 = math.tanh %567 : vector<8x16xf32>
    %569 = vector.extract_strided_slice %553 {offsets = [0, 48], sizes = [8, 16], strides = [1, 1]} : vector<8x64xf32> to vector<8x16xf32>
    %570 = arith.negf %569 : vector<8x16xf32>
    %571 = math.exp %570 : vector<8x16xf32>
    %cst_216 = arith.constant 1.000000e+00 : f32
    %572 = vector.broadcast %cst_216 : f32 to vector<8x16xf32>
    %573 = arith.addf %572, %571 : vector<8x16xf32>
    %574 = arith.divf %572, %573 : vector<8x16xf32>
    %575 = arith.mulf %566, %554 : vector<8x16xf32>
    %576 = arith.mulf %560, %568 : vector<8x16xf32>
    %577 = arith.addf %575, %576 : vector<8x16xf32>
    %578 = math.tanh %577 : vector<8x16xf32>
    %579 = arith.mulf %574, %578 : vector<8x16xf32>
    %580 = vector.broadcast %547 : vector<8x1xf32> to vector<8x16xf32>
    %581 = arith.mulf %580, %579 : vector<8x16xf32>
    %cst_217 = arith.constant 1.000000e+00 : f32
    %582 = vector.broadcast %cst_217 : f32 to vector<8x1xf32>
    %583 = arith.subf %582, %547 : vector<8x1xf32>
    %c0_218 = arith.constant 0 : index
    %c0_219 = arith.constant 0 : index
    %584 = vector.load %arg14[%c0_218, %c0_219] : memref<8x16xf32, #tpu.memory_space<vmem>>, vector<8x16xf32>
    %585 = vector.broadcast %583 : vector<8x1xf32> to vector<8x16xf32>
    %586 = arith.mulf %585, %584 : vector<8x16xf32>
    %587 = arith.addf %581, %586 : vector<8x16xf32>
    %c0_220 = arith.constant 0 : index
    %c0_221 = arith.constant 0 : index
    %588 = vector.load %arg14[%c0_220, %c0_221] : memref<8x16xf32, #tpu.memory_space<vmem>>, vector<8x16xf32>
    tpu.vector_store %arg14[%c0_220, %c0_221], %587 {strides = array<i32>} : memref<8x16xf32, #tpu.memory_space<vmem>>, vector<8x16xf32>,
    %589 = vector.broadcast %547 : vector<8x1xf32> to vector<8x16xf32>
    %590 = arith.mulf %589, %577 : vector<8x16xf32>
    %cst_222 = arith.constant 1.000000e+00 : f32
    %591 = vector.broadcast %cst_222 : f32 to vector<8x1xf32>
    %592 = arith.subf %591, %547 : vector<8x1xf32>
    %c0_223 = arith.constant 0 : index
    %c0_224 = arith.constant 0 : index
    %593 = vector.load %arg15[%c0_223, %c0_224] : memref<8x16xf32, #tpu.memory_space<vmem>>, vector<8x16xf32>
    %594 = vector.broadcast %592 : vector<8x1xf32> to vector<8x16xf32>
    %595 = arith.mulf %594, %593 : vector<8x16xf32>
    %596 = arith.addf %590, %595 : vector<8x16xf32>
    %c0_225 = arith.constant 0 : index
    %c0_226 = arith.constant 0 : index
    %597 = vector.load %arg15[%c0_225, %c0_226] : memref<8x16xf32, #tpu.memory_space<vmem>>, vector<8x16xf32>
    tpu.vector_store %arg15[%c0_225, %c0_226], %596 {strides = array<i32>} : memref<8x16xf32, #tpu.memory_space<vmem>>, vector<8x16xf32>,
    %598 = vector.broadcast %547 : vector<8x1xf32> to vector<8x16xf32>
    %599 = arith.mulf %579, %598 : vector<8x16xf32>
    %600 = arith.truncf %599 : vector<8x16xf32> to vector<8x16xbf16>
    %c0_227 = arith.constant 0 : index
    %601 = arith.index_cast %542 : i32 to index
    %c0_228 = arith.constant 0 : index
    %602 = vector.load %arg10[%c0_227, %601, %c0_228] : memref<1x64x16xbf16, #tpu.memory_space<vmem>>, vector<1x8x16xbf16>
    %603 = vector.shape_cast %602 : vector<1x8x16xbf16> to vector<8x16xbf16>
    %604 = vector.shape_cast %600 : vector<8x16xbf16> to vector<1x8x16xbf16>
    tpu.vector_store %arg10[%c0_227, %601, %c0_228], %604 {strides = array<i32>} : memref<1x64x16xbf16, #tpu.memory_space<vmem>>, vector<1x8x16xbf16>,
    %c7_i32_229 = arith.constant 7 : i32
    %605 = arith.subi %c7_i32_229, %c4_i32 : i32
    %c8_i32_230 = arith.constant 8 : i32
    %606 = arith.muli %605, %c8_i32_230 : i32
    %607 = tpu.assume_multiple %606, 8 : i32
    %608 = arith.addi %24, %605 : i32
    %609 = vector.broadcast %608 : i32 to vector<8x1xi32>
    %610 = arith.cmpi slt, %609, %21 : vector<8x1xi32>
    %611 = arith.extui %610 : vector<8x1xi1> to vector<8x1xi32>
    %612 = arith.sitofp %611 : vector<8x1xi32> to vector<8x1xf32>
    %613 = arith.index_cast %607 : i32 to index
    %c0_231 = arith.constant 0 : index
    %614 = vector.load %arg13[%613, %c0_231] : memref<64x64xf32, #tpu.memory_space<vmem>>, vector<8x64xf32>
    %c0_232 = arith.constant 0 : index
    %c0_233 = arith.constant 0 : index
    %615 = vector.load %arg16[%c0_232, %c0_233] : memref<8x16xf32, #tpu.memory_space<vmem>>, vector<8x16xf32>
    %616 = arith.truncf %615 : vector<8x16xf32> to vector<8x16xbf16>
    %cst_234 = arith.constant dense<0.000000e+00> : vector<8x64xf32>
    %617 = tpu.matmul %616, %20, %cst_234 {dimension_numbers = #tpu.dot_dimension_numbers<[1], [0], [0], [1], [0, 0, 1, 1], [], []>} : vector<8x16xbf16>, vector<16x64xbf16>, vector<8x64xf32> -> vector<8x64xf32>
    %618 = arith.addf %614, %617 : vector<8x64xf32>
    %c0_235 = arith.constant 0 : index
    %c0_236 = arith.constant 0 : index
    %619 = vector.load %arg17[%c0_235, %c0_236] : memref<8x16xf32, #tpu.memory_space<vmem>>, vector<8x16xf32>
    %620 = vector.extract_strided_slice %618 {offsets = [0, 0], sizes = [8, 16], strides = [1, 1]} : vector<8x64xf32> to vector<8x16xf32>
    %621 = arith.negf %620 : vector<8x16xf32>
    %622 = math.exp %621 : vector<8x16xf32>
    %cst_237 = arith.constant 1.000000e+00 : f32
    %623 = vector.broadcast %cst_237 : f32 to vector<8x16xf32>
    %624 = arith.addf %623, %622 : vector<8x16xf32>
    %625 = arith.divf %623, %624 : vector<8x16xf32>
    %626 = vector.extract_strided_slice %618 {offsets = [0, 16], sizes = [8, 16], strides = [1, 1]} : vector<8x64xf32> to vector<8x16xf32>
    %627 = arith.negf %626 : vector<8x16xf32>
    %628 = math.exp %627 : vector<8x16xf32>
    %cst_238 = arith.constant 1.000000e+00 : f32
    %629 = vector.broadcast %cst_238 : f32 to vector<8x16xf32>
    %630 = arith.addf %629, %628 : vector<8x16xf32>
    %631 = arith.divf %629, %630 : vector<8x16xf32>
    %632 = vector.extract_strided_slice %618 {offsets = [0, 32], sizes = [8, 16], strides = [1, 1]} : vector<8x64xf32> to vector<8x16xf32>
    %633 = math.tanh %632 : vector<8x16xf32>
    %634 = vector.extract_strided_slice %618 {offsets = [0, 48], sizes = [8, 16], strides = [1, 1]} : vector<8x64xf32> to vector<8x16xf32>
    %635 = arith.negf %634 : vector<8x16xf32>
    %636 = math.exp %635 : vector<8x16xf32>
    %cst_239 = arith.constant 1.000000e+00 : f32
    %637 = vector.broadcast %cst_239 : f32 to vector<8x16xf32>
    %638 = arith.addf %637, %636 : vector<8x16xf32>
    %639 = arith.divf %637, %638 : vector<8x16xf32>
    %640 = arith.mulf %631, %619 : vector<8x16xf32>
    %641 = arith.mulf %625, %633 : vector<8x16xf32>
    %642 = arith.addf %640, %641 : vector<8x16xf32>
    %643 = math.tanh %642 : vector<8x16xf32>
    %644 = arith.mulf %639, %643 : vector<8x16xf32>
    %645 = vector.broadcast %612 : vector<8x1xf32> to vector<8x16xf32>
    %646 = arith.mulf %645, %644 : vector<8x16xf32>
    %cst_240 = arith.constant 1.000000e+00 : f32
    %647 = vector.broadcast %cst_240 : f32 to vector<8x1xf32>
    %648 = arith.subf %647, %612 : vector<8x1xf32>
    %c0_241 = arith.constant 0 : index
    %c0_242 = arith.constant 0 : index
    %649 = vector.load %arg16[%c0_241, %c0_242] : memref<8x16xf32, #tpu.memory_space<vmem>>, vector<8x16xf32>
    %650 = vector.broadcast %648 : vector<8x1xf32> to vector<8x16xf32>
    %651 = arith.mulf %650, %649 : vector<8x16xf32>
    %652 = arith.addf %646, %651 : vector<8x16xf32>
    %c0_243 = arith.constant 0 : index
    %c0_244 = arith.constant 0 : index
    %653 = vector.load %arg16[%c0_243, %c0_244] : memref<8x16xf32, #tpu.memory_space<vmem>>, vector<8x16xf32>
    tpu.vector_store %arg16[%c0_243, %c0_244], %652 {strides = array<i32>} : memref<8x16xf32, #tpu.memory_space<vmem>>, vector<8x16xf32>,
    %654 = vector.broadcast %612 : vector<8x1xf32> to vector<8x16xf32>
    %655 = arith.mulf %654, %642 : vector<8x16xf32>
    %cst_245 = arith.constant 1.000000e+00 : f32
    %656 = vector.broadcast %cst_245 : f32 to vector<8x1xf32>
    %657 = arith.subf %656, %612 : vector<8x1xf32>
    %c0_246 = arith.constant 0 : index
    %c0_247 = arith.constant 0 : index
    %658 = vector.load %arg17[%c0_246, %c0_247] : memref<8x16xf32, #tpu.memory_space<vmem>>, vector<8x16xf32>
    %659 = vector.broadcast %657 : vector<8x1xf32> to vector<8x16xf32>
    %660 = arith.mulf %659, %658 : vector<8x16xf32>
    %661 = arith.addf %655, %660 : vector<8x16xf32>
    %c0_248 = arith.constant 0 : index
    %c0_249 = arith.constant 0 : index
    %662 = vector.load %arg17[%c0_248, %c0_249] : memref<8x16xf32, #tpu.memory_space<vmem>>, vector<8x16xf32>
    tpu.vector_store %arg17[%c0_248, %c0_249], %661 {strides = array<i32>} : memref<8x16xf32, #tpu.memory_space<vmem>>, vector<8x16xf32>,
    %663 = vector.broadcast %612 : vector<8x1xf32> to vector<8x16xf32>
    %664 = arith.mulf %644, %663 : vector<8x16xf32>
    %665 = arith.truncf %664 : vector<8x16xf32> to vector<8x16xbf16>
    %c0_250 = arith.constant 0 : index
    %666 = arith.index_cast %607 : i32 to index
    %c0_251 = arith.constant 0 : index
    %667 = vector.load %arg11[%c0_250, %666, %c0_251] : memref<1x64x16xbf16, #tpu.memory_space<vmem>>, vector<1x8x16xbf16>
    %668 = vector.shape_cast %667 : vector<1x8x16xbf16> to vector<8x16xbf16>
    %669 = vector.shape_cast %665 : vector<8x16xbf16> to vector<1x8x16xbf16>
    tpu.vector_store %arg11[%c0_250, %666, %c0_251], %669 {strides = array<i32>} : memref<1x64x16xbf16, #tpu.memory_space<vmem>>, vector<1x8x16xbf16>,
    %c5_i32 = arith.constant 5 : i32
    %c8_i32_252 = arith.constant 8 : i32
    %670 = arith.muli %c5_i32, %c8_i32_252 : i32
    %671 = tpu.assume_multiple %670, 8 : i32
    %672 = arith.addi %22, %c5_i32 : i32
    %673 = vector.broadcast %672 : i32 to vector<8x1xi32>
    %674 = arith.cmpi slt, %673, %21 : vector<8x1xi32>
    %675 = arith.extui %674 : vector<8x1xi1> to vector<8x1xi32>
    %676 = arith.sitofp %675 : vector<8x1xi32> to vector<8x1xf32>
    %677 = arith.index_cast %671 : i32 to index
    %c0_253 = arith.constant 0 : index
    %678 = vector.load %arg12[%677, %c0_253] : memref<64x64xf32, #tpu.memory_space<vmem>>, vector<8x64xf32>
    %c0_254 = arith.constant 0 : index
    %c0_255 = arith.constant 0 : index
    %679 = vector.load %arg14[%c0_254, %c0_255] : memref<8x16xf32, #tpu.memory_space<vmem>>, vector<8x16xf32>
    %680 = arith.truncf %679 : vector<8x16xf32> to vector<8x16xbf16>
    %cst_256 = arith.constant dense<0.000000e+00> : vector<8x64xf32>
    %681 = tpu.matmul %680, %19, %cst_256 {dimension_numbers = #tpu.dot_dimension_numbers<[1], [0], [0], [1], [0, 0, 1, 1], [], []>} : vector<8x16xbf16>, vector<16x64xbf16>, vector<8x64xf32> -> vector<8x64xf32>
    %682 = arith.addf %678, %681 : vector<8x64xf32>
    %c0_257 = arith.constant 0 : index
    %c0_258 = arith.constant 0 : index
    %683 = vector.load %arg15[%c0_257, %c0_258] : memref<8x16xf32, #tpu.memory_space<vmem>>, vector<8x16xf32>
    %684 = vector.extract_strided_slice %682 {offsets = [0, 0], sizes = [8, 16], strides = [1, 1]} : vector<8x64xf32> to vector<8x16xf32>
    %685 = arith.negf %684 : vector<8x16xf32>
    %686 = math.exp %685 : vector<8x16xf32>
    %cst_259 = arith.constant 1.000000e+00 : f32
    %687 = vector.broadcast %cst_259 : f32 to vector<8x16xf32>
    %688 = arith.addf %687, %686 : vector<8x16xf32>
    %689 = arith.divf %687, %688 : vector<8x16xf32>
    %690 = vector.extract_strided_slice %682 {offsets = [0, 16], sizes = [8, 16], strides = [1, 1]} : vector<8x64xf32> to vector<8x16xf32>
    %691 = arith.negf %690 : vector<8x16xf32>
    %692 = math.exp %691 : vector<8x16xf32>
    %cst_260 = arith.constant 1.000000e+00 : f32
    %693 = vector.broadcast %cst_260 : f32 to vector<8x16xf32>
    %694 = arith.addf %693, %692 : vector<8x16xf32>
    %695 = arith.divf %693, %694 : vector<8x16xf32>
    %696 = vector.extract_strided_slice %682 {offsets = [0, 32], sizes = [8, 16], strides = [1, 1]} : vector<8x64xf32> to vector<8x16xf32>
    %697 = math.tanh %696 : vector<8x16xf32>
    %698 = vector.extract_strided_slice %682 {offsets = [0, 48], sizes = [8, 16], strides = [1, 1]} : vector<8x64xf32> to vector<8x16xf32>
    %699 = arith.negf %698 : vector<8x16xf32>
    %700 = math.exp %699 : vector<8x16xf32>
    %cst_261 = arith.constant 1.000000e+00 : f32
    %701 = vector.broadcast %cst_261 : f32 to vector<8x16xf32>
    %702 = arith.addf %701, %700 : vector<8x16xf32>
    %703 = arith.divf %701, %702 : vector<8x16xf32>
    %704 = arith.mulf %695, %683 : vector<8x16xf32>
    %705 = arith.mulf %689, %697 : vector<8x16xf32>
    %706 = arith.addf %704, %705 : vector<8x16xf32>
    %707 = math.tanh %706 : vector<8x16xf32>
    %708 = arith.mulf %703, %707 : vector<8x16xf32>
    %709 = vector.broadcast %676 : vector<8x1xf32> to vector<8x16xf32>
    %710 = arith.mulf %709, %708 : vector<8x16xf32>
    %cst_262 = arith.constant 1.000000e+00 : f32
    %711 = vector.broadcast %cst_262 : f32 to vector<8x1xf32>
    %712 = arith.subf %711, %676 : vector<8x1xf32>
    %c0_263 = arith.constant 0 : index
    %c0_264 = arith.constant 0 : index
    %713 = vector.load %arg14[%c0_263, %c0_264] : memref<8x16xf32, #tpu.memory_space<vmem>>, vector<8x16xf32>
    %714 = vector.broadcast %712 : vector<8x1xf32> to vector<8x16xf32>
    %715 = arith.mulf %714, %713 : vector<8x16xf32>
    %716 = arith.addf %710, %715 : vector<8x16xf32>
    %c0_265 = arith.constant 0 : index
    %c0_266 = arith.constant 0 : index
    %717 = vector.load %arg14[%c0_265, %c0_266] : memref<8x16xf32, #tpu.memory_space<vmem>>, vector<8x16xf32>
    tpu.vector_store %arg14[%c0_265, %c0_266], %716 {strides = array<i32>} : memref<8x16xf32, #tpu.memory_space<vmem>>, vector<8x16xf32>,
    %718 = vector.broadcast %676 : vector<8x1xf32> to vector<8x16xf32>
    %719 = arith.mulf %718, %706 : vector<8x16xf32>
    %cst_267 = arith.constant 1.000000e+00 : f32
    %720 = vector.broadcast %cst_267 : f32 to vector<8x1xf32>
    %721 = arith.subf %720, %676 : vector<8x1xf32>
    %c0_268 = arith.constant 0 : index
    %c0_269 = arith.constant 0 : index
    %722 = vector.load %arg15[%c0_268, %c0_269] : memref<8x16xf32, #tpu.memory_space<vmem>>, vector<8x16xf32>
    %723 = vector.broadcast %721 : vector<8x1xf32> to vector<8x16xf32>
    %724 = arith.mulf %723, %722 : vector<8x16xf32>
    %725 = arith.addf %719, %724 : vector<8x16xf32>
    %c0_270 = arith.constant 0 : index
    %c0_271 = arith.constant 0 : index
    %726 = vector.load %arg15[%c0_270, %c0_271] : memref<8x16xf32, #tpu.memory_space<vmem>>, vector<8x16xf32>
    tpu.vector_store %arg15[%c0_270, %c0_271], %725 {strides = array<i32>} : memref<8x16xf32, #tpu.memory_space<vmem>>, vector<8x16xf32>,
    %727 = vector.broadcast %676 : vector<8x1xf32> to vector<8x16xf32>
    %728 = arith.mulf %708, %727 : vector<8x16xf32>
    %729 = arith.truncf %728 : vector<8x16xf32> to vector<8x16xbf16>
    %c0_272 = arith.constant 0 : index
    %730 = arith.index_cast %671 : i32 to index
    %c0_273 = arith.constant 0 : index
    %731 = vector.load %arg10[%c0_272, %730, %c0_273] : memref<1x64x16xbf16, #tpu.memory_space<vmem>>, vector<1x8x16xbf16>
    %732 = vector.shape_cast %731 : vector<1x8x16xbf16> to vector<8x16xbf16>
    %733 = vector.shape_cast %729 : vector<8x16xbf16> to vector<1x8x16xbf16>
    tpu.vector_store %arg10[%c0_272, %730, %c0_273], %733 {strides = array<i32>} : memref<1x64x16xbf16, #tpu.memory_space<vmem>>, vector<1x8x16xbf16>,
    %c7_i32_274 = arith.constant 7 : i32
    %734 = arith.subi %c7_i32_274, %c5_i32 : i32
    %c8_i32_275 = arith.constant 8 : i32
    %735 = arith.muli %734, %c8_i32_275 : i32
    %736 = tpu.assume_multiple %735, 8 : i32
    %737 = arith.addi %24, %734 : i32
    %738 = vector.broadcast %737 : i32 to vector<8x1xi32>
    %739 = arith.cmpi slt, %738, %21 : vector<8x1xi32>
    %740 = arith.extui %739 : vector<8x1xi1> to vector<8x1xi32>
    %741 = arith.sitofp %740 : vector<8x1xi32> to vector<8x1xf32>
    %742 = arith.index_cast %736 : i32 to index
    %c0_276 = arith.constant 0 : index
    %743 = vector.load %arg13[%742, %c0_276] : memref<64x64xf32, #tpu.memory_space<vmem>>, vector<8x64xf32>
    %c0_277 = arith.constant 0 : index
    %c0_278 = arith.constant 0 : index
    %744 = vector.load %arg16[%c0_277, %c0_278] : memref<8x16xf32, #tpu.memory_space<vmem>>, vector<8x16xf32>
    %745 = arith.truncf %744 : vector<8x16xf32> to vector<8x16xbf16>
    %cst_279 = arith.constant dense<0.000000e+00> : vector<8x64xf32>
    %746 = tpu.matmul %745, %20, %cst_279 {dimension_numbers = #tpu.dot_dimension_numbers<[1], [0], [0], [1], [0, 0, 1, 1], [], []>} : vector<8x16xbf16>, vector<16x64xbf16>, vector<8x64xf32> -> vector<8x64xf32>
    %747 = arith.addf %743, %746 : vector<8x64xf32>
    %c0_280 = arith.constant 0 : index
    %c0_281 = arith.constant 0 : index
    %748 = vector.load %arg17[%c0_280, %c0_281] : memref<8x16xf32, #tpu.memory_space<vmem>>, vector<8x16xf32>
    %749 = vector.extract_strided_slice %747 {offsets = [0, 0], sizes = [8, 16], strides = [1, 1]} : vector<8x64xf32> to vector<8x16xf32>
    %750 = arith.negf %749 : vector<8x16xf32>
    %751 = math.exp %750 : vector<8x16xf32>
    %cst_282 = arith.constant 1.000000e+00 : f32
    %752 = vector.broadcast %cst_282 : f32 to vector<8x16xf32>
    %753 = arith.addf %752, %751 : vector<8x16xf32>
    %754 = arith.divf %752, %753 : vector<8x16xf32>
    %755 = vector.extract_strided_slice %747 {offsets = [0, 16], sizes = [8, 16], strides = [1, 1]} : vector<8x64xf32> to vector<8x16xf32>
    %756 = arith.negf %755 : vector<8x16xf32>
    %757 = math.exp %756 : vector<8x16xf32>
    %cst_283 = arith.constant 1.000000e+00 : f32
    %758 = vector.broadcast %cst_283 : f32 to vector<8x16xf32>
    %759 = arith.addf %758, %757 : vector<8x16xf32>
    %760 = arith.divf %758, %759 : vector<8x16xf32>
    %761 = vector.extract_strided_slice %747 {offsets = [0, 32], sizes = [8, 16], strides = [1, 1]} : vector<8x64xf32> to vector<8x16xf32>
    %762 = math.tanh %761 : vector<8x16xf32>
    %763 = vector.extract_strided_slice %747 {offsets = [0, 48], sizes = [8, 16], strides = [1, 1]} : vector<8x64xf32> to vector<8x16xf32>
    %764 = arith.negf %763 : vector<8x16xf32>
    %765 = math.exp %764 : vector<8x16xf32>
    %cst_284 = arith.constant 1.000000e+00 : f32
    %766 = vector.broadcast %cst_284 : f32 to vector<8x16xf32>
    %767 = arith.addf %766, %765 : vector<8x16xf32>
    %768 = arith.divf %766, %767 : vector<8x16xf32>
    %769 = arith.mulf %760, %748 : vector<8x16xf32>
    %770 = arith.mulf %754, %762 : vector<8x16xf32>
    %771 = arith.addf %769, %770 : vector<8x16xf32>
    %772 = math.tanh %771 : vector<8x16xf32>
    %773 = arith.mulf %768, %772 : vector<8x16xf32>
    %774 = vector.broadcast %741 : vector<8x1xf32> to vector<8x16xf32>
    %775 = arith.mulf %774, %773 : vector<8x16xf32>
    %cst_285 = arith.constant 1.000000e+00 : f32
    %776 = vector.broadcast %cst_285 : f32 to vector<8x1xf32>
    %777 = arith.subf %776, %741 : vector<8x1xf32>
    %c0_286 = arith.constant 0 : index
    %c0_287 = arith.constant 0 : index
    %778 = vector.load %arg16[%c0_286, %c0_287] : memref<8x16xf32, #tpu.memory_space<vmem>>, vector<8x16xf32>
    %779 = vector.broadcast %777 : vector<8x1xf32> to vector<8x16xf32>
    %780 = arith.mulf %779, %778 : vector<8x16xf32>
    %781 = arith.addf %775, %780 : vector<8x16xf32>
    %c0_288 = arith.constant 0 : index
    %c0_289 = arith.constant 0 : index
    %782 = vector.load %arg16[%c0_288, %c0_289] : memref<8x16xf32, #tpu.memory_space<vmem>>, vector<8x16xf32>
    tpu.vector_store %arg16[%c0_288, %c0_289], %781 {strides = array<i32>} : memref<8x16xf32, #tpu.memory_space<vmem>>, vector<8x16xf32>,
    %783 = vector.broadcast %741 : vector<8x1xf32> to vector<8x16xf32>
    %784 = arith.mulf %783, %771 : vector<8x16xf32>
    %cst_290 = arith.constant 1.000000e+00 : f32
    %785 = vector.broadcast %cst_290 : f32 to vector<8x1xf32>
    %786 = arith.subf %785, %741 : vector<8x1xf32>
    %c0_291 = arith.constant 0 : index
    %c0_292 = arith.constant 0 : index
    %787 = vector.load %arg17[%c0_291, %c0_292] : memref<8x16xf32, #tpu.memory_space<vmem>>, vector<8x16xf32>
    %788 = vector.broadcast %786 : vector<8x1xf32> to vector<8x16xf32>
    %789 = arith.mulf %788, %787 : vector<8x16xf32>
    %790 = arith.addf %784, %789 : vector<8x16xf32>
    %c0_293 = arith.constant 0 : index
    %c0_294 = arith.constant 0 : index
    %791 = vector.load %arg17[%c0_293, %c0_294] : memref<8x16xf32, #tpu.memory_space<vmem>>, vector<8x16xf32>
    tpu.vector_store %arg17[%c0_293, %c0_294], %790 {strides = array<i32>} : memref<8x16xf32, #tpu.memory_space<vmem>>, vector<8x16xf32>,
    %792 = vector.broadcast %741 : vector<8x1xf32> to vector<8x16xf32>
    %793 = arith.mulf %773, %792 : vector<8x16xf32>
    %794 = arith.truncf %793 : vector<8x16xf32> to vector<8x16xbf16>
    %c0_295 = arith.constant 0 : index
    %795 = arith.index_cast %736 : i32 to index
    %c0_296 = arith.constant 0 : index
    %796 = vector.load %arg11[%c0_295, %795, %c0_296] : memref<1x64x16xbf16, #tpu.memory_space<vmem>>, vector<1x8x16xbf16>
    %797 = vector.shape_cast %796 : vector<1x8x16xbf16> to vector<8x16xbf16>
    %798 = vector.shape_cast %794 : vector<8x16xbf16> to vector<1x8x16xbf16>
    tpu.vector_store %arg11[%c0_295, %795, %c0_296], %798 {strides = array<i32>} : memref<1x64x16xbf16, #tpu.memory_space<vmem>>, vector<1x8x16xbf16>,
    %c6_i32 = arith.constant 6 : i32
    %c8_i32_297 = arith.constant 8 : i32
    %799 = arith.muli %c6_i32, %c8_i32_297 : i32
    %800 = tpu.assume_multiple %799, 8 : i32
    %801 = arith.addi %22, %c6_i32 : i32
    %802 = vector.broadcast %801 : i32 to vector<8x1xi32>
    %803 = arith.cmpi slt, %802, %21 : vector<8x1xi32>
    %804 = arith.extui %803 : vector<8x1xi1> to vector<8x1xi32>
    %805 = arith.sitofp %804 : vector<8x1xi32> to vector<8x1xf32>
    %806 = arith.index_cast %800 : i32 to index
    %c0_298 = arith.constant 0 : index
    %807 = vector.load %arg12[%806, %c0_298] : memref<64x64xf32, #tpu.memory_space<vmem>>, vector<8x64xf32>
    %c0_299 = arith.constant 0 : index
    %c0_300 = arith.constant 0 : index
    %808 = vector.load %arg14[%c0_299, %c0_300] : memref<8x16xf32, #tpu.memory_space<vmem>>, vector<8x16xf32>
    %809 = arith.truncf %808 : vector<8x16xf32> to vector<8x16xbf16>
    %cst_301 = arith.constant dense<0.000000e+00> : vector<8x64xf32>
    %810 = tpu.matmul %809, %19, %cst_301 {dimension_numbers = #tpu.dot_dimension_numbers<[1], [0], [0], [1], [0, 0, 1, 1], [], []>} : vector<8x16xbf16>, vector<16x64xbf16>, vector<8x64xf32> -> vector<8x64xf32>
    %811 = arith.addf %807, %810 : vector<8x64xf32>
    %c0_302 = arith.constant 0 : index
    %c0_303 = arith.constant 0 : index
    %812 = vector.load %arg15[%c0_302, %c0_303] : memref<8x16xf32, #tpu.memory_space<vmem>>, vector<8x16xf32>
    %813 = vector.extract_strided_slice %811 {offsets = [0, 0], sizes = [8, 16], strides = [1, 1]} : vector<8x64xf32> to vector<8x16xf32>
    %814 = arith.negf %813 : vector<8x16xf32>
    %815 = math.exp %814 : vector<8x16xf32>
    %cst_304 = arith.constant 1.000000e+00 : f32
    %816 = vector.broadcast %cst_304 : f32 to vector<8x16xf32>
    %817 = arith.addf %816, %815 : vector<8x16xf32>
    %818 = arith.divf %816, %817 : vector<8x16xf32>
    %819 = vector.extract_strided_slice %811 {offsets = [0, 16], sizes = [8, 16], strides = [1, 1]} : vector<8x64xf32> to vector<8x16xf32>
    %820 = arith.negf %819 : vector<8x16xf32>
    %821 = math.exp %820 : vector<8x16xf32>
    %cst_305 = arith.constant 1.000000e+00 : f32
    %822 = vector.broadcast %cst_305 : f32 to vector<8x16xf32>
    %823 = arith.addf %822, %821 : vector<8x16xf32>
    %824 = arith.divf %822, %823 : vector<8x16xf32>
    %825 = vector.extract_strided_slice %811 {offsets = [0, 32], sizes = [8, 16], strides = [1, 1]} : vector<8x64xf32> to vector<8x16xf32>
    %826 = math.tanh %825 : vector<8x16xf32>
    %827 = vector.extract_strided_slice %811 {offsets = [0, 48], sizes = [8, 16], strides = [1, 1]} : vector<8x64xf32> to vector<8x16xf32>
    %828 = arith.negf %827 : vector<8x16xf32>
    %829 = math.exp %828 : vector<8x16xf32>
    %cst_306 = arith.constant 1.000000e+00 : f32
    %830 = vector.broadcast %cst_306 : f32 to vector<8x16xf32>
    %831 = arith.addf %830, %829 : vector<8x16xf32>
    %832 = arith.divf %830, %831 : vector<8x16xf32>
    %833 = arith.mulf %824, %812 : vector<8x16xf32>
    %834 = arith.mulf %818, %826 : vector<8x16xf32>
    %835 = arith.addf %833, %834 : vector<8x16xf32>
    %836 = math.tanh %835 : vector<8x16xf32>
    %837 = arith.mulf %832, %836 : vector<8x16xf32>
    %838 = vector.broadcast %805 : vector<8x1xf32> to vector<8x16xf32>
    %839 = arith.mulf %838, %837 : vector<8x16xf32>
    %cst_307 = arith.constant 1.000000e+00 : f32
    %840 = vector.broadcast %cst_307 : f32 to vector<8x1xf32>
    %841 = arith.subf %840, %805 : vector<8x1xf32>
    %c0_308 = arith.constant 0 : index
    %c0_309 = arith.constant 0 : index
    %842 = vector.load %arg14[%c0_308, %c0_309] : memref<8x16xf32, #tpu.memory_space<vmem>>, vector<8x16xf32>
    %843 = vector.broadcast %841 : vector<8x1xf32> to vector<8x16xf32>
    %844 = arith.mulf %843, %842 : vector<8x16xf32>
    %845 = arith.addf %839, %844 : vector<8x16xf32>
    %c0_310 = arith.constant 0 : index
    %c0_311 = arith.constant 0 : index
    %846 = vector.load %arg14[%c0_310, %c0_311] : memref<8x16xf32, #tpu.memory_space<vmem>>, vector<8x16xf32>
    tpu.vector_store %arg14[%c0_310, %c0_311], %845 {strides = array<i32>} : memref<8x16xf32, #tpu.memory_space<vmem>>, vector<8x16xf32>,
    %847 = vector.broadcast %805 : vector<8x1xf32> to vector<8x16xf32>
    %848 = arith.mulf %847, %835 : vector<8x16xf32>
    %cst_312 = arith.constant 1.000000e+00 : f32
    %849 = vector.broadcast %cst_312 : f32 to vector<8x1xf32>
    %850 = arith.subf %849, %805 : vector<8x1xf32>
    %c0_313 = arith.constant 0 : index
    %c0_314 = arith.constant 0 : index
    %851 = vector.load %arg15[%c0_313, %c0_314] : memref<8x16xf32, #tpu.memory_space<vmem>>, vector<8x16xf32>
    %852 = vector.broadcast %850 : vector<8x1xf32> to vector<8x16xf32>
    %853 = arith.mulf %852, %851 : vector<8x16xf32>
    %854 = arith.addf %848, %853 : vector<8x16xf32>
    %c0_315 = arith.constant 0 : index
    %c0_316 = arith.constant 0 : index
    %855 = vector.load %arg15[%c0_315, %c0_316] : memref<8x16xf32, #tpu.memory_space<vmem>>, vector<8x16xf32>
    tpu.vector_store %arg15[%c0_315, %c0_316], %854 {strides = array<i32>} : memref<8x16xf32, #tpu.memory_space<vmem>>, vector<8x16xf32>,
    %856 = vector.broadcast %805 : vector<8x1xf32> to vector<8x16xf32>
    %857 = arith.mulf %837, %856 : vector<8x16xf32>
    %858 = arith.truncf %857 : vector<8x16xf32> to vector<8x16xbf16>
    %c0_317 = arith.constant 0 : index
    %859 = arith.index_cast %800 : i32 to index
    %c0_318 = arith.constant 0 : index
    %860 = vector.load %arg10[%c0_317, %859, %c0_318] : memref<1x64x16xbf16, #tpu.memory_space<vmem>>, vector<1x8x16xbf16>
    %861 = vector.shape_cast %860 : vector<1x8x16xbf16> to vector<8x16xbf16>
    %862 = vector.shape_cast %858 : vector<8x16xbf16> to vector<1x8x16xbf16>
    tpu.vector_store %arg10[%c0_317, %859, %c0_318], %862 {strides = array<i32>} : memref<1x64x16xbf16, #tpu.memory_space<vmem>>, vector<1x8x16xbf16>,
    %c7_i32_319 = arith.constant 7 : i32
    %863 = arith.subi %c7_i32_319, %c6_i32 : i32
    %c8_i32_320 = arith.constant 8 : i32
    %864 = arith.muli %863, %c8_i32_320 : i32
    %865 = tpu.assume_multiple %864, 8 : i32
    %866 = arith.addi %24, %863 : i32
    %867 = vector.broadcast %866 : i32 to vector<8x1xi32>
    %868 = arith.cmpi slt, %867, %21 : vector<8x1xi32>
    %869 = arith.extui %868 : vector<8x1xi1> to vector<8x1xi32>
    %870 = arith.sitofp %869 : vector<8x1xi32> to vector<8x1xf32>
    %871 = arith.index_cast %865 : i32 to index
    %c0_321 = arith.constant 0 : index
    %872 = vector.load %arg13[%871, %c0_321] : memref<64x64xf32, #tpu.memory_space<vmem>>, vector<8x64xf32>
    %c0_322 = arith.constant 0 : index
    %c0_323 = arith.constant 0 : index
    %873 = vector.load %arg16[%c0_322, %c0_323] : memref<8x16xf32, #tpu.memory_space<vmem>>, vector<8x16xf32>
    %874 = arith.truncf %873 : vector<8x16xf32> to vector<8x16xbf16>
    %cst_324 = arith.constant dense<0.000000e+00> : vector<8x64xf32>
    %875 = tpu.matmul %874, %20, %cst_324 {dimension_numbers = #tpu.dot_dimension_numbers<[1], [0], [0], [1], [0, 0, 1, 1], [], []>} : vector<8x16xbf16>, vector<16x64xbf16>, vector<8x64xf32> -> vector<8x64xf32>
    %876 = arith.addf %872, %875 : vector<8x64xf32>
    %c0_325 = arith.constant 0 : index
    %c0_326 = arith.constant 0 : index
    %877 = vector.load %arg17[%c0_325, %c0_326] : memref<8x16xf32, #tpu.memory_space<vmem>>, vector<8x16xf32>
    %878 = vector.extract_strided_slice %876 {offsets = [0, 0], sizes = [8, 16], strides = [1, 1]} : vector<8x64xf32> to vector<8x16xf32>
    %879 = arith.negf %878 : vector<8x16xf32>
    %880 = math.exp %879 : vector<8x16xf32>
    %cst_327 = arith.constant 1.000000e+00 : f32
    %881 = vector.broadcast %cst_327 : f32 to vector<8x16xf32>
    %882 = arith.addf %881, %880 : vector<8x16xf32>
    %883 = arith.divf %881, %882 : vector<8x16xf32>
    %884 = vector.extract_strided_slice %876 {offsets = [0, 16], sizes = [8, 16], strides = [1, 1]} : vector<8x64xf32> to vector<8x16xf32>
    %885 = arith.negf %884 : vector<8x16xf32>
    %886 = math.exp %885 : vector<8x16xf32>
    %cst_328 = arith.constant 1.000000e+00 : f32
    %887 = vector.broadcast %cst_328 : f32 to vector<8x16xf32>
    %888 = arith.addf %887, %886 : vector<8x16xf32>
    %889 = arith.divf %887, %888 : vector<8x16xf32>
    %890 = vector.extract_strided_slice %876 {offsets = [0, 32], sizes = [8, 16], strides = [1, 1]} : vector<8x64xf32> to vector<8x16xf32>
    %891 = math.tanh %890 : vector<8x16xf32>
    %892 = vector.extract_strided_slice %876 {offsets = [0, 48], sizes = [8, 16], strides = [1, 1]} : vector<8x64xf32> to vector<8x16xf32>
    %893 = arith.negf %892 : vector<8x16xf32>
    %894 = math.exp %893 : vector<8x16xf32>
    %cst_329 = arith.constant 1.000000e+00 : f32
    %895 = vector.broadcast %cst_329 : f32 to vector<8x16xf32>
    %896 = arith.addf %895, %894 : vector<8x16xf32>
    %897 = arith.divf %895, %896 : vector<8x16xf32>
    %898 = arith.mulf %889, %877 : vector<8x16xf32>
    %899 = arith.mulf %883, %891 : vector<8x16xf32>
    %900 = arith.addf %898, %899 : vector<8x16xf32>
    %901 = math.tanh %900 : vector<8x16xf32>
    %902 = arith.mulf %897, %901 : vector<8x16xf32>
    %903 = vector.broadcast %870 : vector<8x1xf32> to vector<8x16xf32>
    %904 = arith.mulf %903, %902 : vector<8x16xf32>
    %cst_330 = arith.constant 1.000000e+00 : f32
    %905 = vector.broadcast %cst_330 : f32 to vector<8x1xf32>
    %906 = arith.subf %905, %870 : vector<8x1xf32>
    %c0_331 = arith.constant 0 : index
    %c0_332 = arith.constant 0 : index
    %907 = vector.load %arg16[%c0_331, %c0_332] : memref<8x16xf32, #tpu.memory_space<vmem>>, vector<8x16xf32>
    %908 = vector.broadcast %906 : vector<8x1xf32> to vector<8x16xf32>
    %909 = arith.mulf %908, %907 : vector<8x16xf32>
    %910 = arith.addf %904, %909 : vector<8x16xf32>
    %c0_333 = arith.constant 0 : index
    %c0_334 = arith.constant 0 : index
    %911 = vector.load %arg16[%c0_333, %c0_334] : memref<8x16xf32, #tpu.memory_space<vmem>>, vector<8x16xf32>
    tpu.vector_store %arg16[%c0_333, %c0_334], %910 {strides = array<i32>} : memref<8x16xf32, #tpu.memory_space<vmem>>, vector<8x16xf32>,
    %912 = vector.broadcast %870 : vector<8x1xf32> to vector<8x16xf32>
    %913 = arith.mulf %912, %900 : vector<8x16xf32>
    %cst_335 = arith.constant 1.000000e+00 : f32
    %914 = vector.broadcast %cst_335 : f32 to vector<8x1xf32>
    %915 = arith.subf %914, %870 : vector<8x1xf32>
    %c0_336 = arith.constant 0 : index
    %c0_337 = arith.constant 0 : index
    %916 = vector.load %arg17[%c0_336, %c0_337] : memref<8x16xf32, #tpu.memory_space<vmem>>, vector<8x16xf32>
    %917 = vector.broadcast %915 : vector<8x1xf32> to vector<8x16xf32>
    %918 = arith.mulf %917, %916 : vector<8x16xf32>
    %919 = arith.addf %913, %918 : vector<8x16xf32>
    %c0_338 = arith.constant 0 : index
    %c0_339 = arith.constant 0 : index
    %920 = vector.load %arg17[%c0_338, %c0_339] : memref<8x16xf32, #tpu.memory_space<vmem>>, vector<8x16xf32>
    tpu.vector_store %arg17[%c0_338, %c0_339], %919 {strides = array<i32>} : memref<8x16xf32, #tpu.memory_space<vmem>>, vector<8x16xf32>,
    %921 = vector.broadcast %870 : vector<8x1xf32> to vector<8x16xf32>
    %922 = arith.mulf %902, %921 : vector<8x16xf32>
    %923 = arith.truncf %922 : vector<8x16xf32> to vector<8x16xbf16>
    %c0_340 = arith.constant 0 : index
    %924 = arith.index_cast %865 : i32 to index
    %c0_341 = arith.constant 0 : index
    %925 = vector.load %arg11[%c0_340, %924, %c0_341] : memref<1x64x16xbf16, #tpu.memory_space<vmem>>, vector<1x8x16xbf16>
    %926 = vector.shape_cast %925 : vector<1x8x16xbf16> to vector<8x16xbf16>
    %927 = vector.shape_cast %923 : vector<8x16xbf16> to vector<1x8x16xbf16>
    tpu.vector_store %arg11[%c0_340, %924, %c0_341], %927 {strides = array<i32>} : memref<1x64x16xbf16, #tpu.memory_space<vmem>>, vector<1x8x16xbf16>,
    %c7_i32_342 = arith.constant 7 : i32
    %c8_i32_343 = arith.constant 8 : i32
    %928 = arith.muli %c7_i32_342, %c8_i32_343 : i32
    %929 = tpu.assume_multiple %928, 8 : i32
    %930 = arith.addi %22, %c7_i32_342 : i32
    %931 = vector.broadcast %930 : i32 to vector<8x1xi32>
    %932 = arith.cmpi slt, %931, %21 : vector<8x1xi32>
    %933 = arith.extui %932 : vector<8x1xi1> to vector<8x1xi32>
    %934 = arith.sitofp %933 : vector<8x1xi32> to vector<8x1xf32>
    %935 = arith.index_cast %929 : i32 to index
    %c0_344 = arith.constant 0 : index
    %936 = vector.load %arg12[%935, %c0_344] : memref<64x64xf32, #tpu.memory_space<vmem>>, vector<8x64xf32>
    %c0_345 = arith.constant 0 : index
    %c0_346 = arith.constant 0 : index
    %937 = vector.load %arg14[%c0_345, %c0_346] : memref<8x16xf32, #tpu.memory_space<vmem>>, vector<8x16xf32>
    %938 = arith.truncf %937 : vector<8x16xf32> to vector<8x16xbf16>
    %cst_347 = arith.constant dense<0.000000e+00> : vector<8x64xf32>
    %939 = tpu.matmul %938, %19, %cst_347 {dimension_numbers = #tpu.dot_dimension_numbers<[1], [0], [0], [1], [0, 0, 1, 1], [], []>} : vector<8x16xbf16>, vector<16x64xbf16>, vector<8x64xf32> -> vector<8x64xf32>
    %940 = arith.addf %936, %939 : vector<8x64xf32>
    %c0_348 = arith.constant 0 : index
    %c0_349 = arith.constant 0 : index
    %941 = vector.load %arg15[%c0_348, %c0_349] : memref<8x16xf32, #tpu.memory_space<vmem>>, vector<8x16xf32>
    %942 = vector.extract_strided_slice %940 {offsets = [0, 0], sizes = [8, 16], strides = [1, 1]} : vector<8x64xf32> to vector<8x16xf32>
    %943 = arith.negf %942 : vector<8x16xf32>
    %944 = math.exp %943 : vector<8x16xf32>
    %cst_350 = arith.constant 1.000000e+00 : f32
    %945 = vector.broadcast %cst_350 : f32 to vector<8x16xf32>
    %946 = arith.addf %945, %944 : vector<8x16xf32>
    %947 = arith.divf %945, %946 : vector<8x16xf32>
    %948 = vector.extract_strided_slice %940 {offsets = [0, 16], sizes = [8, 16], strides = [1, 1]} : vector<8x64xf32> to vector<8x16xf32>
    %949 = arith.negf %948 : vector<8x16xf32>
    %950 = math.exp %949 : vector<8x16xf32>
    %cst_351 = arith.constant 1.000000e+00 : f32
    %951 = vector.broadcast %cst_351 : f32 to vector<8x16xf32>
    %952 = arith.addf %951, %950 : vector<8x16xf32>
    %953 = arith.divf %951, %952 : vector<8x16xf32>
    %954 = vector.extract_strided_slice %940 {offsets = [0, 32], sizes = [8, 16], strides = [1, 1]} : vector<8x64xf32> to vector<8x16xf32>
    %955 = math.tanh %954 : vector<8x16xf32>
    %956 = vector.extract_strided_slice %940 {offsets = [0, 48], sizes = [8, 16], strides = [1, 1]} : vector<8x64xf32> to vector<8x16xf32>
    %957 = arith.negf %956 : vector<8x16xf32>
    %958 = math.exp %957 : vector<8x16xf32>
    %cst_352 = arith.constant 1.000000e+00 : f32
    %959 = vector.broadcast %cst_352 : f32 to vector<8x16xf32>
    %960 = arith.addf %959, %958 : vector<8x16xf32>
    %961 = arith.divf %959, %960 : vector<8x16xf32>
    %962 = arith.mulf %953, %941 : vector<8x16xf32>
    %963 = arith.mulf %947, %955 : vector<8x16xf32>
    %964 = arith.addf %962, %963 : vector<8x16xf32>
    %965 = math.tanh %964 : vector<8x16xf32>
    %966 = arith.mulf %961, %965 : vector<8x16xf32>
    %967 = vector.broadcast %934 : vector<8x1xf32> to vector<8x16xf32>
    %968 = arith.mulf %967, %966 : vector<8x16xf32>
    %cst_353 = arith.constant 1.000000e+00 : f32
    %969 = vector.broadcast %cst_353 : f32 to vector<8x1xf32>
    %970 = arith.subf %969, %934 : vector<8x1xf32>
    %c0_354 = arith.constant 0 : index
    %c0_355 = arith.constant 0 : index
    %971 = vector.load %arg14[%c0_354, %c0_355] : memref<8x16xf32, #tpu.memory_space<vmem>>, vector<8x16xf32>
    %972 = vector.broadcast %970 : vector<8x1xf32> to vector<8x16xf32>
    %973 = arith.mulf %972, %971 : vector<8x16xf32>
    %974 = arith.addf %968, %973 : vector<8x16xf32>
    %c0_356 = arith.constant 0 : index
    %c0_357 = arith.constant 0 : index
    %975 = vector.load %arg14[%c0_356, %c0_357] : memref<8x16xf32, #tpu.memory_space<vmem>>, vector<8x16xf32>
    tpu.vector_store %arg14[%c0_356, %c0_357], %974 {strides = array<i32>} : memref<8x16xf32, #tpu.memory_space<vmem>>, vector<8x16xf32>,
    %976 = vector.broadcast %934 : vector<8x1xf32> to vector<8x16xf32>
    %977 = arith.mulf %976, %964 : vector<8x16xf32>
    %cst_358 = arith.constant 1.000000e+00 : f32
    %978 = vector.broadcast %cst_358 : f32 to vector<8x1xf32>
    %979 = arith.subf %978, %934 : vector<8x1xf32>
    %c0_359 = arith.constant 0 : index
    %c0_360 = arith.constant 0 : index
    %980 = vector.load %arg15[%c0_359, %c0_360] : memref<8x16xf32, #tpu.memory_space<vmem>>, vector<8x16xf32>
    %981 = vector.broadcast %979 : vector<8x1xf32> to vector<8x16xf32>
    %982 = arith.mulf %981, %980 : vector<8x16xf32>
    %983 = arith.addf %977, %982 : vector<8x16xf32>
    %c0_361 = arith.constant 0 : index
    %c0_362 = arith.constant 0 : index
    %984 = vector.load %arg15[%c0_361, %c0_362] : memref<8x16xf32, #tpu.memory_space<vmem>>, vector<8x16xf32>
    tpu.vector_store %arg15[%c0_361, %c0_362], %983 {strides = array<i32>} : memref<8x16xf32, #tpu.memory_space<vmem>>, vector<8x16xf32>,
    %985 = vector.broadcast %934 : vector<8x1xf32> to vector<8x16xf32>
    %986 = arith.mulf %966, %985 : vector<8x16xf32>
    %987 = arith.truncf %986 : vector<8x16xf32> to vector<8x16xbf16>
    %c0_363 = arith.constant 0 : index
    %988 = arith.index_cast %929 : i32 to index
    %c0_364 = arith.constant 0 : index
    %989 = vector.load %arg10[%c0_363, %988, %c0_364] : memref<1x64x16xbf16, #tpu.memory_space<vmem>>, vector<1x8x16xbf16>
    %990 = vector.shape_cast %989 : vector<1x8x16xbf16> to vector<8x16xbf16>
    %991 = vector.shape_cast %987 : vector<8x16xbf16> to vector<1x8x16xbf16>
    tpu.vector_store %arg10[%c0_363, %988, %c0_364], %991 {strides = array<i32>} : memref<1x64x16xbf16, #tpu.memory_space<vmem>>, vector<1x8x16xbf16>,
    %c7_i32_365 = arith.constant 7 : i32
    %992 = arith.subi %c7_i32_365, %c7_i32_342 : i32
    %c8_i32_366 = arith.constant 8 : i32
    %993 = arith.muli %992, %c8_i32_366 : i32
    %994 = tpu.assume_multiple %993, 8 : i32
    %995 = arith.addi %24, %992 : i32
    %996 = vector.broadcast %995 : i32 to vector<8x1xi32>
    %997 = arith.cmpi slt, %996, %21 : vector<8x1xi32>
    %998 = arith.extui %997 : vector<8x1xi1> to vector<8x1xi32>
    %999 = arith.sitofp %998 : vector<8x1xi32> to vector<8x1xf32>
    %1000 = arith.index_cast %994 : i32 to index
    %c0_367 = arith.constant 0 : index
    %1001 = vector.load %arg13[%1000, %c0_367] : memref<64x64xf32, #tpu.memory_space<vmem>>, vector<8x64xf32>
    %c0_368 = arith.constant 0 : index
    %c0_369 = arith.constant 0 : index
    %1002 = vector.load %arg16[%c0_368, %c0_369] : memref<8x16xf32, #tpu.memory_space<vmem>>, vector<8x16xf32>
    %1003 = arith.truncf %1002 : vector<8x16xf32> to vector<8x16xbf16>
    %cst_370 = arith.constant dense<0.000000e+00> : vector<8x64xf32>
    %1004 = tpu.matmul %1003, %20, %cst_370 {dimension_numbers = #tpu.dot_dimension_numbers<[1], [0], [0], [1], [0, 0, 1, 1], [], []>} : vector<8x16xbf16>, vector<16x64xbf16>, vector<8x64xf32> -> vector<8x64xf32>
    %1005 = arith.addf %1001, %1004 : vector<8x64xf32>
    %c0_371 = arith.constant 0 : index
    %c0_372 = arith.constant 0 : index
    %1006 = vector.load %arg17[%c0_371, %c0_372] : memref<8x16xf32, #tpu.memory_space<vmem>>, vector<8x16xf32>
    %1007 = vector.extract_strided_slice %1005 {offsets = [0, 0], sizes = [8, 16], strides = [1, 1]} : vector<8x64xf32> to vector<8x16xf32>
    %1008 = arith.negf %1007 : vector<8x16xf32>
    %1009 = math.exp %1008 : vector<8x16xf32>
    %cst_373 = arith.constant 1.000000e+00 : f32
    %1010 = vector.broadcast %cst_373 : f32 to vector<8x16xf32>
    %1011 = arith.addf %1010, %1009 : vector<8x16xf32>
    %1012 = arith.divf %1010, %1011 : vector<8x16xf32>
    %1013 = vector.extract_strided_slice %1005 {offsets = [0, 16], sizes = [8, 16], strides = [1, 1]} : vector<8x64xf32> to vector<8x16xf32>
    %1014 = arith.negf %1013 : vector<8x16xf32>
    %1015 = math.exp %1014 : vector<8x16xf32>
    %cst_374 = arith.constant 1.000000e+00 : f32
    %1016 = vector.broadcast %cst_374 : f32 to vector<8x16xf32>
    %1017 = arith.addf %1016, %1015 : vector<8x16xf32>
    %1018 = arith.divf %1016, %1017 : vector<8x16xf32>
    %1019 = vector.extract_strided_slice %1005 {offsets = [0, 32], sizes = [8, 16], strides = [1, 1]} : vector<8x64xf32> to vector<8x16xf32>
    %1020 = math.tanh %1019 : vector<8x16xf32>
    %1021 = vector.extract_strided_slice %1005 {offsets = [0, 48], sizes = [8, 16], strides = [1, 1]} : vector<8x64xf32> to vector<8x16xf32>
    %1022 = arith.negf %1021 : vector<8x16xf32>
    %1023 = math.exp %1022 : vector<8x16xf32>
    %cst_375 = arith.constant 1.000000e+00 : f32
    %1024 = vector.broadcast %cst_375 : f32 to vector<8x16xf32>
    %1025 = arith.addf %1024, %1023 : vector<8x16xf32>
    %1026 = arith.divf %1024, %1025 : vector<8x16xf32>
    %1027 = arith.mulf %1018, %1006 : vector<8x16xf32>
    %1028 = arith.mulf %1012, %1020 : vector<8x16xf32>
    %1029 = arith.addf %1027, %1028 : vector<8x16xf32>
    %1030 = math.tanh %1029 : vector<8x16xf32>
    %1031 = arith.mulf %1026, %1030 : vector<8x16xf32>
    %1032 = vector.broadcast %999 : vector<8x1xf32> to vector<8x16xf32>
    %1033 = arith.mulf %1032, %1031 : vector<8x16xf32>
    %cst_376 = arith.constant 1.000000e+00 : f32
    %1034 = vector.broadcast %cst_376 : f32 to vector<8x1xf32>
    %1035 = arith.subf %1034, %999 : vector<8x1xf32>
    %c0_377 = arith.constant 0 : index
    %c0_378 = arith.constant 0 : index
    %1036 = vector.load %arg16[%c0_377, %c0_378] : memref<8x16xf32, #tpu.memory_space<vmem>>, vector<8x16xf32>
    %1037 = vector.broadcast %1035 : vector<8x1xf32> to vector<8x16xf32>
    %1038 = arith.mulf %1037, %1036 : vector<8x16xf32>
    %1039 = arith.addf %1033, %1038 : vector<8x16xf32>
    %c0_379 = arith.constant 0 : index
    %c0_380 = arith.constant 0 : index
    %1040 = vector.load %arg16[%c0_379, %c0_380] : memref<8x16xf32, #tpu.memory_space<vmem>>, vector<8x16xf32>
    tpu.vector_store %arg16[%c0_379, %c0_380], %1039 {strides = array<i32>} : memref<8x16xf32, #tpu.memory_space<vmem>>, vector<8x16xf32>,
    %1041 = vector.broadcast %999 : vector<8x1xf32> to vector<8x16xf32>
    %1042 = arith.mulf %1041, %1029 : vector<8x16xf32>
    %cst_381 = arith.constant 1.000000e+00 : f32
    %1043 = vector.broadcast %cst_381 : f32 to vector<8x1xf32>
    %1044 = arith.subf %1043, %999 : vector<8x1xf32>
    %c0_382 = arith.constant 0 : index
    %c0_383 = arith.constant 0 : index
    %1045 = vector.load %arg17[%c0_382, %c0_383] : memref<8x16xf32, #tpu.memory_space<vmem>>, vector<8x16xf32>
    %1046 = vector.broadcast %1044 : vector<8x1xf32> to vector<8x16xf32>
    %1047 = arith.mulf %1046, %1045 : vector<8x16xf32>
    %1048 = arith.addf %1042, %1047 : vector<8x16xf32>
    %c0_384 = arith.constant 0 : index
    %c0_385 = arith.constant 0 : index
    %1049 = vector.load %arg17[%c0_384, %c0_385] : memref<8x16xf32, #tpu.memory_space<vmem>>, vector<8x16xf32>
    tpu.vector_store %arg17[%c0_384, %c0_385], %1048 {strides = array<i32>} : memref<8x16xf32, #tpu.memory_space<vmem>>, vector<8x16xf32>,
    %1050 = vector.broadcast %999 : vector<8x1xf32> to vector<8x16xf32>
    %1051 = arith.mulf %1031, %1050 : vector<8x16xf32>
    %1052 = arith.truncf %1051 : vector<8x16xf32> to vector<8x16xbf16>
    %c0_386 = arith.constant 0 : index
    %1053 = arith.index_cast %994 : i32 to index
    %c0_387 = arith.constant 0 : index
    %1054 = vector.load %arg11[%c0_386, %1053, %c0_387] : memref<1x64x16xbf16, #tpu.memory_space<vmem>>, vector<1x8x16xbf16>
    %1055 = vector.shape_cast %1054 : vector<1x8x16xbf16> to vector<8x16xbf16>
    %1056 = vector.shape_cast %1052 : vector<8x16xbf16> to vector<1x8x16xbf16>
    tpu.vector_store %arg11[%c0_386, %1053, %c0_387], %1056 {strides = array<i32>} : memref<1x64x16xbf16, #tpu.memory_space<vmem>>, vector<1x8x16xbf16>,
    %c8_i32_388 = arith.constant 8 : i32
    return
  }
  func.func @transform_0(%arg0: i32) -> (i32, i32, i32) {
    %c0_i32 = arith.constant 0 : i32
    %c0_i32_0 = arith.constant 0 : i32
    %c0_i32_1 = arith.constant 0 : i32
    return %arg0, %c0_i32, %c0_i32_0 : i32, i32, i32
  }
  func.func @transform_1(%arg0: i32) -> (i32, i32, i32) {
    %c0_i32 = arith.constant 0 : i32
    %0 = arith.subi %c0_i32, %arg0 : i32
    %c0_i32_0 = arith.constant 0 : i32
    %c0_i32_1 = arith.constant 0 : i32
    %c0_i32_2 = arith.constant 0 : i32
    return %0, %c0_i32_0, %c0_i32_1 : i32, i32, i32
  }
  func.func @transform_2(%arg0: i32) -> (i32, i32) {
    %c0_i32 = arith.constant 0 : i32
    %c0_i32_0 = arith.constant 0 : i32
    %c0_i32_1 = arith.constant 0 : i32
    return %c0_i32, %c0_i32_0 : i32, i32
  }
  func.func @transform_3(%arg0: i32) -> (i32, i32) {
    %c0_i32 = arith.constant 0 : i32
    %c0_i32_0 = arith.constant 0 : i32
    %c0_i32_1 = arith.constant 0 : i32
    return %c0_i32, %c0_i32_0 : i32, i32
  }
  func.func @transform_4(%arg0: i32) -> (i32, i32) {
    %c0_i32 = arith.constant 0 : i32
    %c0_i32_0 = arith.constant 0 : i32
    %c0_i32_1 = arith.constant 0 : i32
    return %c0_i32, %c0_i32_0 : i32, i32
  }
  func.func @transform_5(%arg0: i32) -> (i32, i32) {
    %c0_i32 = arith.constant 0 : i32
    %c0_i32_0 = arith.constant 0 : i32
    %c0_i32_1 = arith.constant 0 : i32
    return %c0_i32, %c0_i32_0 : i32, i32
  }
  func.func @transform_6(%arg0: i32) -> (i32, i32) {
    %c0_i32 = arith.constant 0 : i32
    %c0_i32_0 = arith.constant 0 : i32
    %c0_i32_1 = arith.constant 0 : i32
    return %c0_i32, %c0_i32_0 : i32, i32
  }
  func.func @transform_7(%arg0: i32) -> (i32, i32) {
    %c0_i32 = arith.constant 0 : i32
    %c0_i32_0 = arith.constant 0 : i32
    %c0_i32_1 = arith.constant 0 : i32
    return %c0_i32, %c0_i32_0 : i32, i32
  }
  func.func @transform_8(%arg0: i32) -> (i32, i32) {
    %c0_i32 = arith.constant 0 : i32
    %c0_i32_0 = arith.constant 0 : i32
    %c0_i32_1 = arith.constant 0 : i32
    return %c0_i32, %c0_i32_0 : i32, i32
  }
  func.func @transform_9(%arg0: i32) -> (i32, i32, i32) {
    %c0_i32 = arith.constant 0 : i32
    %c0_i32_0 = arith.constant 0 : i32
    %c0_i32_1 = arith.constant 0 : i32
    return %arg0, %c0_i32, %c0_i32_0 : i32, i32, i32
  }
  func.func @transform_10(%arg0: i32) -> (i32, i32, i32) {
    %c0_i32 = arith.constant 0 : i32
    %0 = arith.subi %c0_i32, %arg0 : i32
    %c0_i32_0 = arith.constant 0 : i32
    %c0_i32_1 = arith.constant 0 : i32
    %c0_i32_2 = arith.constant 0 : i32
    return %0, %c0_i32_0, %c0_i32_1 : i32, i32, i32
  }
}

</mosaic_0001>

<llo_original>
// kernel: bilstm_forward.3
$region0: #{bilstm_forward.3}
  #allocation0 [shape = 'u32[]', space=smem, size = 0x4, offset = 0x4, fixed_abs, tag = 'smem constant byte address 0x4 - core index']
  #allocation1 [shape = 'u32[144,128]{1,0:T(1,128)}', space=vmem, size = 0x12000, scoped, tag = 'internal scratch']
  %s0 = inlined_call_operand.vmem [shape: bf16[64,32], index: 0, kind: input, shape index: {}]
  %s1 = inlined_call_operand.vmem [shape: bf16[32,128], index: 1, kind: input, shape index: {}]
  %s2 = inlined_call_operand.vmem [shape: f32[1,128], index: 2, kind: input, shape index: {}]
  %s3 = inlined_call_operand.vmem [shape: f32[64,128], index: 3, kind: output, shape index: {}]
  %s4 = sld [smem:[#allocation0]]
  $region22: #{bilstm_forward.3} parent=0
    _
  %s6 = ssub.s32 1, %s4
  %s7 = scalar_select 0, %s6, %s4
  // Predicated region
  $region2: #{bilstm_forward.3} parent=0 // pred_check
    _
  $region3: #{bilstm_forward.3} parent=0 // pred_check_branch
    %9 = sbr.rel (0) target = $region5
  $region4: #{bilstm_forward.3} parent=0 // pred_region
    _
  $region5: #{bilstm_forward.3} parent=0 // pred_fallthru
    _
  // Predicated region
  $region6: #{bilstm_forward.3} parent=0 // pred_check
    _
  $region7: #{bilstm_forward.3} parent=0 // pred_check_branch
    %11 = sbr.rel (0) target = $region9
  $region8: #{bilstm_forward.3} parent=0 // pred_region
    _
  $region9: #{bilstm_forward.3} parent=0 // pred_fallthru
    _
  // Predicated region
  $region10: #{bilstm_forward.3} parent=0 // pred_check
    _
  $region11: #{bilstm_forward.3} parent=0 // pred_check_branch
    %13 = sbr.rel (0) target = $region13
  $region12: #{bilstm_forward.3} parent=0 // pred_region
    _
  $region13: #{bilstm_forward.3} parent=0 // pred_fallthru
    _
  %v15 = vld [vmem:[%s0] sm:$0xf]
  %v16 = vld [vmem:[%s0 + $0x4] sm:$0xf]
  %v17 = vld [vmem:[%s0 + $0x8] sm:$0xf]
  %v18 = vld [vmem:[%s0 + $0xc] sm:$0xf]
  %v19 = vld [vmem:[%s0 + $0x10] sm:$0xf]
  %v20 = vld [vmem:[%s0 + $0x14] sm:$0xf]
  %v21 = vld [vmem:[%s0 + $0x18] sm:$0xf]
  %v22 = vld [vmem:[%s0 + $0x1c] sm:$0xf]
  %v23 = vld [vmem:[%s1] sm:$0xf]
  %v24 = vld [vmem:[%s1 + $0x4] sm:$0xf]
  %v25 = vld [vmem:[%s1 + $0x8] sm:$0xf]
  %v26 = vld [vmem:[%s1 + $0xc] sm:$0xf]
  %v27 = vld [vmem:[%s2] sm:$0x1]
  %v29 = vlaneseq
  %v30 = vshrl.u32 %v29, 7
  %v31 = vsub.s32 0, %v30
  %v32 = vrot.slane %v27, %v31
  %v42 = vunpack.c.l.b16 %v15
  %v43 = vunpack.c.l.b16 %v16
  %v44 = vunpack.c.l.b16 %v17
  %v45 = vunpack.c.l.b16 %v18
  %v46 = vunpack.c.l.b16 %v19
  %v47 = vunpack.c.l.b16 %v20
  %v48 = vunpack.c.l.b16 %v21
  %v49 = vunpack.c.l.b16 %v22
  %v50 = vpack.c.b16 %v43, %v42
  %v51 = vpack.c.b16 %v45, %v44
  %v52 = vpack.c.b16 %v47, %v46
  %v53 = vpack.c.b16 %v49, %v48
  %v58 = vunpack.c.l.b16 %v23
  %v59 = vunpack.c.l.b16 %v24
  %v60 = vunpack.c.l.b16 %v25
  %v61 = vunpack.c.l.b16 %v26
  %v62 = vpack.c.b16 %v59, %v58
  %v63 = vpack.c.b16 %v61, %v60
  %vm66 = vcmask 261120
  %v68 = vsel %vm66, %v50, 0
  %v71 = vsel %vm66, %v51, 0
  %v74 = vsel %vm66, %v52, 0
  %v77 = vsel %vm66, %v53, 0
  %79 = vmatprep.subr.bf16.mxu0 0
  %80 = vmatpush1.bf16.msra.mxu0 0
  %81 = vmatprep.subr.bf16.mxu0 0
  %82 = vmatpush1.bf16.msra.mxu0 0
  %83 = vmatprep.subr.bf16.mxu0 0
  %84 = vmatpush1.bf16.msra.mxu0 0
  %85 = vmatprep.subr.bf16.mxu0 0
  %86 = vmatpush1.bf16.msra.mxu0 0
  %87 = vmatprep.subr.bf16.mxu0 0
  %88 = vmatpush1.bf16.msra.mxu0 0
  %89 = vmatprep.subr.bf16.mxu0 0
  %90 = vmatpush1.bf16.msra.mxu0 0
  %91 = vmatprep.subr.bf16.mxu0 0
  %92 = vmatpush1.bf16.msra.mxu0 %v63
  %93 = vmatprep.subr.bf16.mxu0 0
  %94 = vmatpush1.bf16.msra.mxu0 %v62
  %95 = vmatprep.subr.bf16.mxu0 0
  %96 = vmatpush2.bf16.msra.mxu0 0
  %97 = vmatprep.subr.bf16.mxu0 0
  %98 = vmatpush2.bf16.msra.mxu0 0
  %99 = vmatprep.subr.bf16.mxu0 0
  %100 = vmatpush2.bf16.msra.mxu0 0
  %101 = vmatprep.subr.bf16.mxu0 0
  %102 = vmatpush2.bf16.msra.mxu0 0
  %103 = vmatprep.subr.bf16.mxu0 0
  %104 = vmatpush2.bf16.msra.mxu0 0
  %105 = vmatprep.subr.bf16.mxu0 0
  %106 = vmatpush2.bf16.msra.mxu0 0
  %107 = vmatprep.subr.bf16.mxu0 0
  %108 = vmatpush2.bf16.msra.mxu0 0
  %109 = vmatprep.subr.bf16.mxu0 0
  %110 = vmatpush2.bf16.msra.mxu0 0
  %111 = vmatprep.mubr.bf16.mxu0 0
  %112 = vmatmul.mubr.bf16.gmra.mxu0 %v68
  %v113 = vpop.f32.mrf.mxu0
  %v114 = vadd.f32 %v32, %v113
  %v115 = vpop.f32.mrf.mxu0
  %v116 = vpop.f32.mrf.mxu0
  %v117 = vadd.f32 %v32, %v116
  %v118 = vpop.f32.mrf.mxu0
  %119 = vmatprep.mubr.bf16.mxu0 0
  %120 = vmatmul.mubr.bf16.gmra.mxu0 %v71
  %v121 = vpop.f32.mrf.mxu0
  %v122 = vadd.f32 %v32, %v121
  %v123 = vpop.f32.mrf.mxu0
  %v124 = vpop.f32.mrf.mxu0
  %v125 = vadd.f32 %v32, %v124
  %v126 = vpop.f32.mrf.mxu0
  %127 = vmatprep.mubr.bf16.mxu0 0
  %128 = vmatmul.mubr.bf16.gmra.mxu0 %v74
  %v129 = vpop.f32.mrf.mxu0
  %v130 = vadd.f32 %v32, %v129
  %v131 = vpop.f32.mrf.mxu0
  %v132 = vpop.f32.mrf.mxu0
  %v133 = vadd.f32 %v32, %v132
  %v134 = vpop.f32.mrf.mxu0
  %135 = vmatprep.mubr.bf16.mxu0 0
  %136 = vmatmul.mubr.bf16.gmra.mxu0 %v77
  %v137 = vpop.f32.mrf.mxu0
  %v138 = vadd.f32 %v32, %v137
  %v139 = vpop.f32.mrf.mxu0
  %v140 = vpop.f32.mrf.mxu0
  %v141 = vadd.f32 %v32, %v140
  %v142 = vpop.f32.mrf.mxu0
  %143 = vdwg.mxu0
  %144 = vst [vmem:[%s3] sm:$0xff] %v114
  %145 = vst [vmem:[%s3 + $0x8] sm:$0xff] %v117
  %146 = vst [vmem:[%s3 + $0x10] sm:$0xff] %v122
  %147 = vst [vmem:[%s3 + $0x18] sm:$0xff] %v125
  %148 = vst [vmem:[%s3 + $0x20] sm:$0xff] %v130
  %149 = vst [vmem:[%s3 + $0x28] sm:$0xff] %v133
  %150 = vst [vmem:[%s3 + $0x30] sm:$0xff] %v138
  %151 = vst [vmem:[%s3 + $0x38] sm:$0xff] %v141
  // Predicated region
  $region14: #{bilstm_forward.3} parent=0 // pred_check
    _
  $region15: #{bilstm_forward.3} parent=0 // pred_check_branch
    %153 = sbr.rel (0) target = $region17
  $region16: #{bilstm_forward.3} parent=0 // pred_region
    _
  $region17: #{bilstm_forward.3} parent=0 // pred_fallthru
    _
  // Predicated region
  $region18: #{bilstm_forward.3} parent=0 // pred_check
    _
  $region19: #{bilstm_forward.3} parent=0 // pred_check_branch
    %155 = sbr.rel (0) target = $region21
  $region20: #{bilstm_forward.3} parent=0 // pred_region
    _
  $region21: #{bilstm_forward.3} parent=0 // pred_fallthru
    _

// kernel: bilstm_forward.2
$region0: #{bilstm_forward.2}
  #allocation0 [shape = 'u32[]', space=smem, size = 0x4, offset = 0x4, fixed_abs, tag = 'smem constant byte address 0x4 - core index']
  #allocation1 [shape = 'u32[144,128]{1,0:T(1,128)}', space=vmem, size = 0x12000, scoped, tag = 'internal scratch']
  #allocation2 [shape = 'f32[64,64]{1,0:T(8,128)}', space=vmem, size = 0x8000, scoped, tag = 'scratch operand']
  #allocation3 [shape = 'f32[64,64]{1,0:T(8,128)}', space=vmem, size = 0x8000, scoped, tag = 'scratch operand']
  #allocation4 [shape = 'f32[8,16]{1,0:T(8,128)}', space=vmem, size = 0x1000, scoped, tag = 'scratch operand']
  #allocation5 [shape = 'f32[8,16]{1,0:T(8,128)}', space=vmem, size = 0x1000, scoped, tag = 'scratch operand']
  #allocation6 [shape = 'f32[8,16]{1,0:T(8,128)}', space=vmem, size = 0x1000, scoped, tag = 'scratch operand']
  #allocation7 [shape = 'f32[8,16]{1,0:T(8,128)}', space=vmem, size = 0x1000, scoped, tag = 'scratch operand']
  %s0 = inlined_call_operand.vmem [shape: bf16[1,64,32], index: 0, kind: input, shape index: {}, may-alias: {0,1}]
  %s1 = inlined_call_operand.vmem [shape: bf16[1,64,32], index: 1, kind: input, shape index: {}, may-alias: {0,1}]
  %s2 = inlined_call_operand.vmem [shape: s32[8,1], index: 2, kind: input, shape index: {}]
  %s3 = inlined_call_operand.vmem [shape: bf16[32,64], index: 3, kind: input, shape index: {}]
  %s4 = inlined_call_operand.vmem [shape: bf16[32,64], index: 4, kind: input, shape index: {}]
  %s5 = inlined_call_operand.vmem [shape: bf16[16,64], index: 5, kind: input, shape index: {}]
  %s6 = inlined_call_operand.vmem [shape: bf16[16,64], index: 6, kind: input, shape index: {}]
  %s7 = inlined_call_operand.vmem [shape: f32[1,64], index: 7, kind: input, shape index: {}]
  %s8 = inlined_call_operand.vmem [shape: f32[1,64], index: 8, kind: input, shape index: {}]
  %s9 = inlined_call_operand.vmem [shape: bf16[1,64,16], index: 9, kind: output, shape index: {0}]
  %s10 = inlined_call_operand.vmem [shape: bf16[1,64,16], index: 10, kind: output, shape index: {1}]
  %11 = xla_tuple %s9, %s10
  %s12 = sld [smem:[#allocation0]]
  $region58: #{bilstm_forward.2} parent=0
    _
  %s14 = ssub.s32 1, %s12
  %s15 = scalar_select 0, %s14, %s12
  // Predicated region
  $region2: #{bilstm_forward.2} parent=0 // pred_check
    _
  $region3: #{bilstm_forward.2} parent=0 // pred_check_branch
    %17 = sbr.rel (0) target = $region5
  $region4: #{bilstm_forward.2} parent=0 // pred_region
    _
  $region5: #{bilstm_forward.2} parent=0 // pred_fallthru
    _
  // Predicated region
  $region6: #{bilstm_forward.2} parent=0 // pred_check
    _
  $region7: #{bilstm_forward.2} parent=0 // pred_check_branch
    %19 = sbr.rel (0) target = $region9
  $region8: #{bilstm_forward.2} parent=0 // pred_region
    %s20 = ssub.s32 0, 0
    %p21 = scmp.lt.s32.totalorder %s20, 0
    %s22 = scalar_select %p21, %s20, 0
    %s23 = smul.addr %s22, 8
    %s24 = smul.addr %s23, 4
    %s25 = scalar_lea.vmem %s1, %s24
    %s26 = ssub.s32 0, 0
  $region9: #{bilstm_forward.2} parent=0 // pred_fallthru
    _
  // Predicated region
  $region10: #{bilstm_forward.2} parent=0 // pred_check
    _
  $region11: #{bilstm_forward.2} parent=0 // pred_check_branch
    %28 = sbr.rel (0) target = $region13
  $region12: #{bilstm_forward.2} parent=0 // pred_region
    _
  $region13: #{bilstm_forward.2} parent=0 // pred_fallthru
    _
  // Predicated region
  $region14: #{bilstm_forward.2} parent=0 // pred_check
    _
  $region15: #{bilstm_forward.2} parent=0 // pred_check_branch
    %30 = sbr.rel (0) target = $region17
  $region16: #{bilstm_forward.2} parent=0 // pred_region
    _
  $region17: #{bilstm_forward.2} parent=0 // pred_fallthru
    _
  // Predicated region
  $region18: #{bilstm_forward.2} parent=0 // pred_check
    _
  $region19: #{bilstm_forward.2} parent=0 // pred_check_branch
    %32 = sbr.rel (0) target = $region21
  $region20: #{bilstm_forward.2} parent=0 // pred_region
    _
  $region21: #{bilstm_forward.2} parent=0 // pred_fallthru
    _
  // Predicated region
  $region22: #{bilstm_forward.2} parent=0 // pred_check
    _
  $region23: #{bilstm_forward.2} parent=0 // pred_check_branch
    %34 = sbr.rel (0) target = $region25
  $region24: #{bilstm_forward.2} parent=0 // pred_region
    _
  $region25: #{bilstm_forward.2} parent=0 // pred_fallthru
    _
  // Predicated region
  $region26: #{bilstm_forward.2} parent=0 // pred_check
    _
  $region27: #{bilstm_forward.2} parent=0 // pred_check_branch
    %36 = sbr.rel (0) target = $region29
  $region28: #{bilstm_forward.2} parent=0 // pred_region
    _
  $region29: #{bilstm_forward.2} parent=0 // pred_fallthru
    _
  // Predicated region
  $region30: #{bilstm_forward.2} parent=0 // pred_check
    _
  $region31: #{bilstm_forward.2} parent=0 // pred_check_branch
    %38 = sbr.rel (0) target = $region33
  $region32: #{bilstm_forward.2} parent=0 // pred_region
    _
  $region33: #{bilstm_forward.2} parent=0 // pred_fallthru
    _
  // Predicated region
  $region34: #{bilstm_forward.2} parent=0 // pred_check
    _
  $region35: #{bilstm_forward.2} parent=0 // pred_check_branch
    %40 = sbr.rel (0) target = $region37
  $region36: #{bilstm_forward.2} parent=0 // pred_region
    _
  $region37: #{bilstm_forward.2} parent=0 // pred_fallthru
    _
  %s41 = ssub.s32 0, 0
  %p42 = scmp.lt.s32.totalorder %s41, 0
  %s43 = scalar_select %p42, %s41, 0
  %s44 = smul.addr %s43, 8
  %s45 = smul.addr %s44, 4
  %s46 = scalar_lea.vmem %s1, %s45
  %s47 = ssub.s32 0, 0
  %p48 = scmp.lt.s32.totalorder %s47, 0
  %s49 = scalar_select %p48, %s47, 0
  %s50 = smul.addr %s49, 8
  %s51 = smul.addr %s50, 4
  %s52 = scalar_lea.vmem %s10, %s51
  %s53 = ssub.s32 0, 0
  %p54 = scmp.lt.s32.totalorder %s53, 0
  %s55 = scalar_select %p54, %s53, 0
  %s56 = smul.addr %s55, 8
  %s57 = smul.addr %s56, 4
  %s58 = scalar_lea.vmem %s1, %s57
  %s59 = ssub.s32 0, 0
  %s60 = ssub.s32 0, 0
  %p61 = scmp.lt.s32.totalorder %s60, 0
  %s62 = scalar_select %p61, %s60, 0
  %s63 = smul.addr %s62, 8
  %s64 = smul.addr %s63, 4
  %s65 = scalar_lea.vmem %s10, %s64
  %s66 = ssub.s32 0, 0
  %p68 = scmp.eq.s32.totalorder 0, 0
  // Predicated region
  $region38: #{bilstm_forward.2} parent=0 // pred_check
    %p69 = pneg %p68
  $region39: #{bilstm_forward.2} parent=0 // pred_check_branch
    %71 = sbr.rel (%p69) target = $region41
  $region40: #{bilstm_forward.2} parent=0 // pred_region
    %vm72 = vcmask 130048
    %73 = vst.msk [vmem:[#allocation4] sm:$0xff] %vm72, 0.0
    %74 = vst.msk [vmem:[#allocation5] sm:$0xff] %vm72, 0.0
    %75 = vst.msk [vmem:[#allocation6] sm:$0xff] %vm72, 0.0
    %76 = vst.msk [vmem:[#allocation7] sm:$0xff] %vm72, 0.0
  $region41: #{bilstm_forward.2} parent=0 // pred_fallthru
    _
  %v77 = vld [vmem:[%s0] sm:$0xf]
  %v78 = vld [vmem:[%s0 + $0x4] sm:$0xf]
  %v79 = vld [vmem:[%s0 + $0x8] sm:$0xf]
  %v80 = vld [vmem:[%s0 + $0xc] sm:$0xf]
  %v81 = vld [vmem:[%s0 + $0x10] sm:$0xf]
  %v82 = vld [vmem:[%s0 + $0x14] sm:$0xf]
  %v83 = vld [vmem:[%s0 + $0x18] sm:$0xf]
  %v84 = vld [vmem:[%s0 + $0x1c] sm:$0xf]
  %v85 = vld [vmem:[%s3] sm:$0xf]
  %v86 = vld [vmem:[%s3 + $0x4] sm:$0xf]
  %v87 = vld [vmem:[%s3 + $0x8] sm:$0xf]
  %v88 = vld [vmem:[%s3 + $0xc] sm:$0xf]
  %v89 = vld [vmem:[%s7] sm:$0x1]
  %v91 = vlaneseq
  %v92 = vshrl.u32 %v91, 7
  %v93 = vsub.s32 0, %v92
  %v94 = vrot.slane %v89, %v93
  %v104 = vunpack.c.l.b16 %v77
  %v105 = vunpack.c.l.b16 %v78
  %v106 = vunpack.c.l.b16 %v79
  %v107 = vunpack.c.l.b16 %v80
  %v108 = vunpack.c.l.b16 %v81
  %v109 = vunpack.c.l.b16 %v82
  %v110 = vunpack.c.l.b16 %v83
  %v111 = vunpack.c.l.b16 %v84
  %v112 = vpack.c.b16 %v105, %v104
  %v113 = vpack.c.b16 %v107, %v106
  %v114 = vpack.c.b16 %v109, %v108
  %v115 = vpack.c.b16 %v111, %v110
  %v120 = vunpack.c.l.b16 %v85
  %v121 = vunpack.c.l.b16 %v86
  %v122 = vunpack.c.l.b16 %v87
  %v123 = vunpack.c.l.b16 %v88
  %v124 = vpack.c.b16 %v121, %v120
  %v125 = vpack.c.b16 %v123, %v122
  %vm128 = vcmask 261120
  %v130 = vsel %vm128, %v112, 0
  %v133 = vsel %vm128, %v113, 0
  %v136 = vsel %vm128, %v114, 0
  %v139 = vsel %vm128, %v115, 0
  %141 = vmatprep.subr.bf16.mxu0 0
  %142 = vmatpush1.bf16.msra.mxu0 0
  %143 = vmatprep.subr.bf16.mxu0 0
  %144 = vmatpush1.bf16.msra.mxu0 0
  %145 = vmatprep.subr.bf16.mxu0 0
  %146 = vmatpush1.bf16.msra.mxu0 0
  %147 = vmatprep.subr.bf16.mxu0 0
  %148 = vmatpush1.bf16.msra.mxu0 0
  %149 = vmatprep.subr.bf16.mxu0 0
  %150 = vmatpush1.bf16.msra.mxu0 0
  %151 = vmatprep.subr.bf16.mxu0 0
  %152 = vmatpush1.bf16.msra.mxu0 0
  %153 = vmatprep.subr.bf16.mxu0 0
  %154 = vmatpush1.bf16.msra.mxu0 %v125
  %155 = vmatprep.subr.bf16.mxu0 0
  %156 = vmatpush1.bf16.msra.mxu0 %v124
  %157 = vmatprep.subr.bf16.mxu0 0
  %158 = vmatpush2.bf16.msra.mxu0 0
  %159 = vmatprep.subr.bf16.mxu0 0
  %160 = vmatpush2.bf16.msra.mxu0 0
  %161 = vmatprep.subr.bf16.mxu0 0
  %162 = vmatpush2.bf16.msra.mxu0 0
  %163 = vmatprep.subr.bf16.mxu0 0
  %164 = vmatpush2.bf16.msra.mxu0 0
  %165 = vmatprep.subr.bf16.mxu0 0
  %166 = vmatpush2.bf16.msra.mxu0 0
  %167 = vmatprep.subr.bf16.mxu0 0
  %168 = vmatpush2.bf16.msra.mxu0 0
  %169 = vmatprep.subr.bf16.mxu0 0
  %170 = vmatpush2.bf16.msra.mxu0 0
  %171 = vmatprep.subr.bf16.mxu0 0
  %172 = vmatpush2.bf16.msra.mxu0 0
  %173 = vmatprep.mubr.bf16.mxu0 0
  %174 = vmatmul.mubr.bf16.gmra.mxu0 %v130
  %v175 = vpop.f32.mrf.mxu0
  %v176 = vadd.f32 %v94, %v175
  %v177 = vpop.f32.mrf.mxu0
  %v178 = vpop.f32.mrf.mxu0
  %v179 = vadd.f32 %v94, %v178
  %v180 = vpop.f32.mrf.mxu0
  %181 = vmatprep.mubr.bf16.mxu0 0
  %182 = vmatmul.mubr.bf16.gmra.mxu0 %v133
  %v183 = vpop.f32.mrf.mxu0
  %v184 = vadd.f32 %v94, %v183
  %v185 = vpop.f32.mrf.mxu0
  %v186 = vpop.f32.mrf.mxu0
  %v187 = vadd.f32 %v94, %v186
  %v188 = vpop.f32.mrf.mxu0
  %189 = vmatprep.mubr.bf16.mxu0 0
  %190 = vmatmul.mubr.bf16.gmra.mxu0 %v136
  %v191 = vpop.f32.mrf.mxu0
  %v192 = vadd.f32 %v94, %v191
  %v193 = vpop.f32.mrf.mxu0
  %v194 = vpop.f32.mrf.mxu0
  %v195 = vadd.f32 %v94, %v194
  %v196 = vpop.f32.mrf.mxu0
  %197 = vmatprep.mubr.bf16.mxu0 0
  %198 = vmatmul.mubr.bf16.gmra.mxu0 %v139
  %v199 = vpop.f32.mrf.mxu0
  %v200 = vadd.f32 %v94, %v199
  %v201 = vpop.f32.mrf.mxu0
  %v202 = vpop.f32.mrf.mxu0
  %v203 = vadd.f32 %v94, %v202
  %v204 = vpop.f32.mrf.mxu0
  %205 = vdwg.mxu0
  %vm206 = vcmask 523264
  %207 = vst.msk [vmem:[#allocation2] sm:$0xff] %vm206, %v176
  %208 = vst.msk [vmem:[#allocation2 + $0x8] sm:$0xff] %vm206, %v179
  %209 = vst.msk [vmem:[#allocation2 + $0x10] sm:$0xff] %vm206, %v184
  %210 = vst.msk [vmem:[#allocation2 + $0x18] sm:$0xff] %vm206, %v187
  %211 = vst.msk [vmem:[#allocation2 + $0x20] sm:$0xff] %vm206, %v192
  %212 = vst.msk [vmem:[#allocation2 + $0x28] sm:$0xff] %vm206, %v195
  %213 = vst.msk [vmem:[#allocation2 + $0x30] sm:$0xff] %vm206, %v200
  %214 = vst.msk [vmem:[#allocation2 + $0x38] sm:$0xff] %vm206, %v203
  %v215 = vld [vmem:[%s58] sm:$0xf]
  %v216 = vld [vmem:[%s58 + $0x4] sm:$0xf]
  %v217 = vld [vmem:[%s58 + $0x8] sm:$0xf]
  %v218 = vld [vmem:[%s58 + $0xc] sm:$0xf]
  %v219 = vld [vmem:[%s58 + $0x10] sm:$0xf]
  %v220 = vld [vmem:[%s58 + $0x14] sm:$0xf]
  %v221 = vld [vmem:[%s58 + $0x18] sm:$0xf]
  %v222 = vld [vmem:[%s58 + $0x1c] sm:$0xf]
  %v223 = vld [vmem:[%s4] sm:$0xf]
  %v224 = vld [vmem:[%s4 + $0x4] sm:$0xf]
  %v225 = vld [vmem:[%s4 + $0x8] sm:$0xf]
  %v226 = vld [vmem:[%s4 + $0xc] sm:$0xf]
  %v227 = vld [vmem:[%s8] sm:$0x1]
  %v229 = vlaneseq
  %v230 = vshrl.u32 %v229, 7
  %v231 = vsub.s32 0, %v230
  %v232 = vrot.slane %v227, %v231
  %v242 = vunpack.c.l.b16 %v215
  %v243 = vunpack.c.l.b16 %v216
  %v244 = vunpack.c.l.b16 %v217
  %v245 = vunpack.c.l.b16 %v218
  %v246 = vunpack.c.l.b16 %v219
  %v247 = vunpack.c.l.b16 %v220
  %v248 = vunpack.c.l.b16 %v221
  %v249 = vunpack.c.l.b16 %v222
  %v250 = vpack.c.b16 %v243, %v242
  %v251 = vpack.c.b16 %v245, %v244
  %v252 = vpack.c.b16 %v247, %v246
  %v253 = vpack.c.b16 %v249, %v248
  %v258 = vunpack.c.l.b16 %v223
  %v259 = vunpack.c.l.b16 %v224
  %v260 = vunpack.c.l.b16 %v225
  %v261 = vunpack.c.l.b16 %v226
  %v262 = vpack.c.b16 %v259, %v258
  %v263 = vpack.c.b16 %v261, %v260
  %v267 = vsel %vm128, %v250, 0
  %v270 = vsel %vm128, %v251, 0
  %v273 = vsel %vm128, %v252, 0
  %v276 = vsel %vm128, %v253, 0
  %278 = vmatprep.subr.bf16.mxu0 0
  %279 = vmatpush1.bf16.msra.mxu0 0
  %280 = vmatprep.subr.bf16.mxu0 0
  %281 = vmatpush1.bf16.msra.mxu0 0
  %282 = vmatprep.subr.bf16.mxu0 0
  %283 = vmatpush1.bf16.msra.mxu0 0
  %284 = vmatprep.subr.bf16.mxu0 0
  %285 = vmatpush1.bf16.msra.mxu0 0
  %286 = vmatprep.subr.bf16.mxu0 0
  %287 = vmatpush1.bf16.msra.mxu0 0
  %288 = vmatprep.subr.bf16.mxu0 0
  %289 = vmatpush1.bf16.msra.mxu0 0
  %290 = vmatprep.subr.bf16.mxu0 0
  %291 = vmatpush1.bf16.msra.mxu0 %v263
  %292 = vmatprep.subr.bf16.mxu0 0
  %293 = vmatpush1.bf16.msra.mxu0 %v262
  %294 = vmatprep.subr.bf16.mxu0 0
  %295 = vmatpush2.bf16.msra.mxu0 0
  %296 = vmatprep.subr.bf16.mxu0 0
  %297 = vmatpush2.bf16.msra.mxu0 0
  %298 = vmatprep.subr.bf16.mxu0 0
  %299 = vmatpush2.bf16.msra.mxu0 0
  %300 = vmatprep.subr.bf16.mxu0 0
  %301 = vmatpush2.bf16.msra.mxu0 0
  %302 = vmatprep.subr.bf16.mxu0 0
  %303 = vmatpush2.bf16.msra.mxu0 0
  %304 = vmatprep.subr.bf16.mxu0 0
  %305 = vmatpush2.bf16.msra.mxu0 0
  %306 = vmatprep.subr.bf16.mxu0 0
  %307 = vmatpush2.bf16.msra.mxu0 0
  %308 = vmatprep.subr.bf16.mxu0 0
  %309 = vmatpush2.bf16.msra.mxu0 0
  %310 = vmatprep.mubr.bf16.mxu0 0
  %311 = vmatmul.mubr.bf16.gmra.mxu0 %v267
  %v312 = vpop.f32.mrf.mxu0
  %v313 = vadd.f32 %v232, %v312
  %v314 = vpop.f32.mrf.mxu0
  %v315 = vpop.f32.mrf.mxu0
  %v316 = vadd.f32 %v232, %v315
  %v317 = vpop.f32.mrf.mxu0
  %318 = vmatprep.mubr.bf16.mxu0 0
  %319 = vmatmul.mubr.bf16.gmra.mxu0 %v270
  %v320 = vpop.f32.mrf.mxu0
  %v321 = vadd.f32 %v232, %v320
  %v322 = vpop.f32.mrf.mxu0
  %v323 = vpop.f32.mrf.mxu0
  %v324 = vadd.f32 %v232, %v323
  %v325 = vpop.f32.mrf.mxu0
  %326 = vmatprep.mubr.bf16.mxu0 0
  %327 = vmatmul.mubr.bf16.gmra.mxu0 %v273
  %v328 = vpop.f32.mrf.mxu0
  %v329 = vadd.f32 %v232, %v328
  %v330 = vpop.f32.mrf.mxu0
  %v331 = vpop.f32.mrf.mxu0
  %v332 = vadd.f32 %v232, %v331
  %v333 = vpop.f32.mrf.mxu0
  %334 = vmatprep.mubr.bf16.mxu0 0
  %335 = vmatmul.mubr.bf16.gmra.mxu0 %v276
  %v336 = vpop.f32.mrf.mxu0
  %v337 = vadd.f32 %v232, %v336
  %v338 = vpop.f32.mrf.mxu0
  %v339 = vpop.f32.mrf.mxu0
  %v340 = vadd.f32 %v232, %v339
  %v341 = vpop.f32.mrf.mxu0
  %342 = vdwg.mxu0
  %343 = vst.msk [vmem:[#allocation3] sm:$0xff] %vm206, %v313
  %344 = vst.msk [vmem:[#allocation3 + $0x8] sm:$0xff] %vm206, %v316
  %345 = vst.msk [vmem:[#allocation3 + $0x10] sm:$0xff] %vm206, %v321
  %346 = vst.msk [vmem:[#allocation3 + $0x18] sm:$0xff] %vm206, %v324
  %347 = vst.msk [vmem:[#allocation3 + $0x20] sm:$0xff] %vm206, %v329
  %348 = vst.msk [vmem:[#allocation3 + $0x28] sm:$0xff] %vm206, %v332
  %349 = vst.msk [vmem:[#allocation3 + $0x30] sm:$0xff] %vm206, %v337
  %350 = vst.msk [vmem:[#allocation3 + $0x38] sm:$0xff] %vm206, %v340
  %v351 = vld [vmem:[%s5] sm:$0xf]
  %v352 = vld [vmem:[%s5 + $0x4] sm:$0xf]
  %v353 = vld [vmem:[%s6] sm:$0xf]
  %v354 = vld [vmem:[%s6 + $0x4] sm:$0xf]
  %v355 = vld [vmem:[%s2] sm:$0xff]
  %s356 = smul.u32 0, 8
  %s357 = ssub.s32 0, 0
  %s358 = smul.u32 %s357, 8
  %v359 = vstv %s356
  %vm360 = vcmp.lt.s32.totalorder %v359, %v355
  %v361 = vsel %vm360, 1, 0
  %v362 = vcvt.s32.f32 %v361
  %v363 = vld [vmem:[#allocation2] sm:$0xff]
  %v364 = vld [vmem:[#allocation4] sm:$0xff]
  %v365 = vpack.c.bf16 %v364, %v364
  %v368 = vunpack.c.l.b16 %v351
  %v369 = vunpack.c.l.b16 %v352
  %v370 = vpack.c.b16 %v369, %v368
  %vm372 = vcmask 130048
  %v374 = vsel %vm372, %v365, 0
  %376 = vmatprep.subr.bf16.mxu0 0
  %377 = vmatpush1.bf16.msra.mxu0 0
  %378 = vmatprep.subr.bf16.mxu0 0
  %379 = vmatpush1.bf16.msra.mxu0 0
  %380 = vmatprep.subr.bf16.mxu0 0
  %381 = vmatpush1.bf16.msra.mxu0 0
  %382 = vmatprep.subr.bf16.mxu0 0
  %383 = vmatpush1.bf16.msra.mxu0 0
  %384 = vmatprep.subr.bf16.mxu0 0
  %385 = vmatpush1.bf16.msra.mxu0 0
  %386 = vmatprep.subr.bf16.mxu0 0
  %387 = vmatpush1.bf16.msra.mxu0 0
  %388 = vmatprep.subr.bf16.mxu0 0
  %389 = vmatpush1.bf16.msra.mxu0 0
  %390 = vmatprep.subr.bf16.mxu0 0
  %391 = vmatpush1.bf16.msra.mxu0 %v370
  %392 = vmatprep.subr.bf16.mxu0 0
  %393 = vmatpush2.bf16.msra.mxu0 0
  %394 = vmatprep.subr.bf16.mxu0 0
  %395 = vmatpush2.bf16.msra.mxu0 0
  %396 = vmatprep.subr.bf16.mxu0 0
  %397 = vmatpush2.bf16.msra.mxu0 0
  %398 = vmatprep.subr.bf16.mxu0 0
  %399 = vmatpush2.bf16.msra.mxu0 0
  %400 = vmatprep.subr.bf16.mxu0 0
  %401 = vmatpush2.bf16.msra.mxu0 0
  %402 = vmatprep.subr.bf16.mxu0 0
  %403 = vmatpush2.bf16.msra.mxu0 0
  %404 = vmatprep.subr.bf16.mxu0 0
  %405 = vmatpush2.bf16.msra.mxu0 0
  %406 = vmatprep.subr.bf16.mxu0 0
  %407 = vmatpush2.bf16.msra.mxu0 0
  %408 = vmatprep.mubr.bf16.mxu0 0
  %409 = vmatmul.mubr.bf16.gmra.mxu0 %v374
  %v410 = vpop.f32.mrf.mxu0
  %v411 = vadd.f32 0.0, %v410
  %v412 = vpop.f32.mrf.mxu0
  %v413 = vpop.f32.mrf.mxu0
  %v414 = vpop.f32.mrf.mxu0
  %415 = vdwg.mxu0
  %v416 = vadd.f32 %v363, %v411
  %v417 = vld [vmem:[#allocation5] sm:$0xff]
  %v418 = vxor.u32 %v416, 2147483648
  %v419 = vmul.f32 %v418, 1.442695
  %v420 = vpow.pop %v419
  %v421 = vadd.f32 %v420, 1.0
  %v422 = vrcp.pop %v421
  %v423 = vmul.f32 1.0, %v422
  %v424 = vtanh.pop %v416
  %426 = vrot.lane.b32.xlu0 %v417, 16
  %v427 = vpop.permute.xlu0 %426
  %v429 = vmul.f32 %v423, %v427
  %431 = vrot.lane.b32.xlu0 %v424, 96
  %v432 = vpop.permute.xlu0 %431
  %v434 = vmul.f32 %v423, %v432
  %436 = vrot.lane.b32.xlu0 %v434, 16
  %v437 = vpop.permute.xlu0 %436
  %v439 = vadd.f32 %v429, %v437
  %v440 = vtanh.pop %v439
  %442 = vrot.lane.b32.xlu0 %v440, 32
  %v443 = vpop.permute.xlu0 %442
  %v445 = vmul.f32 %v423, %v443
  %447 = vset.pattern.permute.xlu0 0
  %448 = vperm.xlu0 %447, %v362
  %v449 = vpop.permute.xlu0 %448
  %v451 = vmul.f32 %v449, %v445
  %v452 = vsub.f32 1.0, %v362
  %454 = vset.pattern.permute.xlu0 0
  %455 = vperm.xlu0 %454, %v452
  %v456 = vpop.permute.xlu0 %455
  %v458 = vmul.f32 %v456, %v364
  %460 = vrot.lane.b32.xlu0 %v458, 48
  %v461 = vpop.permute.xlu0 %460
  %v463 = vadd.f32 %v451, %v461
  %465 = vrot.lane.b32.xlu0 %v463, 80
  %v466 = vpop.permute.xlu0 %465
  %468 = vst.msk [vmem:[#allocation4] sm:$0xff] %vm372, %v466
  %v469 = vmul.f32 %v449, %v439
  %v470 = vld [vmem:[#allocation5] sm:$0xff]
  %v471 = vmul.f32 %v456, %v470
  %473 = vrot.lane.b32.xlu0 %v471, 16
  %v474 = vpop.permute.xlu0 %473
  %v476 = vadd.f32 %v469, %v474
  %478 = vrot.lane.b32.xlu0 %v476, 112
  %v479 = vpop.permute.xlu0 %478
  %481 = vst.msk [vmem:[#allocation5] sm:$0xff] %vm372, %v479
  %v482 = vpack.c.bf16 %v451, %v451
  %v484 = vunpack.c.l.b16 %v482
  %v485 = vpack.c.b16 %v484, %v484
  %486 = vrot.lane.b32.xlu0 %v485, 80
  %v487 = vpop.permute.xlu0 %486
  %vm489 = vcmask 125952
  %490 = vst.msk [vmem:[%s9] sm:$0xf] %vm489, %v487
  %s491 = sadd.s32 %s358, 7
  %v492 = vstv %s491
  %vm493 = vcmp.lt.s32.totalorder %v492, %v355
  %v494 = vsel %vm493, 1, 0
  %v495 = vcvt.s32.f32 %v494
  %s496 = scalar_lea.vmem [#allocation3], 56
  %v497 = vld [vmem:[%s496] sm:$0xff]
  %v498 = vld [vmem:[#allocation6] sm:$0xff]
  %v499 = vpack.c.bf16 %v498, %v498
  %v502 = vunpack.c.l.b16 %v353
  %v503 = vunpack.c.l.b16 %v354
  %v504 = vpack.c.b16 %v503, %v502
  %v507 = vsel %vm372, %v499, 0
  %509 = vmatprep.subr.bf16.mxu0 0
  %510 = vmatpush1.bf16.msra.mxu0 0
  %511 = vmatprep.subr.bf16.mxu0 0
  %512 = vmatpush1.bf16.msra.mxu0 0
  %513 = vmatprep.subr.bf16.mxu0 0
  %514 = vmatpush1.bf16.msra.mxu0 0
  %515 = vmatprep.subr.bf16.mxu0 0
  %516 = vmatpush1.bf16.msra.mxu0 0
  %517 = vmatprep.subr.bf16.mxu0 0
  %518 = vmatpush1.bf16.msra.mxu0 0
  %519 = vmatprep.subr.bf16.mxu0 0
  %520 = vmatpush1.bf16.msra.mxu0 0
  %521 = vmatprep.subr.bf16.mxu0 0
  %522 = vmatpush1.bf16.msra.mxu0 0
  %523 = vmatprep.subr.bf16.mxu0 0
  %524 = vmatpush1.bf16.msra.mxu0 %v504
  %525 = vmatprep.subr.bf16.mxu0 0
  %526 = vmatpush2.bf16.msra.mxu0 0
  %527 = vmatprep.subr.bf16.mxu0 0
  %528 = vmatpush2.bf16.msra.mxu0 0
  %529 = vmatprep.subr.bf16.mxu0 0
  %530 = vmatpush2.bf16.msra.mxu0 0
  %531 = vmatprep.subr.bf16.mxu0 0
  %532 = vmatpush2.bf16.msra.mxu0 0
  %533 = vmatprep.subr.bf16.mxu0 0
  %534 = vmatpush2.bf16.msra.mxu0 0
  %535 = vmatprep.subr.bf16.mxu0 0
  %536 = vmatpush2.bf16.msra.mxu0 0
  %537 = vmatprep.subr.bf16.mxu0 0
  %538 = vmatpush2.bf16.msra.mxu0 0
  %539 = vmatprep.subr.bf16.mxu0 0
  %540 = vmatpush2.bf16.msra.mxu0 0
  %541 = vmatprep.mubr.bf16.mxu0 0
  %542 = vmatmul.mubr.bf16.gmra.mxu0 %v507
  %v543 = vpop.f32.mrf.mxu0
  %v544 = vadd.f32 0.0, %v543
  %v545 = vpop.f32.mrf.mxu0
  %v546 = vpop.f32.mrf.mxu0
  %v547 = vpop.f32.mrf.mxu0
  %548 = vdwg.mxu0
  %v549 = vadd.f32 %v497, %v544
  %v550 = vld [vmem:[#allocation7] sm:$0xff]
  %v551 = vxor.u32 %v549, 2147483648
  %v552 = vmul.f32 %v551, 1.442695
  %v553 = vpow.pop %v552
  %v554 = vadd.f32 %v553, 1.0
  %v555 = vrcp.pop %v554
  %v556 = vmul.f32 1.0, %v555
  %v557 = vtanh.pop %v549
  %559 = vrot.lane.b32.xlu0 %v550, 16
  %v560 = vpop.permute.xlu0 %559
  %v562 = vmul.f32 %v556, %v560
  %564 = vrot.lane.b32.xlu0 %v557, 96
  %v565 = vpop.permute.xlu0 %564
  %v567 = vmul.f32 %v556, %v565
  %569 = vrot.lane.b32.xlu0 %v567, 16
  %v570 = vpop.permute.xlu0 %569
  %v572 = vadd.f32 %v562, %v570
  %v573 = vtanh.pop %v572
  %575 = vrot.lane.b32.xlu0 %v573, 32
  %v576 = vpop.permute.xlu0 %575
  %v578 = vmul.f32 %v556, %v576
  %580 = vset.pattern.permute.xlu0 0
  %581 = vperm.xlu0 %580, %v495
  %v582 = vpop.permute.xlu0 %581
  %v584 = vmul.f32 %v582, %v578
  %v585 = vsub.f32 1.0, %v495
  %587 = vset.pattern.permute.xlu0 0
  %588 = vperm.xlu0 %587, %v585
  %v589 = vpop.permute.xlu0 %588
  %v591 = vmul.f32 %v589, %v498
  %593 = vrot.lane.b32.xlu0 %v591, 48
  %v594 = vpop.permute.xlu0 %593
  %v596 = vadd.f32 %v584, %v594
  %598 = vrot.lane.b32.xlu0 %v596, 80
  %v599 = vpop.permute.xlu0 %598
  %601 = vst.msk [vmem:[#allocation6] sm:$0xff] %vm372, %v599
  %v602 = vmul.f32 %v582, %v572
  %v603 = vld [vmem:[#allocation7] sm:$0xff]
  %v604 = vmul.f32 %v589, %v603
  %606 = vrot.lane.b32.xlu0 %v604, 16
  %v607 = vpop.permute.xlu0 %606
  %v609 = vadd.f32 %v602, %v607
  %611 = vrot.lane.b32.xlu0 %v609, 112
  %v612 = vpop.permute.xlu0 %611
  %614 = vst.msk [vmem:[#allocation7] sm:$0xff] %vm372, %v612
  %v615 = vpack.c.bf16 %v584, %v584
  %v617 = vunpack.c.l.b16 %v615
  %v618 = vpack.c.b16 %v617, %v617
  %619 = vrot.lane.b32.xlu0 %v618, 80
  %v620 = vpop.permute.xlu0 %619
  %s622 = scalar_lea.vmem %s65, 28
  %623 = vst.msk [vmem:[%s622] sm:$0xf] %vm489, %v620
  %s624 = sadd.s32 %s356, 1
  %v625 = vstv %s624
  %vm626 = vcmp.lt.s32.totalorder %v625, %v355
  %v627 = vsel %vm626, 1, 0
  %v628 = vcvt.s32.f32 %v627
  %s629 = scalar_lea.vmem [#allocation2], 8
  %v630 = vld [vmem:[%s629] sm:$0xff]
  %v631 = vld [vmem:[#allocation4] sm:$0xff]
  %v632 = vpack.c.bf16 %v631, %v631
  %v634 = vsel %vm372, %v632, 0
  %636 = vmatprep.subr.bf16.mxu0 0
  %637 = vmatpush1.bf16.msra.mxu0 0
  %638 = vmatprep.subr.bf16.mxu0 0
  %639 = vmatpush1.bf16.msra.mxu0 0
  %640 = vmatprep.subr.bf16.mxu0 0
  %641 = vmatpush1.bf16.msra.mxu0 0
  %642 = vmatprep.subr.bf16.mxu0 0
  %643 = vmatpush1.bf16.msra.mxu0 0
  %644 = vmatprep.subr.bf16.mxu0 0
  %645 = vmatpush1.bf16.msra.mxu0 0
  %646 = vmatprep.subr.bf16.mxu0 0
  %647 = vmatpush1.bf16.msra.mxu0 0
  %648 = vmatprep.subr.bf16.mxu0 0
  %649 = vmatpush1.bf16.msra.mxu0 0
  %650 = vmatprep.subr.bf16.mxu0 0
  %651 = vmatpush1.bf16.msra.mxu0 %v370
  %652 = vmatprep.subr.bf16.mxu0 0
  %653 = vmatpush2.bf16.msra.mxu0 0
  %654 = vmatprep.subr.bf16.mxu0 0
  %655 = vmatpush2.bf16.msra.mxu0 0
  %656 = vmatprep.subr.bf16.mxu0 0
  %657 = vmatpush2.bf16.msra.mxu0 0
  %658 = vmatprep.subr.bf16.mxu0 0
  %659 = vmatpush2.bf16.msra.mxu0 0
  %660 = vmatprep.subr.bf16.mxu0 0
  %661 = vmatpush2.bf16.msra.mxu0 0
  %662 = vmatprep.subr.bf16.mxu0 0
  %663 = vmatpush2.bf16.msra.mxu0 0
  %664 = vmatprep.subr.bf16.mxu0 0
  %665 = vmatpush2.bf16.msra.mxu0 0
  %666 = vmatprep.subr.bf16.mxu0 0
  %667 = vmatpush2.bf16.msra.mxu0 0
  %668 = vmatprep.mubr.bf16.mxu0 0
  %669 = vmatmul.mubr.bf16.gmra.mxu0 %v634
  %v670 = vpop.f32.mrf.mxu0
  %v671 = vadd.f32 0.0, %v670
  %v672 = vpop.f32.mrf.mxu0
  %v673 = vpop.f32.mrf.mxu0
  %v674 = vpop.f32.mrf.mxu0
  %675 = vdwg.mxu0
  %v676 = vadd.f32 %v630, %v671
  %v677 = vld [vmem:[#allocation5] sm:$0xff]
  %v678 = vxor.u32 %v676, 2147483648
  %v679 = vmul.f32 %v678, 1.442695
  %v680 = vpow.pop %v679
  %v681 = vadd.f32 %v680, 1.0
  %v682 = vrcp.pop %v681
  %v683 = vmul.f32 1.0, %v682
  %v684 = vtanh.pop %v676
  %686 = vrot.lane.b32.xlu0 %v677, 16
  %v687 = vpop.permute.xlu0 %686
  %v689 = vmul.f32 %v683, %v687
  %691 = vrot.lane.b32.xlu0 %v684, 96
  %v692 = vpop.permute.xlu0 %691
  %v694 = vmul.f32 %v683, %v692
  %696 = vrot.lane.b32.xlu0 %v694, 16
  %v697 = vpop.permute.xlu0 %696
  %v699 = vadd.f32 %v689, %v697
  %v700 = vtanh.pop %v699
  %702 = vrot.lane.b32.xlu0 %v700, 32
  %v703 = vpop.permute.xlu0 %702
  %v705 = vmul.f32 %v683, %v703
  %707 = vset.pattern.permute.xlu0 0
  %708 = vperm.xlu0 %707, %v628
  %v709 = vpop.permute.xlu0 %708
  %v711 = vmul.f32 %v709, %v705
  %v712 = vsub.f32 1.0, %v628
  %714 = vset.pattern.permute.xlu0 0
  %715 = vperm.xlu0 %714, %v712
  %v716 = vpop.permute.xlu0 %715
  %v718 = vmul.f32 %v716, %v631
  %720 = vrot.lane.b32.xlu0 %v718, 48
  %v721 = vpop.permute.xlu0 %720
  %v723 = vadd.f32 %v711, %v721
  %725 = vrot.lane.b32.xlu0 %v723, 80
  %v726 = vpop.permute.xlu0 %725
  %728 = vst.msk [vmem:[#allocation4] sm:$0xff] %vm372, %v726
  %v729 = vmul.f32 %v709, %v699
  %v730 = vld [vmem:[#allocation5] sm:$0xff]
  %v731 = vmul.f32 %v716, %v730
  %733 = vrot.lane.b32.xlu0 %v731, 16
  %v734 = vpop.permute.xlu0 %733
  %v736 = vadd.f32 %v729, %v734
  %738 = vrot.lane.b32.xlu0 %v736, 112
  %v739 = vpop.permute.xlu0 %738
  %741 = vst.msk [vmem:[#allocation5] sm:$0xff] %vm372, %v739
  %v742 = vpack.c.bf16 %v711, %v711
  %v744 = vunpack.c.l.b16 %v742
  %v745 = vpack.c.b16 %v744, %v744
  %746 = vrot.lane.b32.xlu0 %v745, 80
  %v747 = vpop.permute.xlu0 %746
  %s749 = scalar_lea.vmem %s9, 4
  %750 = vst.msk [vmem:[%s749] sm:$0xf] %vm489, %v747
  %s751 = sadd.s32 %s358, 6
  %v752 = vstv %s751
  %vm753 = vcmp.lt.s32.totalorder %v752, %v355
  %v754 = vsel %vm753, 1, 0
  %v755 = vcvt.s32.f32 %v754
  %s756 = scalar_lea.vmem [#allocation3], 48
  %v757 = vld [vmem:[%s756] sm:$0xff]
  %v758 = vld [vmem:[#allocation6] sm:$0xff]
  %v759 = vpack.c.bf16 %v758, %v758
  %v761 = vsel %vm372, %v759, 0
  %763 = vmatprep.subr.bf16.mxu0 0
  %764 = vmatpush1.bf16.msra.mxu0 0
  %765 = vmatprep.subr.bf16.mxu0 0
  %766 = vmatpush1.bf16.msra.mxu0 0
  %767 = vmatprep.subr.bf16.mxu0 0
  %768 = vmatpush1.bf16.msra.mxu0 0
  %769 = vmatprep.subr.bf16.mxu0 0
  %770 = vmatpush1.bf16.msra.mxu0 0
  %771 = vmatprep.subr.bf16.mxu0 0
  %772 = vmatpush1.bf16.msra.mxu0 0
  %773 = vmatprep.subr.bf16.mxu0 0
  %774 = vmatpush1.bf16.msra.mxu0 0
  %775 = vmatprep.subr.bf16.mxu0 0
  %776 = vmatpush1.bf16.msra.mxu0 0
  %777 = vmatprep.subr.bf16.mxu0 0
  %778 = vmatpush1.bf16.msra.mxu0 %v504
  %779 = vmatprep.subr.bf16.mxu0 0
  %780 = vmatpush2.bf16.msra.mxu0 0
  %781 = vmatprep.subr.bf16.mxu0 0
  %782 = vmatpush2.bf16.msra.mxu0 0
  %783 = vmatprep.subr.bf16.mxu0 0
  %784 = vmatpush2.bf16.msra.mxu0 0
  %785 = vmatprep.subr.bf16.mxu0 0
  %786 = vmatpush2.bf16.msra.mxu0 0
  %787 = vmatprep.subr.bf16.mxu0 0
  %788 = vmatpush2.bf16.msra.mxu0 0
  %789 = vmatprep.subr.bf16.mxu0 0
  %790 = vmatpush2.bf16.msra.mxu0 0
  %791 = vmatprep.subr.bf16.mxu0 0
  %792 = vmatpush2.bf16.msra.mxu0 0
  %793 = vmatprep.subr.bf16.mxu0 0
  %794 = vmatpush2.bf16.msra.mxu0 0
  %795 = vmatprep.mubr.bf16.mxu0 0
  %796 = vmatmul.mubr.bf16.gmra.mxu0 %v761
  %v797 = vpop.f32.mrf.mxu0
  %v798 = vadd.f32 0.0, %v797
  %v799 = vpop.f32.mrf.mxu0
  %v800 = vpop.f32.mrf.mxu0
  %v801 = vpop.f32.mrf.mxu0
  %802 = vdwg.mxu0
  %v803 = vadd.f32 %v757, %v798
  %v804 = vld [vmem:[#allocation7] sm:$0xff]
  %v805 = vxor.u32 %v803, 2147483648
  %v806 = vmul.f32 %v805, 1.442695
  %v807 = vpow.pop %v806
  %v808 = vadd.f32 %v807, 1.0
  %v809 = vrcp.pop %v808
  %v810 = vmul.f32 1.0, %v809
  %v811 = vtanh.pop %v803
  %813 = vrot.lane.b32.xlu0 %v804, 16
  %v814 = vpop.permute.xlu0 %813
  %v816 = vmul.f32 %v810, %v814
  %818 = vrot.lane.b32.xlu0 %v811, 96
  %v819 = vpop.permute.xlu0 %818
  %v821 = vmul.f32 %v810, %v819
  %823 = vrot.lane.b32.xlu0 %v821, 16
  %v824 = vpop.permute.xlu0 %823
  %v826 = vadd.f32 %v816, %v824
  %v827 = vtanh.pop %v826
  %829 = vrot.lane.b32.xlu0 %v827, 32
  %v830 = vpop.permute.xlu0 %829
  %v832 = vmul.f32 %v810, %v830
  %834 = vset.pattern.permute.xlu0 0
  %835 = vperm.xlu0 %834, %v755
  %v836 = vpop.permute.xlu0 %835
  %v838 = vmul.f32 %v836, %v832
  %v839 = vsub.f32 1.0, %v755
  %841 = vset.pattern.permute.xlu0 0
  %842 = vperm.xlu0 %841, %v839
  %v843 = vpop.permute.xlu0 %842
  %v845 = vmul.f32 %v843, %v758
  %847 = vrot.lane.b32.xlu0 %v845, 48
  %v848 = vpop.permute.xlu0 %847
  %v850 = vadd.f32 %v838, %v848
  %852 = vrot.lane.b32.xlu0 %v850, 80
  %v853 = vpop.permute.xlu0 %852
  %855 = vst.msk [vmem:[#allocation6] sm:$0xff] %vm372, %v853
  %v856 = vmul.f32 %v836, %v826
  %v857 = vld [vmem:[#allocation7] sm:$0xff]
  %v858 = vmul.f32 %v843, %v857
  %860 = vrot.lane.b32.xlu0 %v858, 16
  %v861 = vpop.permute.xlu0 %860
  %v863 = vadd.f32 %v856, %v861
  %865 = vrot.lane.b32.xlu0 %v863, 112
  %v866 = vpop.permute.xlu0 %865
  %868 = vst.msk [vmem:[#allocation7] sm:$0xff] %vm372, %v866
  %v869 = vpack.c.bf16 %v838, %v838
  %v871 = vunpack.c.l.b16 %v869
  %v872 = vpack.c.b16 %v871, %v871
  %873 = vrot.lane.b32.xlu0 %v872, 80
  %v874 = vpop.permute.xlu0 %873
  %s876 = scalar_lea.vmem %s65, 24
  %877 = vst.msk [vmem:[%s876] sm:$0xf] %vm489, %v874
  %s878 = sadd.s32 %s356, 2
  %v879 = vstv %s878
  %vm880 = vcmp.lt.s32.totalorder %v879, %v355
  %v881 = vsel %vm880, 1, 0
  %v882 = vcvt.s32.f32 %v881
  %s883 = scalar_lea.vmem [#allocation2], 16
  %v884 = vld [vmem:[%s883] sm:$0xff]
  %v885 = vld [vmem:[#allocation4] sm:$0xff]
  %v886 = vpack.c.bf16 %v885, %v885
  %v888 = vsel %vm372, %v886, 0
  %890 = vmatprep.subr.bf16.mxu0 0
  %891 = vmatpush1.bf16.msra.mxu0 0
  %892 = vmatprep.subr.bf16.mxu0 0
  %893 = vmatpush1.bf16.msra.mxu0 0
  %894 = vmatprep.subr.bf16.mxu0 0
  %895 = vmatpush1.bf16.msra.mxu0 0
  %896 = vmatprep.subr.bf16.mxu0 0
  %897 = vmatpush1.bf16.msra.mxu0 0
  %898 = vmatprep.subr.bf16.mxu0 0
  %899 = vmatpush1.bf16.msra.mxu0 0
  %900 = vmatprep.subr.bf16.mxu0 0
  %901 = vmatpush1.bf16.msra.mxu0 0
  %902 = vmatprep.subr.bf16.mxu0 0
  %903 = vmatpush1.bf16.msra.mxu0 0
  %904 = vmatprep.subr.bf16.mxu0 0
  %905 = vmatpush1.bf16.msra.mxu0 %v370
  %906 = vmatprep.subr.bf16.mxu0 0
  %907 = vmatpush2.bf16.msra.mxu0 0
  %908 = vmatprep.subr.bf16.mxu0 0
  %909 = vmatpush2.bf16.msra.mxu0 0
  %910 = vmatprep.subr.bf16.mxu0 0
  %911 = vmatpush2.bf16.msra.mxu0 0
  %912 = vmatprep.subr.bf16.mxu0 0
  %913 = vmatpush2.bf16.msra.mxu0 0
  %914 = vmatprep.subr.bf16.mxu0 0
  %915 = vmatpush2.bf16.msra.mxu0 0
  %916 = vmatprep.subr.bf16.mxu0 0
  %917 = vmatpush2.bf16.msra.mxu0 0
  %918 = vmatprep.subr.bf16.mxu0 0
  %919 = vmatpush2.bf16.msra.mxu0 0
  %920 = vmatprep.subr.bf16.mxu0 0
  %921 = vmatpush2.bf16.msra.mxu0 0
  %922 = vmatprep.mubr.bf16.mxu0 0
  %923 = vmatmul.mubr.bf16.gmra.mxu0 %v888
  %v924 = vpop.f32.mrf.mxu0
  %v925 = vadd.f32 0.0, %v924
  %v926 = vpop.f32.mrf.mxu0
  %v927 = vpop.f32.mrf.mxu0
  %v928 = vpop.f32.mrf.mxu0
  %929 = vdwg.mxu0
  %v930 = vadd.f32 %v884, %v925
  %v931 = vld [vmem:[#allocation5] sm:$0xff]
  %v932 = vxor.u32 %v930, 2147483648
  %v933 = vmul.f32 %v932, 1.442695
  %v934 = vpow.pop %v933
  %v935 = vadd.f32 %v934, 1.0
  %v936 = vrcp.pop %v935
  %v937 = vmul.f32 1.0, %v936
  %v938 = vtanh.pop %v930
  %940 = vrot.lane.b32.xlu0 %v931, 16
  %v941 = vpop.permute.xlu0 %940
  %v943 = vmul.f32 %v937, %v941
  %945 = vrot.lane.b32.xlu0 %v938, 96
  %v946 = vpop.permute.xlu0 %945
  %v948 = vmul.f32 %v937, %v946
  %950 = vrot.lane.b32.xlu0 %v948, 16
  %v951 = vpop.permute.xlu0 %950
  %v953 = vadd.f32 %v943, %v951
  %v954 = vtanh.pop %v953
  %956 = vrot.lane.b32.xlu0 %v954, 32
  %v957 = vpop.permute.xlu0 %956
  %v959 = vmul.f32 %v937, %v957
  %961 = vset.pattern.permute.xlu0 0
  %962 = vperm.xlu0 %961, %v882
  %v963 = vpop.permute.xlu0 %962
  %v965 = vmul.f32 %v963, %v959
  %v966 = vsub.f32 1.0, %v882
  %968 = vset.pattern.permute.xlu0 0
  %969 = vperm.xlu0 %968, %v966
  %v970 = vpop.permute.xlu0 %969
  %v972 = vmul.f32 %v970, %v885
  %974 = vrot.lane.b32.xlu0 %v972, 48
  %v975 = vpop.permute.xlu0 %974
  %v977 = vadd.f32 %v965, %v975
  %979 = vrot.lane.b32.xlu0 %v977, 80
  %v980 = vpop.permute.xlu0 %979
  %982 = vst.msk [vmem:[#allocation4] sm:$0xff] %vm372, %v980
  %v983 = vmul.f32 %v963, %v953
  %v984 = vld [vmem:[#allocation5] sm:$0xff]
  %v985 = vmul.f32 %v970, %v984
  %987 = vrot.lane.b32.xlu0 %v985, 16
  %v988 = vpop.permute.xlu0 %987
  %v990 = vadd.f32 %v983, %v988
  %992 = vrot.lane.b32.xlu0 %v990, 112
  %v993 = vpop.permute.xlu0 %992
  %995 = vst.msk [vmem:[#allocation5] sm:$0xff] %vm372, %v993
  %v996 = vpack.c.bf16 %v965, %v965
  %v998 = vunpack.c.l.b16 %v996
  %v999 = vpack.c.b16 %v998, %v998
  %1000 = vrot.lane.b32.xlu0 %v999, 80
  %v1001 = vpop.permute.xlu0 %1000
  %s1003 = scalar_lea.vmem %s9, 8
  %1004 = vst.msk [vmem:[%s1003] sm:$0xf] %vm489, %v1001
  %s1005 = sadd.s32 %s358, 5
  %v1006 = vstv %s1005
  %vm1007 = vcmp.lt.s32.totalorder %v1006, %v355
  %v1008 = vsel %vm1007, 1, 0
  %v1009 = vcvt.s32.f32 %v1008
  %s1010 = scalar_lea.vmem [#allocation3], 40
  %v1011 = vld [vmem:[%s1010] sm:$0xff]
  %v1012 = vld [vmem:[#allocation6] sm:$0xff]
  %v1013 = vpack.c.bf16 %v1012, %v1012
  %v1015 = vsel %vm372, %v1013, 0
  %1017 = vmatprep.subr.bf16.mxu0 0
  %1018 = vmatpush1.bf16.msra.mxu0 0
  %1019 = vmatprep.subr.bf16.mxu0 0
  %1020 = vmatpush1.bf16.msra.mxu0 0
  %1021 = vmatprep.subr.bf16.mxu0 0
  %1022 = vmatpush1.bf16.msra.mxu0 0
  %1023 = vmatprep.subr.bf16.mxu0 0
  %1024 = vmatpush1.bf16.msra.mxu0 0
  %1025 = vmatprep.subr.bf16.mxu0 0
  %1026 = vmatpush1.bf16.msra.mxu0 0
  %1027 = vmatprep.subr.bf16.mxu0 0
  %1028 = vmatpush1.bf16.msra.mxu0 0
  %1029 = vmatprep.subr.bf16.mxu0 0
  %1030 = vmatpush1.bf16.msra.mxu0 0
  %1031 = vmatprep.subr.bf16.mxu0 0
  %1032 = vmatpush1.bf16.msra.mxu0 %v504
  %1033 = vmatprep.subr.bf16.mxu0 0
  %1034 = vmatpush2.bf16.msra.mxu0 0
  %1035 = vmatprep.subr.bf16.mxu0 0
  %1036 = vmatpush2.bf16.msra.mxu0 0
  %1037 = vmatprep.subr.bf16.mxu0 0
  %1038 = vmatpush2.bf16.msra.mxu0 0
  %1039 = vmatprep.subr.bf16.mxu0 0
  %1040 = vmatpush2.bf16.msra.mxu0 0
  %1041 = vmatprep.subr.bf16.mxu0 0
  %1042 = vmatpush2.bf16.msra.mxu0 0
  %1043 = vmatprep.subr.bf16.mxu0 0
  %1044 = vmatpush2.bf16.msra.mxu0 0
  %1045 = vmatprep.subr.bf16.mxu0 0
  %1046 = vmatpush2.bf16.msra.mxu0 0
  %1047 = vmatprep.subr.bf16.mxu0 0
  %1048 = vmatpush2.bf16.msra.mxu0 0
  %1049 = vmatprep.mubr.bf16.mxu0 0
  %1050 = vmatmul.mubr.bf16.gmra.mxu0 %v1015
  %v1051 = vpop.f32.mrf.mxu0
  %v1052 = vadd.f32 0.0, %v1051
  %v1053 = vpop.f32.mrf.mxu0
  %v1054 = vpop.f32.mrf.mxu0
  %v1055 = vpop.f32.mrf.mxu0
  %1056 = vdwg.mxu0
  %v1057 = vadd.f32 %v1011, %v1052
  %v1058 = vld [vmem:[#allocation7] sm:$0xff]
  %v1059 = vxor.u32 %v1057, 2147483648
  %v1060 = vmul.f32 %v1059, 1.442695
  %v1061 = vpow.pop %v1060
  %v1062 = vadd.f32 %v1061, 1.0
  %v1063 = vrcp.pop %v1062
  %v1064 = vmul.f32 1.0, %v1063
  %v1065 = vtanh.pop %v1057
  %1067 = vrot.lane.b32.xlu0 %v1058, 16
  %v1068 = vpop.permute.xlu0 %1067
  %v1070 = vmul.f32 %v1064, %v1068
  %1072 = vrot.lane.b32.xlu0 %v1065, 96
  %v1073 = vpop.permute.xlu0 %1072
  %v1075 = vmul.f32 %v1064, %v1073
  %1077 = vrot.lane.b32.xlu0 %v1075, 16
  %v1078 = vpop.permute.xlu0 %1077
  %v1080 = vadd.f32 %v1070, %v1078
  %v1081 = vtanh.pop %v1080
  %1083 = vrot.lane.b32.xlu0 %v1081, 32
  %v1084 = vpop.permute.xlu0 %1083
  %v1086 = vmul.f32 %v1064, %v1084
  %1088 = vset.pattern.permute.xlu0 0
  %1089 = vperm.xlu0 %1088, %v1009
  %v1090 = vpop.permute.xlu0 %1089
  %v1092 = vmul.f32 %v1090, %v1086
  %v1093 = vsub.f32 1.0, %v1009
  %1095 = vset.pattern.permute.xlu0 0
  %1096 = vperm.xlu0 %1095, %v1093
  %v1097 = vpop.permute.xlu0 %1096
  %v1099 = vmul.f32 %v1097, %v1012
  %1101 = vrot.lane.b32.xlu0 %v1099, 48
  %v1102 = vpop.permute.xlu0 %1101
  %v1104 = vadd.f32 %v1092, %v1102
  %1106 = vrot.lane.b32.xlu0 %v1104, 80
  %v1107 = vpop.permute.xlu0 %1106
  %1109 = vst.msk [vmem:[#allocation6] sm:$0xff] %vm372, %v1107
  %v1110 = vmul.f32 %v1090, %v1080
  %v1111 = vld [vmem:[#allocation7] sm:$0xff]
  %v1112 = vmul.f32 %v1097, %v1111
  %1114 = vrot.lane.b32.xlu0 %v1112, 16
  %v1115 = vpop.permute.xlu0 %1114
  %v1117 = vadd.f32 %v1110, %v1115
  %1119 = vrot.lane.b32.xlu0 %v1117, 112
  %v1120 = vpop.permute.xlu0 %1119
  %1122 = vst.msk [vmem:[#allocation7] sm:$0xff] %vm372, %v1120
  %v1123 = vpack.c.bf16 %v1092, %v1092
  %v1125 = vunpack.c.l.b16 %v1123
  %v1126 = vpack.c.b16 %v1125, %v1125
  %1127 = vrot.lane.b32.xlu0 %v1126, 80
  %v1128 = vpop.permute.xlu0 %1127
  %s1130 = scalar_lea.vmem %s65, 20
  %1131 = vst.msk [vmem:[%s1130] sm:$0xf] %vm489, %v1128
  %s1132 = sadd.s32 %s356, 3
  %v1133 = vstv %s1132
  %vm1134 = vcmp.lt.s32.totalorder %v1133, %v355
  %v1135 = vsel %vm1134, 1, 0
  %v1136 = vcvt.s32.f32 %v1135
  %s1137 = scalar_lea.vmem [#allocation2], 24
  %v1138 = vld [vmem:[%s1137] sm:$0xff]
  %v1139 = vld [vmem:[#allocation4] sm:$0xff]
  %v1140 = vpack.c.bf16 %v1139, %v1139
  %v1142 = vsel %vm372, %v1140, 0
  %1144 = vmatprep.subr.bf16.mxu0 0
  %1145 = vmatpush1.bf16.msra.mxu0 0
  %1146 = vmatprep.subr.bf16.mxu0 0
  %1147 = vmatpush1.bf16.msra.mxu0 0
  %1148 = vmatprep.subr.bf16.mxu0 0
  %1149 = vmatpush1.bf16.msra.mxu0 0
  %1150 = vmatprep.subr.bf16.mxu0 0
  %1151 = vmatpush1.bf16.msra.mxu0 0
  %1152 = vmatprep.subr.bf16.mxu0 0
  %1153 = vmatpush1.bf16.msra.mxu0 0
  %1154 = vmatprep.subr.bf16.mxu0 0
  %1155 = vmatpush1.bf16.msra.mxu0 0
  %1156 = vmatprep.subr.bf16.mxu0 0
  %1157 = vmatpush1.bf16.msra.mxu0 0
  %1158 = vmatprep.subr.bf16.mxu0 0
  %1159 = vmatpush1.bf16.msra.mxu0 %v370
  %1160 = vmatprep.subr.bf16.mxu0 0
  %1161 = vmatpush2.bf16.msra.mxu0 0
  %1162 = vmatprep.subr.bf16.mxu0 0
  %1163 = vmatpush2.bf16.msra.mxu0 0
  %1164 = vmatprep.subr.bf16.mxu0 0
  %1165 = vmatpush2.bf16.msra.mxu0 0
  %1166 = vmatprep.subr.bf16.mxu0 0
  %1167 = vmatpush2.bf16.msra.mxu0 0
  %1168 = vmatprep.subr.bf16.mxu0 0
  %1169 = vmatpush2.bf16.msra.mxu0 0
  %1170 = vmatprep.subr.bf16.mxu0 0
  %1171 = vmatpush2.bf16.msra.mxu0 0
  %1172 = vmatprep.subr.bf16.mxu0 0
  %1173 = vmatpush2.bf16.msra.mxu0 0
  %1174 = vmatprep.subr.bf16.mxu0 0
  %1175 = vmatpush2.bf16.msra.mxu0 0
  %1176 = vmatprep.mubr.bf16.mxu0 0
  %1177 = vmatmul.mubr.bf16.gmra.mxu0 %v1142
  %v1178 = vpop.f32.mrf.mxu0
  %v1179 = vadd.f32 0.0, %v1178
  %v1180 = vpop.f32.mrf.mxu0
  %v1181 = vpop.f32.mrf.mxu0
  %v1182 = vpop.f32.mrf.mxu0
  %1183 = vdwg.mxu0
  %v1184 = vadd.f32 %v1138, %v1179
  %v1185 = vld [vmem:[#allocation5] sm:$0xff]
  %v1186 = vxor.u32 %v1184, 2147483648
  %v1187 = vmul.f32 %v1186, 1.442695
  %v1188 = vpow.pop %v1187
  %v1189 = vadd.f32 %v1188, 1.0
  %v1190 = vrcp.pop %v1189
  %v1191 = vmul.f32 1.0, %v1190
  %v1192 = vtanh.pop %v1184
  %1194 = vrot.lane.b32.xlu0 %v1185, 16
  %v1195 = vpop.permute.xlu0 %1194
  %v1197 = vmul.f32 %v1191, %v1195
  %1199 = vrot.lane.b32.xlu0 %v1192, 96
  %v1200 = vpop.permute.xlu0 %1199
  %v1202 = vmul.f32 %v1191, %v1200
  %1204 = vrot.lane.b32.xlu0 %v1202, 16
  %v1205 = vpop.permute.xlu0 %1204
  %v1207 = vadd.f32 %v1197, %v1205
  %v1208 = vtanh.pop %v1207
  %1210 = vrot.lane.b32.xlu0 %v1208, 32
  %v1211 = vpop.permute.xlu0 %1210
  %v1213 = vmul.f32 %v1191, %v1211
  %1215 = vset.pattern.permute.xlu0 0
  %1216 = vperm.xlu0 %1215, %v1136
  %v1217 = vpop.permute.xlu0 %1216
  %v1219 = vmul.f32 %v1217, %v1213
  %v1220 = vsub.f32 1.0, %v1136
  %1222 = vset.pattern.permute.xlu0 0
  %1223 = vperm.xlu0 %1222, %v1220
  %v1224 = vpop.permute.xlu0 %1223
  %v1226 = vmul.f32 %v1224, %v1139
  %1228 = vrot.lane.b32.xlu0 %v1226, 48
  %v1229 = vpop.permute.xlu0 %1228
  %v1231 = vadd.f32 %v1219, %v1229
  %1233 = vrot.lane.b32.xlu0 %v1231, 80
  %v1234 = vpop.permute.xlu0 %1233
  %1236 = vst.msk [vmem:[#allocation4] sm:$0xff] %vm372, %v1234
  %v1237 = vmul.f32 %v1217, %v1207
  %v1238 = vld [vmem:[#allocation5] sm:$0xff]
  %v1239 = vmul.f32 %v1224, %v1238
  %1241 = vrot.lane.b32.xlu0 %v1239, 16
  %v1242 = vpop.permute.xlu0 %1241
  %v1244 = vadd.f32 %v1237, %v1242
  %1246 = vrot.lane.b32.xlu0 %v1244, 112
  %v1247 = vpop.permute.xlu0 %1246
  %1249 = vst.msk [vmem:[#allocation5] sm:$0xff] %vm372, %v1247
  %v1250 = vpack.c.bf16 %v1219, %v1219
  %v1252 = vunpack.c.l.b16 %v1250
  %v1253 = vpack.c.b16 %v1252, %v1252
  %1254 = vrot.lane.b32.xlu0 %v1253, 80
  %v1255 = vpop.permute.xlu0 %1254
  %s1257 = scalar_lea.vmem %s9, 12
  %1258 = vst.msk [vmem:[%s1257] sm:$0xf] %vm489, %v1255
  %s1259 = sadd.s32 %s358, 4
  %v1260 = vstv %s1259
  %vm1261 = vcmp.lt.s32.totalorder %v1260, %v355
  %v1262 = vsel %vm1261, 1, 0
  %v1263 = vcvt.s32.f32 %v1262
  %s1264 = scalar_lea.vmem [#allocation3], 32
  %v1265 = vld [vmem:[%s1264] sm:$0xff]
  %v1266 = vld [vmem:[#allocation6] sm:$0xff]
  %v1267 = vpack.c.bf16 %v1266, %v1266
  %v1269 = vsel %vm372, %v1267, 0
  %1271 = vmatprep.subr.bf16.mxu0 0
  %1272 = vmatpush1.bf16.msra.mxu0 0
  %1273 = vmatprep.subr.bf16.mxu0 0
  %1274 = vmatpush1.bf16.msra.mxu0 0
  %1275 = vmatprep.subr.bf16.mxu0 0
  %1276 = vmatpush1.bf16.msra.mxu0 0
  %1277 = vmatprep.subr.bf16.mxu0 0
  %1278 = vmatpush1.bf16.msra.mxu0 0
  %1279 = vmatprep.subr.bf16.mxu0 0
  %1280 = vmatpush1.bf16.msra.mxu0 0
  %1281 = vmatprep.subr.bf16.mxu0 0
  %1282 = vmatpush1.bf16.msra.mxu0 0
  %1283 = vmatprep.subr.bf16.mxu0 0
  %1284 = vmatpush1.bf16.msra.mxu0 0
  %1285 = vmatprep.subr.bf16.mxu0 0
  %1286 = vmatpush1.bf16.msra.mxu0 %v504
  %1287 = vmatprep.subr.bf16.mxu0 0
  %1288 = vmatpush2.bf16.msra.mxu0 0
  %1289 = vmatprep.subr.bf16.mxu0 0
  %1290 = vmatpush2.bf16.msra.mxu0 0
  %1291 = vmatprep.subr.bf16.mxu0 0
  %1292 = vmatpush2.bf16.msra.mxu0 0
  %1293 = vmatprep.subr.bf16.mxu0 0
  %1294 = vmatpush2.bf16.msra.mxu0 0
  %1295 = vmatprep.subr.bf16.mxu0 0
  %1296 = vmatpush2.bf16.msra.mxu0 0
  %1297 = vmatprep.subr.bf16.mxu0 0
  %1298 = vmatpush2.bf16.msra.mxu0 0
  %1299 = vmatprep.subr.bf16.mxu0 0
  %1300 = vmatpush2.bf16.msra.mxu0 0
  %1301 = vmatprep.subr.bf16.mxu0 0
  %1302 = vmatpush2.bf16.msra.mxu0 0
  %1303 = vmatprep.mubr.bf16.mxu0 0
  %1304 = vmatmul.mubr.bf16.gmra.mxu0 %v1269
  %v1305 = vpop.f32.mrf.mxu0
  %v1306 = vadd.f32 0.0, %v1305
  %v1307 = vpop.f32.mrf.mxu0
  %v1308 = vpop.f32.mrf.mxu0
  %v1309 = vpop.f32.mrf.mxu0
  %1310 = vdwg.mxu0
  %v1311 = vadd.f32 %v1265, %v1306
  %v1312 = vld [vmem:[#allocation7] sm:$0xff]
  %v1313 = vxor.u32 %v1311, 2147483648
  %v1314 = vmul.f32 %v1313, 1.442695
  %v1315 = vpow.pop %v1314
  %v1316 = vadd.f32 %v1315, 1.0
  %v1317 = vrcp.pop %v1316
  %v1318 = vmul.f32 1.0, %v1317
  %v1319 = vtanh.pop %v1311
  %1321 = vrot.lane.b32.xlu0 %v1312, 16
  %v1322 = vpop.permute.xlu0 %1321
  %v1324 = vmul.f32 %v1318, %v1322
  %1326 = vrot.lane.b32.xlu0 %v1319, 96
  %v1327 = vpop.permute.xlu0 %1326
  %v1329 = vmul.f32 %v1318, %v1327
  %1331 = vrot.lane.b32.xlu0 %v1329, 16
  %v1332 = vpop.permute.xlu0 %1331
  %v1334 = vadd.f32 %v1324, %v1332
  %v1335 = vtanh.pop %v1334
  %1337 = vrot.lane.b32.xlu0 %v1335, 32
  %v1338 = vpop.permute.xlu0 %1337
  %v1340 = vmul.f32 %v1318, %v1338
  %1342 = vset.pattern.permute.xlu0 0
  %1343 = vperm.xlu0 %1342, %v1263
  %v1344 = vpop.permute.xlu0 %1343
  %v1346 = vmul.f32 %v1344, %v1340
  %v1347 = vsub.f32 1.0, %v1263
  %1349 = vset.pattern.permute.xlu0 0
  %1350 = vperm.xlu0 %1349, %v1347
  %v1351 = vpop.permute.xlu0 %1350
  %v1353 = vmul.f32 %v1351, %v1266
  %1355 = vrot.lane.b32.xlu0 %v1353, 48
  %v1356 = vpop.permute.xlu0 %1355
  %v1358 = vadd.f32 %v1346, %v1356
  %1360 = vrot.lane.b32.xlu0 %v1358, 80
  %v1361 = vpop.permute.xlu0 %1360
  %1363 = vst.msk [vmem:[#allocation6] sm:$0xff] %vm372, %v1361
  %v1364 = vmul.f32 %v1344, %v1334
  %v1365 = vld [vmem:[#allocation7] sm:$0xff]
  %v1366 = vmul.f32 %v1351, %v1365
  %1368 = vrot.lane.b32.xlu0 %v1366, 16
  %v1369 = vpop.permute.xlu0 %1368
  %v1371 = vadd.f32 %v1364, %v1369
  %1373 = vrot.lane.b32.xlu0 %v1371, 112
  %v1374 = vpop.permute.xlu0 %1373
  %1376 = vst.msk [vmem:[#allocation7] sm:$0xff] %vm372, %v1374
  %v1377 = vpack.c.bf16 %v1346, %v1346
  %v1379 = vunpack.c.l.b16 %v1377
  %v1380 = vpack.c.b16 %v1379, %v1379
  %1381 = vrot.lane.b32.xlu0 %v1380, 80
  %v1382 = vpop.permute.xlu0 %1381
  %s1384 = scalar_lea.vmem %s65, 16
  %1385 = vst.msk [vmem:[%s1384] sm:$0xf] %vm489, %v1382
  %s1386 = sadd.s32 %s356, 4
  %v1387 = vstv %s1386
  %vm1388 = vcmp.lt.s32.totalorder %v1387, %v355
  %v1389 = vsel %vm1388, 1, 0
  %v1390 = vcvt.s32.f32 %v1389
  %s1391 = scalar_lea.vmem [#allocation2], 32
  %v1392 = vld [vmem:[%s1391] sm:$0xff]
  %v1393 = vld [vmem:[#allocation4] sm:$0xff]
  %v1394 = vpack.c.bf16 %v1393, %v1393
  %v1396 = vsel %vm372, %v1394, 0
  %1398 = vmatprep.subr.bf16.mxu0 0
  %1399 = vmatpush1.bf16.msra.mxu0 0
  %1400 = vmatprep.subr.bf16.mxu0 0
  %1401 = vmatpush1.bf16.msra.mxu0 0
  %1402 = vmatprep.subr.bf16.mxu0 0
  %1403 = vmatpush1.bf16.msra.mxu0 0
  %1404 = vmatprep.subr.bf16.mxu0 0
  %1405 = vmatpush1.bf16.msra.mxu0 0
  %1406 = vmatprep.subr.bf16.mxu0 0
  %1407 = vmatpush1.bf16.msra.mxu0 0
  %1408 = vmatprep.subr.bf16.mxu0 0
  %1409 = vmatpush1.bf16.msra.mxu0 0
  %1410 = vmatprep.subr.bf16.mxu0 0
  %1411 = vmatpush1.bf16.msra.mxu0 0
  %1412 = vmatprep.subr.bf16.mxu0 0
  %1413 = vmatpush1.bf16.msra.mxu0 %v370
  %1414 = vmatprep.subr.bf16.mxu0 0
  %1415 = vmatpush2.bf16.msra.mxu0 0
  %1416 = vmatprep.subr.bf16.mxu0 0
  %1417 = vmatpush2.bf16.msra.mxu0 0
  %1418 = vmatprep.subr.bf16.mxu0 0
  %1419 = vmatpush2.bf16.msra.mxu0 0
  %1420 = vmatprep.subr.bf16.mxu0 0
  %1421 = vmatpush2.bf16.msra.mxu0 0
  %1422 = vmatprep.subr.bf16.mxu0 0
  %1423 = vmatpush2.bf16.msra.mxu0 0
  %1424 = vmatprep.subr.bf16.mxu0 0
  %1425 = vmatpush2.bf16.msra.mxu0 0
  %1426 = vmatprep.subr.bf16.mxu0 0
  %1427 = vmatpush2.bf16.msra.mxu0 0
  %1428 = vmatprep.subr.bf16.mxu0 0
  %1429 = vmatpush2.bf16.msra.mxu0 0
  %1430 = vmatprep.mubr.bf16.mxu0 0
  %1431 = vmatmul.mubr.bf16.gmra.mxu0 %v1396
  %v1432 = vpop.f32.mrf.mxu0
  %v1433 = vadd.f32 0.0, %v1432
  %v1434 = vpop.f32.mrf.mxu0
  %v1435 = vpop.f32.mrf.mxu0
  %v1436 = vpop.f32.mrf.mxu0
  %1437 = vdwg.mxu0
  %v1438 = vadd.f32 %v1392, %v1433
  %v1439 = vld [vmem:[#allocation5] sm:$0xff]
  %v1440 = vxor.u32 %v1438, 2147483648
  %v1441 = vmul.f32 %v1440, 1.442695
  %v1442 = vpow.pop %v1441
  %v1443 = vadd.f32 %v1442, 1.0
  %v1444 = vrcp.pop %v1443
  %v1445 = vmul.f32 1.0, %v1444
  %v1446 = vtanh.pop %v1438
  %1448 = vrot.lane.b32.xlu0 %v1439, 16
  %v1449 = vpop.permute.xlu0 %1448
  %v1451 = vmul.f32 %v1445, %v1449
  %1453 = vrot.lane.b32.xlu0 %v1446, 96
  %v1454 = vpop.permute.xlu0 %1453
  %v1456 = vmul.f32 %v1445, %v1454
  %1458 = vrot.lane.b32.xlu0 %v1456, 16
  %v1459 = vpop.permute.xlu0 %1458
  %v1461 = vadd.f32 %v1451, %v1459
  %v1462 = vtanh.pop %v1461
  %1464 = vrot.lane.b32.xlu0 %v1462, 32
  %v1465 = vpop.permute.xlu0 %1464
  %v1467 = vmul.f32 %v1445, %v1465
  %1469 = vset.pattern.permute.xlu0 0
  %1470 = vperm.xlu0 %1469, %v1390
  %v1471 = vpop.permute.xlu0 %1470
  %v1473 = vmul.f32 %v1471, %v1467
  %v1474 = vsub.f32 1.0, %v1390
  %1476 = vset.pattern.permute.xlu0 0
  %1477 = vperm.xlu0 %1476, %v1474
  %v1478 = vpop.permute.xlu0 %1477
  %v1480 = vmul.f32 %v1478, %v1393
  %1482 = vrot.lane.b32.xlu0 %v1480, 48
  %v1483 = vpop.permute.xlu0 %1482
  %v1485 = vadd.f32 %v1473, %v1483
  %1487 = vrot.lane.b32.xlu0 %v1485, 80
  %v1488 = vpop.permute.xlu0 %1487
  %1490 = vst.msk [vmem:[#allocation4] sm:$0xff] %vm372, %v1488
  %v1491 = vmul.f32 %v1471, %v1461
  %v1492 = vld [vmem:[#allocation5] sm:$0xff]
  %v1493 = vmul.f32 %v1478, %v1492
  %1495 = vrot.lane.b32.xlu0 %v1493, 16
  %v1496 = vpop.permute.xlu0 %1495
  %v1498 = vadd.f32 %v1491, %v1496
  %1500 = vrot.lane.b32.xlu0 %v1498, 112
  %v1501 = vpop.permute.xlu0 %1500
  %1503 = vst.msk [vmem:[#allocation5] sm:$0xff] %vm372, %v1501
  %v1504 = vpack.c.bf16 %v1473, %v1473
  %v1506 = vunpack.c.l.b16 %v1504
  %v1507 = vpack.c.b16 %v1506, %v1506
  %1508 = vrot.lane.b32.xlu0 %v1507, 80
  %v1509 = vpop.permute.xlu0 %1508
  %s1511 = scalar_lea.vmem %s9, 16
  %1512 = vst.msk [vmem:[%s1511] sm:$0xf] %vm489, %v1509
  %s1513 = sadd.s32 %s358, 3
  %v1514 = vstv %s1513
  %vm1515 = vcmp.lt.s32.totalorder %v1514, %v355
  %v1516 = vsel %vm1515, 1, 0
  %v1517 = vcvt.s32.f32 %v1516
  %s1518 = scalar_lea.vmem [#allocation3], 24
  %v1519 = vld [vmem:[%s1518] sm:$0xff]
  %v1520 = vld [vmem:[#allocation6] sm:$0xff]
  %v1521 = vpack.c.bf16 %v1520, %v1520
  %v1523 = vsel %vm372, %v1521, 0
  %1525 = vmatprep.subr.bf16.mxu0 0
  %1526 = vmatpush1.bf16.msra.mxu0 0
  %1527 = vmatprep.subr.bf16.mxu0 0
  %1528 = vmatpush1.bf16.msra.mxu0 0
  %1529 = vmatprep.subr.bf16.mxu0 0
  %1530 = vmatpush1.bf16.msra.mxu0 0
  %1531 = vmatprep.subr.bf16.mxu0 0
  %1532 = vmatpush1.bf16.msra.mxu0 0
  %1533 = vmatprep.subr.bf16.mxu0 0
  %1534 = vmatpush1.bf16.msra.mxu0 0
  %1535 = vmatprep.subr.bf16.mxu0 0
  %1536 = vmatpush1.bf16.msra.mxu0 0
  %1537 = vmatprep.subr.bf16.mxu0 0
  %1538 = vmatpush1.bf16.msra.mxu0 0
  %1539 = vmatprep.subr.bf16.mxu0 0
  %1540 = vmatpush1.bf16.msra.mxu0 %v504
  %1541 = vmatprep.subr.bf16.mxu0 0
  %1542 = vmatpush2.bf16.msra.mxu0 0
  %1543 = vmatprep.subr.bf16.mxu0 0
  %1544 = vmatpush2.bf16.msra.mxu0 0
  %1545 = vmatprep.subr.bf16.mxu0 0
  %1546 = vmatpush2.bf16.msra.mxu0 0
  %1547 = vmatprep.subr.bf16.mxu0 0
  %1548 = vmatpush2.bf16.msra.mxu0 0
  %1549 = vmatprep.subr.bf16.mxu0 0
  %1550 = vmatpush2.bf16.msra.mxu0 0
  %1551 = vmatprep.subr.bf16.mxu0 0
  %1552 = vmatpush2.bf16.msra.mxu0 0
  %1553 = vmatprep.subr.bf16.mxu0 0
  %1554 = vmatpush2.bf16.msra.mxu0 0
  %1555 = vmatprep.subr.bf16.mxu0 0
  %1556 = vmatpush2.bf16.msra.mxu0 0
  %1557 = vmatprep.mubr.bf16.mxu0 0
  %1558 = vmatmul.mubr.bf16.gmra.mxu0 %v1523
  %v1559 = vpop.f32.mrf.mxu0
  %v1560 = vadd.f32 0.0, %v1559
  %v1561 = vpop.f32.mrf.mxu0
  %v1562 = vpop.f32.mrf.mxu0
  %v1563 = vpop.f32.mrf.mxu0
  %1564 = vdwg.mxu0
  %v1565 = vadd.f32 %v1519, %v1560
  %v1566 = vld [vmem:[#allocation7] sm:$0xff]
  %v1567 = vxor.u32 %v1565, 2147483648
  %v1568 = vmul.f32 %v1567, 1.442695
  %v1569 = vpow.pop %v1568
  %v1570 = vadd.f32 %v1569, 1.0
  %v1571 = vrcp.pop %v1570
  %v1572 = vmul.f32 1.0, %v1571
  %v1573 = vtanh.pop %v1565
  %1575 = vrot.lane.b32.xlu0 %v1566, 16
  %v1576 = vpop.permute.xlu0 %1575
  %v1578 = vmul.f32 %v1572, %v1576
  %1580 = vrot.lane.b32.xlu0 %v1573, 96
  %v1581 = vpop.permute.xlu0 %1580
  %v1583 = vmul.f32 %v1572, %v1581
  %1585 = vrot.lane.b32.xlu0 %v1583, 16
  %v1586 = vpop.permute.xlu0 %1585
  %v1588 = vadd.f32 %v1578, %v1586
  %v1589 = vtanh.pop %v1588
  %1591 = vrot.lane.b32.xlu0 %v1589, 32
  %v1592 = vpop.permute.xlu0 %1591
  %v1594 = vmul.f32 %v1572, %v1592
  %1596 = vset.pattern.permute.xlu0 0
  %1597 = vperm.xlu0 %1596, %v1517
  %v1598 = vpop.permute.xlu0 %1597
  %v1600 = vmul.f32 %v1598, %v1594
  %v1601 = vsub.f32 1.0, %v1517
  %1603 = vset.pattern.permute.xlu0 0
  %1604 = vperm.xlu0 %1603, %v1601
  %v1605 = vpop.permute.xlu0 %1604
  %v1607 = vmul.f32 %v1605, %v1520
  %1609 = vrot.lane.b32.xlu0 %v1607, 48
  %v1610 = vpop.permute.xlu0 %1609
  %v1612 = vadd.f32 %v1600, %v1610
  %1614 = vrot.lane.b32.xlu0 %v1612, 80
  %v1615 = vpop.permute.xlu0 %1614
  %1617 = vst.msk [vmem:[#allocation6] sm:$0xff] %vm372, %v1615
  %v1618 = vmul.f32 %v1598, %v1588
  %v1619 = vld [vmem:[#allocation7] sm:$0xff]
  %v1620 = vmul.f32 %v1605, %v1619
  %1622 = vrot.lane.b32.xlu0 %v1620, 16
  %v1623 = vpop.permute.xlu0 %1622
  %v1625 = vadd.f32 %v1618, %v1623
  %1627 = vrot.lane.b32.xlu0 %v1625, 112
  %v1628 = vpop.permute.xlu0 %1627
  %1630 = vst.msk [vmem:[#allocation7] sm:$0xff] %vm372, %v1628
  %v1631 = vpack.c.bf16 %v1600, %v1600
  %v1633 = vunpack.c.l.b16 %v1631
  %v1634 = vpack.c.b16 %v1633, %v1633
  %1635 = vrot.lane.b32.xlu0 %v1634, 80
  %v1636 = vpop.permute.xlu0 %1635
  %s1638 = scalar_lea.vmem %s65, 12
  %1639 = vst.msk [vmem:[%s1638] sm:$0xf] %vm489, %v1636
  %s1640 = sadd.s32 %s356, 5
  %v1641 = vstv %s1640
  %vm1642 = vcmp.lt.s32.totalorder %v1641, %v355
  %v1643 = vsel %vm1642, 1, 0
  %v1644 = vcvt.s32.f32 %v1643
  %s1645 = scalar_lea.vmem [#allocation2], 40
  %v1646 = vld [vmem:[%s1645] sm:$0xff]
  %v1647 = vld [vmem:[#allocation4] sm:$0xff]
  %v1648 = vpack.c.bf16 %v1647, %v1647
  %v1650 = vsel %vm372, %v1648, 0
  %1652 = vmatprep.subr.bf16.mxu0 0
  %1653 = vmatpush1.bf16.msra.mxu0 0
  %1654 = vmatprep.subr.bf16.mxu0 0
  %1655 = vmatpush1.bf16.msra.mxu0 0
  %1656 = vmatprep.subr.bf16.mxu0 0
  %1657 = vmatpush1.bf16.msra.mxu0 0
  %1658 = vmatprep.subr.bf16.mxu0 0
  %1659 = vmatpush1.bf16.msra.mxu0 0
  %1660 = vmatprep.subr.bf16.mxu0 0
  %1661 = vmatpush1.bf16.msra.mxu0 0
  %1662 = vmatprep.subr.bf16.mxu0 0
  %1663 = vmatpush1.bf16.msra.mxu0 0
  %1664 = vmatprep.subr.bf16.mxu0 0
  %1665 = vmatpush1.bf16.msra.mxu0 0
  %1666 = vmatprep.subr.bf16.mxu0 0
  %1667 = vmatpush1.bf16.msra.mxu0 %v370
  %1668 = vmatprep.subr.bf16.mxu0 0
  %1669 = vmatpush2.bf16.msra.mxu0 0
  %1670 = vmatprep.subr.bf16.mxu0 0
  %1671 = vmatpush2.bf16.msra.mxu0 0
  %1672 = vmatprep.subr.bf16.mxu0 0
  %1673 = vmatpush2.bf16.msra.mxu0 0
  %1674 = vmatprep.subr.bf16.mxu0 0
  %1675 = vmatpush2.bf16.msra.mxu0 0
  %1676 = vmatprep.subr.bf16.mxu0 0
  %1677 = vmatpush2.bf16.msra.mxu0 0
  %1678 = vmatprep.subr.bf16.mxu0 0
  %1679 = vmatpush2.bf16.msra.mxu0 0
  %1680 = vmatprep.subr.bf16.mxu0 0
  %1681 = vmatpush2.bf16.msra.mxu0 0
  %1682 = vmatprep.subr.bf16.mxu0 0
  %1683 = vmatpush2.bf16.msra.mxu0 0
  %1684 = vmatprep.mubr.bf16.mxu0 0
  %1685 = vmatmul.mubr.bf16.gmra.mxu0 %v1650
  %v1686 = vpop.f32.mrf.mxu0
  %v1687 = vadd.f32 0.0, %v1686
  %v1688 = vpop.f32.mrf.mxu0
  %v1689 = vpop.f32.mrf.mxu0
  %v1690 = vpop.f32.mrf.mxu0
  %1691 = vdwg.mxu0
  %v1692 = vadd.f32 %v1646, %v1687
  %v1693 = vld [vmem:[#allocation5] sm:$0xff]
  %v1694 = vxor.u32 %v1692, 2147483648
  %v1695 = vmul.f32 %v1694, 1.442695
  %v1696 = vpow.pop %v1695
  %v1697 = vadd.f32 %v1696, 1.0
  %v1698 = vrcp.pop %v1697
  %v1699 = vmul.f32 1.0, %v1698
  %v1700 = vtanh.pop %v1692
  %1702 = vrot.lane.b32.xlu0 %v1693, 16
  %v1703 = vpop.permute.xlu0 %1702
  %v1705 = vmul.f32 %v1699, %v1703
  %1707 = vrot.lane.b32.xlu0 %v1700, 96
  %v1708 = vpop.permute.xlu0 %1707
  %v1710 = vmul.f32 %v1699, %v1708
  %1712 = vrot.lane.b32.xlu0 %v1710, 16
  %v1713 = vpop.permute.xlu0 %1712
  %v1715 = vadd.f32 %v1705, %v1713
  %v1716 = vtanh.pop %v1715
  %1718 = vrot.lane.b32.xlu0 %v1716, 32
  %v1719 = vpop.permute.xlu0 %1718
  %v1721 = vmul.f32 %v1699, %v1719
  %1723 = vset.pattern.permute.xlu0 0
  %1724 = vperm.xlu0 %1723, %v1644
  %v1725 = vpop.permute.xlu0 %1724
  %v1727 = vmul.f32 %v1725, %v1721
  %v1728 = vsub.f32 1.0, %v1644
  %1730 = vset.pattern.permute.xlu0 0
  %1731 = vperm.xlu0 %1730, %v1728
  %v1732 = vpop.permute.xlu0 %1731
  %v1734 = vmul.f32 %v1732, %v1647
  %1736 = vrot.lane.b32.xlu0 %v1734, 48
  %v1737 = vpop.permute.xlu0 %1736
  %v1739 = vadd.f32 %v1727, %v1737
  %1741 = vrot.lane.b32.xlu0 %v1739, 80
  %v1742 = vpop.permute.xlu0 %1741
  %1744 = vst.msk [vmem:[#allocation4] sm:$0xff] %vm372, %v1742
  %v1745 = vmul.f32 %v1725, %v1715
  %v1746 = vld [vmem:[#allocation5] sm:$0xff]
  %v1747 = vmul.f32 %v1732, %v1746
  %1749 = vrot.lane.b32.xlu0 %v1747, 16
  %v1750 = vpop.permute.xlu0 %1749
  %v1752 = vadd.f32 %v1745, %v1750
  %1754 = vrot.lane.b32.xlu0 %v1752, 112
  %v1755 = vpop.permute.xlu0 %1754
  %1757 = vst.msk [vmem:[#allocation5] sm:$0xff] %vm372, %v1755
  %v1758 = vpack.c.bf16 %v1727, %v1727
  %v1760 = vunpack.c.l.b16 %v1758
  %v1761 = vpack.c.b16 %v1760, %v1760
  %1762 = vrot.lane.b32.xlu0 %v1761, 80
  %v1763 = vpop.permute.xlu0 %1762
  %s1765 = scalar_lea.vmem %s9, 20
  %1766 = vst.msk [vmem:[%s1765] sm:$0xf] %vm489, %v1763
  %s1767 = sadd.s32 %s358, 2
  %v1768 = vstv %s1767
  %vm1769 = vcmp.lt.s32.totalorder %v1768, %v355
  %v1770 = vsel %vm1769, 1, 0
  %v1771 = vcvt.s32.f32 %v1770
  %s1772 = scalar_lea.vmem [#allocation3], 16
  %v1773 = vld [vmem:[%s1772] sm:$0xff]
  %v1774 = vld [vmem:[#allocation6] sm:$0xff]
  %v1775 = vpack.c.bf16 %v1774, %v1774
  %v1777 = vsel %vm372, %v1775, 0
  %1779 = vmatprep.subr.bf16.mxu0 0
  %1780 = vmatpush1.bf16.msra.mxu0 0
  %1781 = vmatprep.subr.bf16.mxu0 0
  %1782 = vmatpush1.bf16.msra.mxu0 0
  %1783 = vmatprep.subr.bf16.mxu0 0
  %1784 = vmatpush1.bf16.msra.mxu0 0
  %1785 = vmatprep.subr.bf16.mxu0 0
  %1786 = vmatpush1.bf16.msra.mxu0 0
  %1787 = vmatprep.subr.bf16.mxu0 0
  %1788 = vmatpush1.bf16.msra.mxu0 0
  %1789 = vmatprep.subr.bf16.mxu0 0
  %1790 = vmatpush1.bf16.msra.mxu0 0
  %1791 = vmatprep.subr.bf16.mxu0 0
  %1792 = vmatpush1.bf16.msra.mxu0 0
  %1793 = vmatprep.subr.bf16.mxu0 0
  %1794 = vmatpush1.bf16.msra.mxu0 %v504
  %1795 = vmatprep.subr.bf16.mxu0 0
  %1796 = vmatpush2.bf16.msra.mxu0 0
  %1797 = vmatprep.subr.bf16.mxu0 0
  %1798 = vmatpush2.bf16.msra.mxu0 0
  %1799 = vmatprep.subr.bf16.mxu0 0
  %1800 = vmatpush2.bf16.msra.mxu0 0
  %1801 = vmatprep.subr.bf16.mxu0 0
  %1802 = vmatpush2.bf16.msra.mxu0 0
  %1803 = vmatprep.subr.bf16.mxu0 0
  %1804 = vmatpush2.bf16.msra.mxu0 0
  %1805 = vmatprep.subr.bf16.mxu0 0
  %1806 = vmatpush2.bf16.msra.mxu0 0
  %1807 = vmatprep.subr.bf16.mxu0 0
  %1808 = vmatpush2.bf16.msra.mxu0 0
  %1809 = vmatprep.subr.bf16.mxu0 0
  %1810 = vmatpush2.bf16.msra.mxu0 0
  %1811 = vmatprep.mubr.bf16.mxu0 0
  %1812 = vmatmul.mubr.bf16.gmra.mxu0 %v1777
  %v1813 = vpop.f32.mrf.mxu0
  %v1814 = vadd.f32 0.0, %v1813
  %v1815 = vpop.f32.mrf.mxu0
  %v1816 = vpop.f32.mrf.mxu0
  %v1817 = vpop.f32.mrf.mxu0
  %1818 = vdwg.mxu0
  %v1819 = vadd.f32 %v1773, %v1814
  %v1820 = vld [vmem:[#allocation7] sm:$0xff]
  %v1821 = vxor.u32 %v1819, 2147483648
  %v1822 = vmul.f32 %v1821, 1.442695
  %v1823 = vpow.pop %v1822
  %v1824 = vadd.f32 %v1823, 1.0
  %v1825 = vrcp.pop %v1824
  %v1826 = vmul.f32 1.0, %v1825
  %v1827 = vtanh.pop %v1819
  %1829 = vrot.lane.b32.xlu0 %v1820, 16
  %v1830 = vpop.permute.xlu0 %1829
  %v1832 = vmul.f32 %v1826, %v1830
  %1834 = vrot.lane.b32.xlu0 %v1827, 96
  %v1835 = vpop.permute.xlu0 %1834
  %v1837 = vmul.f32 %v1826, %v1835
  %1839 = vrot.lane.b32.xlu0 %v1837, 16
  %v1840 = vpop.permute.xlu0 %1839
  %v1842 = vadd.f32 %v1832, %v1840
  %v1843 = vtanh.pop %v1842
  %1845 = vrot.lane.b32.xlu0 %v1843, 32
  %v1846 = vpop.permute.xlu0 %1845
  %v1848 = vmul.f32 %v1826, %v1846
  %1850 = vset.pattern.permute.xlu0 0
  %1851 = vperm.xlu0 %1850, %v1771
  %v1852 = vpop.permute.xlu0 %1851
  %v1854 = vmul.f32 %v1852, %v1848
  %v1855 = vsub.f32 1.0, %v1771
  %1857 = vset.pattern.permute.xlu0 0
  %1858 = vperm.xlu0 %1857, %v1855
  %v1859 = vpop.permute.xlu0 %1858
  %v1861 = vmul.f32 %v1859, %v1774
  %1863 = vrot.lane.b32.xlu0 %v1861, 48
  %v1864 = vpop.permute.xlu0 %1863
  %v1866 = vadd.f32 %v1854, %v1864
  %1868 = vrot.lane.b32.xlu0 %v1866, 80
  %v1869 = vpop.permute.xlu0 %1868
  %1871 = vst.msk [vmem:[#allocation6] sm:$0xff] %vm372, %v1869
  %v1872 = vmul.f32 %v1852, %v1842
  %v1873 = vld [vmem:[#allocation7] sm:$0xff]
  %v1874 = vmul.f32 %v1859, %v1873
  %1876 = vrot.lane.b32.xlu0 %v1874, 16
  %v1877 = vpop.permute.xlu0 %1876
  %v1879 = vadd.f32 %v1872, %v1877
  %1881 = vrot.lane.b32.xlu0 %v1879, 112
  %v1882 = vpop.permute.xlu0 %1881
  %1884 = vst.msk [vmem:[#allocation7] sm:$0xff] %vm372, %v1882
  %v1885 = vpack.c.bf16 %v1854, %v1854
  %v1887 = vunpack.c.l.b16 %v1885
  %v1888 = vpack.c.b16 %v1887, %v1887
  %1889 = vrot.lane.b32.xlu0 %v1888, 80
  %v1890 = vpop.permute.xlu0 %1889
  %s1892 = scalar_lea.vmem %s65, 8
  %1893 = vst.msk [vmem:[%s1892] sm:$0xf] %vm489, %v1890
  %s1894 = sadd.s32 %s356, 6
  %v1895 = vstv %s1894
  %vm1896 = vcmp.lt.s32.totalorder %v1895, %v355
  %v1897 = vsel %vm1896, 1, 0
  %v1898 = vcvt.s32.f32 %v1897
  %s1899 = scalar_lea.vmem [#allocation2], 48
  %v1900 = vld [vmem:[%s1899] sm:$0xff]
  %v1901 = vld [vmem:[#allocation4] sm:$0xff]
  %v1902 = vpack.c.bf16 %v1901, %v1901
  %v1904 = vsel %vm372, %v1902, 0
  %1906 = vmatprep.subr.bf16.mxu0 0
  %1907 = vmatpush1.bf16.msra.mxu0 0
  %1908 = vmatprep.subr.bf16.mxu0 0
  %1909 = vmatpush1.bf16.msra.mxu0 0
  %1910 = vmatprep.subr.bf16.mxu0 0
  %1911 = vmatpush1.bf16.msra.mxu0 0
  %1912 = vmatprep.subr.bf16.mxu0 0
  %1913 = vmatpush1.bf16.msra.mxu0 0
  %1914 = vmatprep.subr.bf16.mxu0 0
  %1915 = vmatpush1.bf16.msra.mxu0 0
  %1916 = vmatprep.subr.bf16.mxu0 0
  %1917 = vmatpush1.bf16.msra.mxu0 0
  %1918 = vmatprep.subr.bf16.mxu0 0
  %1919 = vmatpush1.bf16.msra.mxu0 0
  %1920 = vmatprep.subr.bf16.mxu0 0
  %1921 = vmatpush1.bf16.msra.mxu0 %v370
  %1922 = vmatprep.subr.bf16.mxu0 0
  %1923 = vmatpush2.bf16.msra.mxu0 0
  %1924 = vmatprep.subr.bf16.mxu0 0
  %1925 = vmatpush2.bf16.msra.mxu0 0
  %1926 = vmatprep.subr.bf16.mxu0 0
  %1927 = vmatpush2.bf16.msra.mxu0 0
  %1928 = vmatprep.subr.bf16.mxu0 0
  %1929 = vmatpush2.bf16.msra.mxu0 0
  %1930 = vmatprep.subr.bf16.mxu0 0
  %1931 = vmatpush2.bf16.msra.mxu0 0
  %1932 = vmatprep.subr.bf16.mxu0 0
  %1933 = vmatpush2.bf16.msra.mxu0 0
  %1934 = vmatprep.subr.bf16.mxu0 0
  %1935 = vmatpush2.bf16.msra.mxu0 0
  %1936 = vmatprep.subr.bf16.mxu0 0
  %1937 = vmatpush2.bf16.msra.mxu0 0
  %1938 = vmatprep.mubr.bf16.mxu0 0
  %1939 = vmatmul.mubr.bf16.gmra.mxu0 %v1904
  %v1940 = vpop.f32.mrf.mxu0
  %v1941 = vadd.f32 0.0, %v1940
  %v1942 = vpop.f32.mrf.mxu0
  %v1943 = vpop.f32.mrf.mxu0
  %v1944 = vpop.f32.mrf.mxu0
  %1945 = vdwg.mxu0
  %v1946 = vadd.f32 %v1900, %v1941
  %v1947 = vld [vmem:[#allocation5] sm:$0xff]
  %v1948 = vxor.u32 %v1946, 2147483648
  %v1949 = vmul.f32 %v1948, 1.442695
  %v1950 = vpow.pop %v1949
  %v1951 = vadd.f32 %v1950, 1.0
  %v1952 = vrcp.pop %v1951
  %v1953 = vmul.f32 1.0, %v1952
  %v1954 = vtanh.pop %v1946
  %1956 = vrot.lane.b32.xlu0 %v1947, 16
  %v1957 = vpop.permute.xlu0 %1956
  %v1959 = vmul.f32 %v1953, %v1957
  %1961 = vrot.lane.b32.xlu0 %v1954, 96
  %v1962 = vpop.permute.xlu0 %1961
  %v1964 = vmul.f32 %v1953, %v1962
  %1966 = vrot.lane.b32.xlu0 %v1964, 16
  %v1967 = vpop.permute.xlu0 %1966
  %v1969 = vadd.f32 %v1959, %v1967
  %v1970 = vtanh.pop %v1969
  %1972 = vrot.lane.b32.xlu0 %v1970, 32
  %v1973 = vpop.permute.xlu0 %1972
  %v1975 = vmul.f32 %v1953, %v1973
  %1977 = vset.pattern.permute.xlu0 0
  %1978 = vperm.xlu0 %1977, %v1898
  %v1979 = vpop.permute.xlu0 %1978
  %v1981 = vmul.f32 %v1979, %v1975
  %v1982 = vsub.f32 1.0, %v1898
  %1984 = vset.pattern.permute.xlu0 0
  %1985 = vperm.xlu0 %1984, %v1982
  %v1986 = vpop.permute.xlu0 %1985
  %v1988 = vmul.f32 %v1986, %v1901
  %1990 = vrot.lane.b32.xlu0 %v1988, 48
  %v1991 = vpop.permute.xlu0 %1990
  %v1993 = vadd.f32 %v1981, %v1991
  %1995 = vrot.lane.b32.xlu0 %v1993, 80
  %v1996 = vpop.permute.xlu0 %1995
  %1998 = vst.msk [vmem:[#allocation4] sm:$0xff] %vm372, %v1996
  %v1999 = vmul.f32 %v1979, %v1969
  %v2000 = vld [vmem:[#allocation5] sm:$0xff]
  %v2001 = vmul.f32 %v1986, %v2000
  %2003 = vrot.lane.b32.xlu0 %v2001, 16
  %v2004 = vpop.permute.xlu0 %2003
  %v2006 = vadd.f32 %v1999, %v2004
  %2008 = vrot.lane.b32.xlu0 %v2006, 112
  %v2009 = vpop.permute.xlu0 %2008
  %2011 = vst.msk [vmem:[#allocation5] sm:$0xff] %vm372, %v2009
  %v2012 = vpack.c.bf16 %v1981, %v1981
  %v2014 = vunpack.c.l.b16 %v2012
  %v2015 = vpack.c.b16 %v2014, %v2014
  %2016 = vrot.lane.b32.xlu0 %v2015, 80
  %v2017 = vpop.permute.xlu0 %2016
  %s2019 = scalar_lea.vmem %s9, 24
  %2020 = vst.msk [vmem:[%s2019] sm:$0xf] %vm489, %v2017
  %s2021 = sadd.s32 %s358, 1
  %v2022 = vstv %s2021
  %vm2023 = vcmp.lt.s32.totalorder %v2022, %v355
  %v2024 = vsel %vm2023, 1, 0
  %v2025 = vcvt.s32.f32 %v2024
  %s2026 = scalar_lea.vmem [#allocation3], 8
  %v2027 = vld [vmem:[%s2026] sm:$0xff]
  %v2028 = vld [vmem:[#allocation6] sm:$0xff]
  %v2029 = vpack.c.bf16 %v2028, %v2028
  %v2031 = vsel %vm372, %v2029, 0
  %2033 = vmatprep.subr.bf16.mxu0 0
  %2034 = vmatpush1.bf16.msra.mxu0 0
  %2035 = vmatprep.subr.bf16.mxu0 0
  %2036 = vmatpush1.bf16.msra.mxu0 0
  %2037 = vmatprep.subr.bf16.mxu0 0
  %2038 = vmatpush1.bf16.msra.mxu0 0
  %2039 = vmatprep.subr.bf16.mxu0 0
  %2040 = vmatpush1.bf16.msra.mxu0 0
  %2041 = vmatprep.subr.bf16.mxu0 0
  %2042 = vmatpush1.bf16.msra.mxu0 0
  %2043 = vmatprep.subr.bf16.mxu0 0
  %2044 = vmatpush1.bf16.msra.mxu0 0
  %2045 = vmatprep.subr.bf16.mxu0 0
  %2046 = vmatpush1.bf16.msra.mxu0 0
  %2047 = vmatprep.subr.bf16.mxu0 0
  %2048 = vmatpush1.bf16.msra.mxu0 %v504
  %2049 = vmatprep.subr.bf16.mxu0 0
  %2050 = vmatpush2.bf16.msra.mxu0 0
  %2051 = vmatprep.subr.bf16.mxu0 0
  %2052 = vmatpush2.bf16.msra.mxu0 0
  %2053 = vmatprep.subr.bf16.mxu0 0
  %2054 = vmatpush2.bf16.msra.mxu0 0
  %2055 = vmatprep.subr.bf16.mxu0 0
  %2056 = vmatpush2.bf16.msra.mxu0 0
  %2057 = vmatprep.subr.bf16.mxu0 0
  %2058 = vmatpush2.bf16.msra.mxu0 0
  %2059 = vmatprep.subr.bf16.mxu0 0
  %2060 = vmatpush2.bf16.msra.mxu0 0
  %2061 = vmatprep.subr.bf16.mxu0 0
  %2062 = vmatpush2.bf16.msra.mxu0 0
  %2063 = vmatprep.subr.bf16.mxu0 0
  %2064 = vmatpush2.bf16.msra.mxu0 0
  %2065 = vmatprep.mubr.bf16.mxu0 0
  %2066 = vmatmul.mubr.bf16.gmra.mxu0 %v2031
  %v2067 = vpop.f32.mrf.mxu0
  %v2068 = vadd.f32 0.0, %v2067
  %v2069 = vpop.f32.mrf.mxu0
  %v2070 = vpop.f32.mrf.mxu0
  %v2071 = vpop.f32.mrf.mxu0
  %2072 = vdwg.mxu0
  %v2073 = vadd.f32 %v2027, %v2068
  %v2074 = vld [vmem:[#allocation7] sm:$0xff]
  %v2075 = vxor.u32 %v2073, 2147483648
  %v2076 = vmul.f32 %v2075, 1.442695
  %v2077 = vpow.pop %v2076
  %v2078 = vadd.f32 %v2077, 1.0
  %v2079 = vrcp.pop %v2078
  %v2080 = vmul.f32 1.0, %v2079
  %v2081 = vtanh.pop %v2073
  %2083 = vrot.lane.b32.xlu0 %v2074, 16
  %v2084 = vpop.permute.xlu0 %2083
  %v2086 = vmul.f32 %v2080, %v2084
  %2088 = vrot.lane.b32.xlu0 %v2081, 96
  %v2089 = vpop.permute.xlu0 %2088
  %v2091 = vmul.f32 %v2080, %v2089
  %2093 = vrot.lane.b32.xlu0 %v2091, 16
  %v2094 = vpop.permute.xlu0 %2093
  %v2096 = vadd.f32 %v2086, %v2094
  %v2097 = vtanh.pop %v2096
  %2099 = vrot.lane.b32.xlu0 %v2097, 32
  %v2100 = vpop.permute.xlu0 %2099
  %v2102 = vmul.f32 %v2080, %v2100
  %2104 = vset.pattern.permute.xlu0 0
  %2105 = vperm.xlu0 %2104, %v2025
  %v2106 = vpop.permute.xlu0 %2105
  %v2108 = vmul.f32 %v2106, %v2102
  %v2109 = vsub.f32 1.0, %v2025
  %2111 = vset.pattern.permute.xlu0 0
  %2112 = vperm.xlu0 %2111, %v2109
  %v2113 = vpop.permute.xlu0 %2112
  %v2115 = vmul.f32 %v2113, %v2028
  %2117 = vrot.lane.b32.xlu0 %v2115, 48
  %v2118 = vpop.permute.xlu0 %2117
  %v2120 = vadd.f32 %v2108, %v2118
  %2122 = vrot.lane.b32.xlu0 %v2120, 80
  %v2123 = vpop.permute.xlu0 %2122
  %2125 = vst.msk [vmem:[#allocation6] sm:$0xff] %vm372, %v2123
  %v2126 = vmul.f32 %v2106, %v2096
  %v2127 = vld [vmem:[#allocation7] sm:$0xff]
  %v2128 = vmul.f32 %v2113, %v2127
  %2130 = vrot.lane.b32.xlu0 %v2128, 16
  %v2131 = vpop.permute.xlu0 %2130
  %v2133 = vadd.f32 %v2126, %v2131
  %2135 = vrot.lane.b32.xlu0 %v2133, 112
  %v2136 = vpop.permute.xlu0 %2135
  %2138 = vst.msk [vmem:[#allocation7] sm:$0xff] %vm372, %v2136
  %v2139 = vpack.c.bf16 %v2108, %v2108
  %v2141 = vunpack.c.l.b16 %v2139
  %v2142 = vpack.c.b16 %v2141, %v2141
  %2143 = vrot.lane.b32.xlu0 %v2142, 80
  %v2144 = vpop.permute.xlu0 %2143
  %s2146 = scalar_lea.vmem %s65, 4
  %2147 = vst.msk [vmem:[%s2146] sm:$0xf] %vm489, %v2144
  %s2148 = sadd.s32 %s356, 7
  %v2149 = vstv %s2148
  %vm2150 = vcmp.lt.s32.totalorder %v2149, %v355
  %v2151 = vsel %vm2150, 1, 0
  %v2152 = vcvt.s32.f32 %v2151
  %s2153 = scalar_lea.vmem [#allocation2], 56
  %v2154 = vld [vmem:[%s2153] sm:$0xff]
  %v2155 = vld [vmem:[#allocation4] sm:$0xff]
  %v2156 = vpack.c.bf16 %v2155, %v2155
  %v2158 = vsel %vm372, %v2156, 0
  %2160 = vmatprep.subr.bf16.mxu0 0
  %2161 = vmatpush1.bf16.msra.mxu0 0
  %2162 = vmatprep.subr.bf16.mxu0 0
  %2163 = vmatpush1.bf16.msra.mxu0 0
  %2164 = vmatprep.subr.bf16.mxu0 0
  %2165 = vmatpush1.bf16.msra.mxu0 0
  %2166 = vmatprep.subr.bf16.mxu0 0
  %2167 = vmatpush1.bf16.msra.mxu0 0
  %2168 = vmatprep.subr.bf16.mxu0 0
  %2169 = vmatpush1.bf16.msra.mxu0 0
  %2170 = vmatprep.subr.bf16.mxu0 0
  %2171 = vmatpush1.bf16.msra.mxu0 0
  %2172 = vmatprep.subr.bf16.mxu0 0
  %2173 = vmatpush1.bf16.msra.mxu0 0
  %2174 = vmatprep.subr.bf16.mxu0 0
  %2175 = vmatpush1.bf16.msra.mxu0 %v370
  %2176 = vmatprep.subr.bf16.mxu0 0
  %2177 = vmatpush2.bf16.msra.mxu0 0
  %2178 = vmatprep.subr.bf16.mxu0 0
  %2179 = vmatpush2.bf16.msra.mxu0 0
  %2180 = vmatprep.subr.bf16.mxu0 0
  %2181 = vmatpush2.bf16.msra.mxu0 0
  %2182 = vmatprep.subr.bf16.mxu0 0
  %2183 = vmatpush2.bf16.msra.mxu0 0
  %2184 = vmatprep.subr.bf16.mxu0 0
  %2185 = vmatpush2.bf16.msra.mxu0 0
  %2186 = vmatprep.subr.bf16.mxu0 0
  %2187 = vmatpush2.bf16.msra.mxu0 0
  %2188 = vmatprep.subr.bf16.mxu0 0
  %2189 = vmatpush2.bf16.msra.mxu0 0
  %2190 = vmatprep.subr.bf16.mxu0 0
  %2191 = vmatpush2.bf16.msra.mxu0 0
  %2192 = vmatprep.mubr.bf16.mxu0 0
  %2193 = vmatmul.mubr.bf16.gmra.mxu0 %v2158
  %v2194 = vpop.f32.mrf.mxu0
  %v2195 = vadd.f32 0.0, %v2194
  %v2196 = vpop.f32.mrf.mxu0
  %v2197 = vpop.f32.mrf.mxu0
  %v2198 = vpop.f32.mrf.mxu0
  %2199 = vdwg.mxu0
  %v2200 = vadd.f32 %v2154, %v2195
  %v2201 = vld [vmem:[#allocation5] sm:$0xff]
  %v2202 = vxor.u32 %v2200, 2147483648
  %v2203 = vmul.f32 %v2202, 1.442695
  %v2204 = vpow.pop %v2203
  %v2205 = vadd.f32 %v2204, 1.0
  %v2206 = vrcp.pop %v2205
  %v2207 = vmul.f32 1.0, %v2206
  %v2208 = vtanh.pop %v2200
  %2210 = vrot.lane.b32.xlu0 %v2201, 16
  %v2211 = vpop.permute.xlu0 %2210
  %v2213 = vmul.f32 %v2207, %v2211
  %2215 = vrot.lane.b32.xlu0 %v2208, 96
  %v2216 = vpop.permute.xlu0 %2215
  %v2218 = vmul.f32 %v2207, %v2216
  %2220 = vrot.lane.b32.xlu0 %v2218, 16
  %v2221 = vpop.permute.xlu0 %2220
  %v2223 = vadd.f32 %v2213, %v2221
  %v2224 = vtanh.pop %v2223
  %2226 = vrot.lane.b32.xlu0 %v2224, 32
  %v2227 = vpop.permute.xlu0 %2226
  %v2229 = vmul.f32 %v2207, %v2227
  %2231 = vset.pattern.permute.xlu0 0
  %2232 = vperm.xlu0 %2231, %v2152
  %v2233 = vpop.permute.xlu0 %2232
  %v2235 = vmul.f32 %v2233, %v2229
  %v2236 = vsub.f32 1.0, %v2152
  %2238 = vset.pattern.permute.xlu0 0
  %2239 = vperm.xlu0 %2238, %v2236
  %v2240 = vpop.permute.xlu0 %2239
  %v2242 = vmul.f32 %v2240, %v2155
  %2244 = vrot.lane.b32.xlu0 %v2242, 48
  %v2245 = vpop.permute.xlu0 %2244
  %v2247 = vadd.f32 %v2235, %v2245
  %2249 = vrot.lane.b32.xlu0 %v2247, 80
  %v2250 = vpop.permute.xlu0 %2249
  %2252 = vst.msk [vmem:[#allocation4] sm:$0xff] %vm372, %v2250
  %v2253 = vmul.f32 %v2233, %v2223
  %v2254 = vld [vmem:[#allocation5] sm:$0xff]
  %v2255 = vmul.f32 %v2240, %v2254
  %2257 = vrot.lane.b32.xlu0 %v2255, 16
  %v2258 = vpop.permute.xlu0 %2257
  %v2260 = vadd.f32 %v2253, %v2258
  %2262 = vrot.lane.b32.xlu0 %v2260, 112
  %v2263 = vpop.permute.xlu0 %2262
  %2265 = vst.msk [vmem:[#allocation5] sm:$0xff] %vm372, %v2263
  %v2266 = vpack.c.bf16 %v2235, %v2235
  %v2268 = vunpack.c.l.b16 %v2266
  %v2269 = vpack.c.b16 %v2268, %v2268
  %2270 = vrot.lane.b32.xlu0 %v2269, 80
  %v2271 = vpop.permute.xlu0 %2270
  %s2273 = scalar_lea.vmem %s9, 28
  %2274 = vst.msk [vmem:[%s2273] sm:$0xf] %vm489, %v2271
  %v2275 = vstv %s358
  %vm2276 = vcmp.lt.s32.totalorder %v2275, %v355
  %v2277 = vsel %vm2276, 1, 0
  %v2278 = vcvt.s32.f32 %v2277
  %v2279 = vld [vmem:[#allocation3] sm:$0xff]
  %v2280 = vld [vmem:[#allocation6] sm:$0xff]
  %v2281 = vpack.c.bf16 %v2280, %v2280
  %v2283 = vsel %vm372, %v2281, 0
  %2285 = vmatprep.subr.bf16.mxu0 0
  %2286 = vmatpush1.bf16.msra.mxu0 0
  %2287 = vmatprep.subr.bf16.mxu0 0
  %2288 = vmatpush1.bf16.msra.mxu0 0
  %2289 = vmatprep.subr.bf16.mxu0 0
  %2290 = vmatpush1.bf16.msra.mxu0 0
  %2291 = vmatprep.subr.bf16.mxu0 0
  %2292 = vmatpush1.bf16.msra.mxu0 0
  %2293 = vmatprep.subr.bf16.mxu0 0
  %2294 = vmatpush1.bf16.msra.mxu0 0
  %2295 = vmatprep.subr.bf16.mxu0 0
  %2296 = vmatpush1.bf16.msra.mxu0 0
  %2297 = vmatprep.subr.bf16.mxu0 0
  %2298 = vmatpush1.bf16.msra.mxu0 0
  %2299 = vmatprep.subr.bf16.mxu0 0
  %2300 = vmatpush1.bf16.msra.mxu0 %v504
  %2301 = vmatprep.subr.bf16.mxu0 0
  %2302 = vmatpush2.bf16.msra.mxu0 0
  %2303 = vmatprep.subr.bf16.mxu0 0
  %2304 = vmatpush2.bf16.msra.mxu0 0
  %2305 = vmatprep.subr.bf16.mxu0 0
  %2306 = vmatpush2.bf16.msra.mxu0 0
  %2307 = vmatprep.subr.bf16.mxu0 0
  %2308 = vmatpush2.bf16.msra.mxu0 0
  %2309 = vmatprep.subr.bf16.mxu0 0
  %2310 = vmatpush2.bf16.msra.mxu0 0
  %2311 = vmatprep.subr.bf16.mxu0 0
  %2312 = vmatpush2.bf16.msra.mxu0 0
  %2313 = vmatprep.subr.bf16.mxu0 0
  %2314 = vmatpush2.bf16.msra.mxu0 0
  %2315 = vmatprep.subr.bf16.mxu0 0
  %2316 = vmatpush2.bf16.msra.mxu0 0
  %2317 = vmatprep.mubr.bf16.mxu0 0
  %2318 = vmatmul.mubr.bf16.gmra.mxu0 %v2283
  %v2319 = vpop.f32.mrf.mxu0
  %v2320 = vadd.f32 0.0, %v2319
  %v2321 = vpop.f32.mrf.mxu0
  %v2322 = vpop.f32.mrf.mxu0
  %v2323 = vpop.f32.mrf.mxu0
  %2324 = vdwg.mxu0
  %v2325 = vadd.f32 %v2279, %v2320
  %v2326 = vld [vmem:[#allocation7] sm:$0xff]
  %v2327 = vxor.u32 %v2325, 2147483648
  %v2328 = vmul.f32 %v2327, 1.442695
  %v2329 = vpow.pop %v2328
  %v2330 = vadd.f32 %v2329, 1.0
  %v2331 = vrcp.pop %v2330
  %v2332 = vmul.f32 1.0, %v2331
  %v2333 = vtanh.pop %v2325
  %2335 = vrot.lane.b32.xlu0 %v2326, 16
  %v2336 = vpop.permute.xlu0 %2335
  %v2338 = vmul.f32 %v2332, %v2336
  %2340 = vrot.lane.b32.xlu0 %v2333, 96
  %v2341 = vpop.permute.xlu0 %2340
  %v2343 = vmul.f32 %v2332, %v2341
  %2345 = vrot.lane.b32.xlu0 %v2343, 16
  %v2346 = vpop.permute.xlu0 %2345
  %v2348 = vadd.f32 %v2338, %v2346
  %v2349 = vtanh.pop %v2348
  %2351 = vrot.lane.b32.xlu0 %v2349, 32
  %v2352 = vpop.permute.xlu0 %2351
  %v2354 = vmul.f32 %v2332, %v2352
  %2356 = vset.pattern.permute.xlu0 0
  %2357 = vperm.xlu0 %2356, %v2278
  %v2358 = vpop.permute.xlu0 %2357
  %v2360 = vmul.f32 %v2358, %v2354
  %v2361 = vsub.f32 1.0, %v2278
  %2363 = vset.pattern.permute.xlu0 0
  %2364 = vperm.xlu0 %2363, %v2361
  %v2365 = vpop.permute.xlu0 %2364
  %v2367 = vmul.f32 %v2365, %v2280
  %2369 = vrot.lane.b32.xlu0 %v2367, 48
  %v2370 = vpop.permute.xlu0 %2369
  %v2372 = vadd.f32 %v2360, %v2370
  %2374 = vrot.lane.b32.xlu0 %v2372, 80
  %v2375 = vpop.permute.xlu0 %2374
  %2377 = vst.msk [vmem:[#allocation6] sm:$0xff] %vm372, %v2375
  %v2378 = vmul.f32 %v2358, %v2348
  %v2379 = vld [vmem:[#allocation7] sm:$0xff]
  %v2380 = vmul.f32 %v2365, %v2379
  %2382 = vrot.lane.b32.xlu0 %v2380, 16
  %v2383 = vpop.permute.xlu0 %2382
  %v2385 = vadd.f32 %v2378, %v2383
  %2387 = vrot.lane.b32.xlu0 %v2385, 112
  %v2388 = vpop.permute.xlu0 %2387
  %2390 = vst.msk [vmem:[#allocation7] sm:$0xff] %vm372, %v2388
  %v2391 = vpack.c.bf16 %v2360, %v2360
  %v2393 = vunpack.c.l.b16 %v2391
  %v2394 = vpack.c.b16 %v2393, %v2393
  %2395 = vrot.lane.b32.xlu0 %v2394, 80
  %v2396 = vpop.permute.xlu0 %2395
  %2398 = vst.msk [vmem:[%s65] sm:$0xf] %vm489, %v2396
  %s2399 = ssub.s32 0, 0
  %p2400 = scmp.lt.s32.totalorder %s2399, 0
  %s2401 = scalar_select %p2400, %s2399, 0
  %s2402 = smul.addr %s2401, 8
  %s2403 = smul.addr %s2402, 4
  %s2404 = scalar_lea.vmem %s10, %s2403
  // Predicated region
  $region42: #{bilstm_forward.2} parent=0 // pred_check
    _
  $region43: #{bilstm_forward.2} parent=0 // pred_check_branch
    %2406 = sbr.rel (0) target = $region45
  $region44: #{bilstm_forward.2} parent=0 // pred_region
    _
  $region45: #{bilstm_forward.2} parent=0 // pred_fallthru
    _
  // Predicated region
  $region46: #{bilstm_forward.2} parent=0 // pred_check
    _
  $region47: #{bilstm_forward.2} parent=0 // pred_check_branch
    %2408 = sbr.rel (0) target = $region49
  $region48: #{bilstm_forward.2} parent=0 // pred_region
    %s2409 = ssub.s32 0, 0
  $region49: #{bilstm_forward.2} parent=0 // pred_fallthru
    _
  // Predicated region
  $region50: #{bilstm_forward.2} parent=0 // pred_check
    _
  $region51: #{bilstm_forward.2} parent=0 // pred_check_branch
    %2411 = sbr.rel (0) target = $region53
  $region52: #{bilstm_forward.2} parent=0 // pred_region
    _
  $region53: #{bilstm_forward.2} parent=0 // pred_fallthru
    _
  // Predicated region
  $region54: #{bilstm_forward.2} parent=0 // pred_check
    _
  $region55: #{bilstm_forward.2} parent=0 // pred_check_branch
    %2413 = sbr.rel (0) target = $region57
  $region56: #{bilstm_forward.2} parent=0 // pred_region
    %s2414 = ssub.s32 0, 0
    %p2415 = scmp.lt.s32.totalorder %s2414, 0
    %s2416 = scalar_select %p2415, %s2414, 0
    %s2417 = smul.addr %s2416, 8
    %s2418 = smul.addr %s2417, 4
    %s2419 = scalar_lea.vmem %s10, %s2418
  $region57: #{bilstm_forward.2} parent=0 // pred_fallthru
    _

</llo_original>
